<compile_context>
chip_gen: v5e
topology: v5e:2x2
jax: 0.10.0
libtpu: 0.0.40
codegen_flags: <defaults>
</compile_context>

<pallas_src>
import jax
import jax.numpy as jnp
from jax.experimental import pallas as pl
from jax.experimental.pallas import tpu as pltpu


# ---------------------------------------------------------------------------
# Kernels: one depth-block of a 'same' Conv3d as a single MXU matmul with the
# module's pointwise epilogue fused.
#   w_ref : (Cout, K3)       full weight (grid-invariant, VMEM resident)
#   c_ref : (K3, Dtile*HW)   im2col slab for this (n, depth-block)
#   r_ref : (Cout, Dtile*HW) residual slab (conv2 kernel only)
#   o_ref : (Cout, Dtile*HW) output slab
# ---------------------------------------------------------------------------
def _conv_relu_kernel(w_ref, c_ref, o_ref):
    y = jnp.dot(w_ref[...], c_ref[...], preferred_element_type=jnp.float32)
    o_ref[...] = jnp.maximum(y, 0.0).astype(o_ref.dtype)          # ReLU fused (C1 epilogue)


def _conv_residual_kernel(w_ref, c_ref, r_ref, o_ref):
    y = jnp.dot(w_ref[...], c_ref[...], preferred_element_type=jnp.float32)
    o_ref[...] = (y + r_ref[...].astype(jnp.float32)).astype(o_ref.dtype)   # "+ x" fused (C2)


def _vmem_capacity_bytes():
    try:
        return int(pltpu.get_tpu_info().vmem_capacity_bytes)
    except Exception:
        return 128 * 1024 * 1024   # v5e/v6e physical VMEM; v7x (64 MiB) answers the query


def _pick_dtile_and_vmem(N, D, HW, K3, Cout, itemsize, has_residual):
    """Largest Dtile (divisor of D) whose double-buffered working set fits ~75% of VMEM."""
    budget = (_vmem_capacity_bytes() * 3) // 4     # ~48 MiB on v7x, ~96 MiB on v5e/v6e

    def step_bytes(dt):
        L = dt * HW
        b = 2 * K3 * L * itemsize                  # cols block, double-buffered
        b += 2 * Cout * L * itemsize               # output block, double-buffered
        if has_residual:
            b += 2 * Cout * L * itemsize           # residual block
        b += 2 * Cout * K3 * itemsize              # weight (resident)
        return int(b * 1.25)                       # ~25% headroom for compiler scratch

    divisors = [d for d in range(1, D + 1) if D % d == 0]
    valid = [d for d in divisors if d == D or (d * HW) % 128 == 0]   # lane-dense blocks
    if not valid:
        valid = [D]
    dtile = valid[0]
    for d in valid:
        if step_bytes(d) <= budget:
            dtile = max(dtile, d)
    # Keep >= 2 parallel grid steps so the v7x megacore (2 TCs) has work to shard.
    while N * (D // dtile) < 2:
        smaller = [d for d in valid if d < dtile]
        if not smaller:
            break
        dtile = smaller[-1]
    vmem_limit = int(min(budget, max(step_bytes(dtile), 32 * 1024 * 1024)))
    return dtile, vmem_limit


def _conv3d_same_im2col(x, weight, *, residual=None):
    """'same'-padded, stride-1, bias-free Conv3d (odd cubic kernel) on NCDHW input.

    Fuses a ReLU epilogue when `residual is None`, otherwise fuses `+ residual`.  Returns NCDHW.
    """
    N, Cin, D, H, W = x.shape
    Cout, cin_w, kd_, kh_, kw_ = weight.shape
    assert cin_w == Cin and kd_ == kh_ == kw_ and kd_ % 2 == 1, "odd cubic kernel expected"
    k = kd_
    p = (k - 1) // 2
    HW = H * W
    K3 = k * k * k * Cin

    # Plain-JAX layout glue: zero pad + full (kd, kh, kw) im2col (k^3 blow-up, see TODO above).
    xp = jnp.pad(x, ((0, 0), (0, 0), (p, p), (p, p), (p, p)))
    slabs = [xp[:, :, kd:kd + D, kh:kh + H, kw:kw + W]
             for kd in range(k) for kh in range(k) for kw in range(k)]
    cols = jnp.stack(slabs, axis=1).reshape(N, K3, D * HW)     # K3 ordered (kd, kh, kw, ci)

    # Weight -> (Cout, (kd, kh, kw, ci)) to match the cols K axis.
    w3 = jnp.transpose(weight, (0, 2, 3, 4, 1)).reshape(Cout, K3)

    itemsize = jnp.dtype(x.dtype).itemsize
    dtile, vmem_limit = _pick_dtile_and_vmem(
        N, D, HW, K3, Cout, itemsize, has_residual=residual is not None)
    L = dtile * HW
    grid = (N, D // dtile)

    in_specs = [
        pl.BlockSpec((Cout, K3), lambda n, b: (0, 0)),          # weight: fetched once, stays put
        pl.BlockSpec((None, K3, L), lambda n, b: (n, 0, b)),    # im2col slab for this depth block
    ]
    args = [w3, cols]
    if residual is None:
        kernel = _conv_relu_kernel
    else:
        kernel = _conv_residual_kernel
        in_specs.append(pl.BlockSpec((None, Cout, L), lambda n, b: (n, 0, b)))
        args.append(residual.reshape(N, Cout, D * HW))

    out = pl.pallas_call(
        kernel,
        out_shape=jax.ShapeDtypeStruct((N, Cout, D * HW), x.dtype),
        grid_spec=pltpu.PrefetchScalarGridSpec(
            num_scalar_prefetch=0,
            grid=grid,
            in_specs=in_specs,
            out_specs=pl.BlockSpec((None, Cout, L), lambda n, b: (n, 0, b)),
        ),
        compiler_params=pltpu.CompilerParams(
            dimension_semantics=("parallel", "parallel"),
            vmem_limit_bytes=vmem_limit,
        ),
    )(*args)

    return out.reshape(N, Cout, D, H, W)


@jax.jit
def rescrc_forward(x, w1, w2):
    """ResCRC forward: x + C2(ReLU(C1(x))).  x: (N, C, D, H, W) NCDHW (PyTorch layout)."""
    h = _conv3d_same_im2col(x, w1)                    # ReLU(C1(x)),  ReLU fused in-kernel
    return _conv3d_same_im2col(h, w2, residual=x)     # x + C2(h),    residual add fused in-kernel


if __name__ == "__main__":
    key = jax.random.PRNGKey(0)
    kx, k1, k2 = jax.random.split(key, 3)

    # ResCRC needs in_channels == out_channels for the residual add.
    N, C, D, H, W = 2, 8, 16, 16, 16
    ksize = 3

    x = jax.random.normal(kx, (N, C, D, H, W), dtype=jnp.float32)
    fan_in = C * ksize ** 3
    bound = 1.0 / (fan_in ** 0.5)
    w1 = jax.random.uniform(k1, (C, C, ksize, ksize, ksize), jnp.float32, -bound, bound)
    w2 = jax.random.uniform(k2, (C, C, ksize, ksize, ksize), jnp.float32, -bound, bound)

    out = rescrc_forward(x, w1, w2)
    jax.block_until_ready(out)

    # Reference with identical semantics to the PyTorch module (stride 1, 'same', no bias).
    dn = ("NCDHW", "OIDHW", "NCDHW")
    h_ref = jnp.maximum(
        jax.lax.conv_general_dilated(x, w1, (1, 1, 1), "SAME", dimension_numbers=dn), 0.0)
    ref = x + jax.lax.conv_general_dilated(h_ref, w2, (1, 1, 1), "SAME", dimension_numbers=dn)

    assert out.shape == (N, C, D, H, W)
    assert jnp.allclose(out, ref, atol=1e-3, rtol=1e-3), float(jnp.max(jnp.abs(out - ref)))

    print("KERNEL_OK")
</pallas_src>

<mosaic_0001>
module attributes {stable_mosaic.version = 11 : i64} {
  func.func @_conv_relu_kernel(%arg0: i32, %arg1: i32, %arg2: memref<8x216xf32, #tpu.memory_space<vmem>>, %arg3: memref<1x216x4096xf32, #tpu.memory_space<vmem>>, %arg4: memref<1x8x4096xf32, #tpu.memory_space<vmem>>) attributes {dimension_semantics = [#tpu.dimension_semantics<parallel>, #tpu.dimension_semantics<parallel>], iteration_bounds = array<i64: 2, 1>, scalar_prefetch = 0 : i64, scratch_operands = 0 : i64, tpu.core_type = #tpu.core_type<tc>, window_params = [{pipeline_mode = #tpu.pipeline_mode<synchronous>, transform_indices = @transform_0, window_bounds = array<i64: 8, 216>}, {transform_indices = @transform_1, window_bounds = array<i64: 1, 216, 4096>}, {transform_indices = @transform_2, window_bounds = array<i64: 1, 8, 4096>}]} {
    %c0 = arith.constant 0 : index
    %c0_0 = arith.constant 0 : index
    %0 = vector.load %arg2[%c0, %c0_0] : memref<8x216xf32, #tpu.memory_space<vmem>>, vector<8x216xf32>
    %c0_1 = arith.constant 0 : index
    %c0_2 = arith.constant 0 : index
    %c0_3 = arith.constant 0 : index
    %1 = vector.load %arg3[%c0_1, %c0_2, %c0_3] : memref<1x216x4096xf32, #tpu.memory_space<vmem>>, vector<1x216x4096xf32>
    %2 = vector.shape_cast %1 : vector<1x216x4096xf32> to vector<216x4096xf32>
    %cst = arith.constant dense<0.000000e+00> : vector<8x4096xf32>
    %3 = tpu.matmul %0, %2, %cst {dimension_numbers = #tpu.dot_dimension_numbers<[1], [0], [0], [1], [0, 0, 1, 1], [], []>} : vector<8x216xf32>, vector<216x4096xf32>, vector<8x4096xf32> -> vector<8x4096xf32>
    %cst_4 = arith.constant 0.000000e+00 : f32
    %4 = vector.broadcast %cst_4 : f32 to vector<8x4096xf32>
    %5 = arith.maximumf %3, %4 : vector<8x4096xf32>
    %c0_5 = arith.constant 0 : index
    %c0_6 = arith.constant 0 : index
    %c0_7 = arith.constant 0 : index
    %6 = vector.load %arg4[%c0_5, %c0_6, %c0_7] : memref<1x8x4096xf32, #tpu.memory_space<vmem>>, vector<1x8x4096xf32>
    %7 = vector.shape_cast %6 : vector<1x8x4096xf32> to vector<8x4096xf32>
    %8 = vector.shape_cast %5 : vector<8x4096xf32> to vector<1x8x4096xf32>
    tpu.vector_store %arg4[%c0_5, %c0_6, %c0_7], %8 {strides = array<i32>} : memref<1x8x4096xf32, #tpu.memory_space<vmem>>, vector<1x8x4096xf32>,
    return
  }
  func.func @transform_0(%arg0: i32, %arg1: i32) -> (i32, i32) {
    %c0_i32 = arith.constant 0 : i32
    %c0_i32_0 = arith.constant 0 : i32
    %c0_i32_1 = arith.constant 0 : i32
    return %c0_i32, %c0_i32_0 : i32, i32
  }
  func.func @transform_1(%arg0: i32, %arg1: i32) -> (i32, i32, i32) {
    %c0_i32 = arith.constant 0 : i32
    %c0_i32_0 = arith.constant 0 : i32
    return %arg0, %c0_i32, %arg1 : i32, i32, i32
  }
  func.func @transform_2(%arg0: i32, %arg1: i32) -> (i32, i32, i32) {
    %c0_i32 = arith.constant 0 : i32
    %c0_i32_0 = arith.constant 0 : i32
    return %arg0, %c0_i32, %arg1 : i32, i32, i32
  }
}

module attributes {stable_mosaic.version = 11 : i64} {
  func.func @_conv_residual_kernel(%arg0: i32, %arg1: i32, %arg2: memref<8x216xf32, #tpu.memory_space<vmem>>, %arg3: memref<1x216x4096xf32, #tpu.memory_space<vmem>>, %arg4: memref<1x8x4096xf32, #tpu.memory_space<vmem>>, %arg5: memref<1x8x4096xf32, #tpu.memory_space<vmem>>) attributes {dimension_semantics = [#tpu.dimension_semantics<parallel>, #tpu.dimension_semantics<parallel>], iteration_bounds = array<i64: 2, 1>, scalar_prefetch = 0 : i64, scratch_operands = 0 : i64, tpu.core_type = #tpu.core_type<tc>, window_params = [{pipeline_mode = #tpu.pipeline_mode<synchronous>, transform_indices = @transform_0, window_bounds = array<i64: 8, 216>}, {transform_indices = @transform_1, window_bounds = array<i64: 1, 216, 4096>}, {transform_indices = @transform_2, window_bounds = array<i64: 1, 8, 4096>}, {transform_indices = @transform_3, window_bounds = array<i64: 1, 8, 4096>}]} {
    %c0 = arith.constant 0 : index
    %c0_0 = arith.constant 0 : index
    %0 = vector.load %arg2[%c0, %c0_0] : memref<8x216xf32, #tpu.memory_space<vmem>>, vector<8x216xf32>
    %c0_1 = arith.constant 0 : index
    %c0_2 = arith.constant 0 : index
    %c0_3 = arith.constant 0 : index
    %1 = vector.load %arg3[%c0_1, %c0_2, %c0_3] : memref<1x216x4096xf32, #tpu.memory_space<vmem>>, vector<1x216x4096xf32>
    %2 = vector.shape_cast %1 : vector<1x216x4096xf32> to vector<216x4096xf32>
    %cst = arith.constant dense<0.000000e+00> : vector<8x4096xf32>
    %3 = tpu.matmul %0, %2, %cst {dimension_numbers = #tpu.dot_dimension_numbers<[1], [0], [0], [1], [0, 0, 1, 1], [], []>} : vector<8x216xf32>, vector<216x4096xf32>, vector<8x4096xf32> -> vector<8x4096xf32>
    %c0_4 = arith.constant 0 : index
    %c0_5 = arith.constant 0 : index
    %c0_6 = arith.constant 0 : index
    %4 = vector.load %arg4[%c0_4, %c0_5, %c0_6] : memref<1x8x4096xf32, #tpu.memory_space<vmem>>, vector<1x8x4096xf32>
    %5 = vector.shape_cast %4 : vector<1x8x4096xf32> to vector<8x4096xf32>
    %6 = arith.addf %3, %5 : vector<8x4096xf32>
    %c0_7 = arith.constant 0 : index
    %c0_8 = arith.constant 0 : index
    %c0_9 = arith.constant 0 : index
    %7 = vector.load %arg5[%c0_7, %c0_8, %c0_9] : memref<1x8x4096xf32, #tpu.memory_space<vmem>>, vector<1x8x4096xf32>
    %8 = vector.shape_cast %7 : vector<1x8x4096xf32> to vector<8x4096xf32>
    %9 = vector.shape_cast %6 : vector<8x4096xf32> to vector<1x8x4096xf32>
    tpu.vector_store %arg5[%c0_7, %c0_8, %c0_9], %9 {strides = array<i32>} : memref<1x8x4096xf32, #tpu.memory_space<vmem>>, vector<1x8x4096xf32>,
    return
  }
  func.func @transform_0(%arg0: i32, %arg1: i32) -> (i32, i32) {
    %c0_i32 = arith.constant 0 : i32
    %c0_i32_0 = arith.constant 0 : i32
    %c0_i32_1 = arith.constant 0 : i32
    return %c0_i32, %c0_i32_0 : i32, i32
  }
  func.func @transform_1(%arg0: i32, %arg1: i32) -> (i32, i32, i32) {
    %c0_i32 = arith.constant 0 : i32
    %c0_i32_0 = arith.constant 0 : i32
    return %arg0, %c0_i32, %arg1 : i32, i32, i32
  }
  func.func @transform_2(%arg0: i32, %arg1: i32) -> (i32, i32, i32) {
    %c0_i32 = arith.constant 0 : i32
    %c0_i32_0 = arith.constant 0 : i32
    return %arg0, %c0_i32, %arg1 : i32, i32, i32
  }
  func.func @transform_3(%arg0: i32, %arg1: i32) -> (i32, i32, i32) {
    %c0_i32 = arith.constant 0 : i32
    %c0_i32_0 = arith.constant 0 : i32
    return %arg0, %c0_i32, %arg1 : i32, i32, i32
  }
}

</mosaic_0001>

<llo_original>
// kernel: rescrc_forward.2
$region0: #{rescrc_forward.2}
  #allocation0 [shape = 'u32[]', space=smem, size = 0x4, offset = 0x4, fixed_abs, tag = 'smem constant byte address 0x4 - core index']
  #allocation1 [shape = 'u32[72,128]{1,0:T(1,128)}', space=vmem, size = 0x9000, scoped, tag = 'internal scratch']
  %s0 = inlined_call_operand.vmem [shape: f32[8,216], index: 0, kind: input, shape index: {}]
  %s1 = inlined_call_operand.vmem [shape: f32[2,216,4096], index: 1, kind: input, shape index: {}]
  %s2 = inlined_call_operand.vmem [shape: f32[2,8,4096], index: 2, kind: output, shape index: {}]
  %s3 = sld [smem:[#allocation0]]
  $region41: #{rescrc_forward.2} parent=0
    _
  %s5 = ssub.s32 1, %s3
  %s6 = scalar_select 0, %s5, %s3
  loop: start=0, step=1, limit=4
  $region2: #{rescrc_forward.2} parent=0 // loop_pre_header
    _
  $region3: #{rescrc_forward.2} parent=0 // loop_header
    %s8 = sphi 0, %s12
    %p9 = scmp.ge.s32.totalorder %s8, 4
    %s15 = sphi 0, %s27
    %s16 = sphi 0, %s23
    %s17 = sphi 0, %s15
    %s18 = sphi 0, %s16
    %s19 = sphi 0, %s17
    %s20 = sphi 0, %s18
    %s28 = sphi 0, %s28
    %s30 = sphi 0, %s28
    %s31 = sphi 0, %s30
    %s45 = sphi 0, %s31
    %s53 = sphi 0, %s55
    %s56 = sphi 0, %s53
    %s57 = sphi 0, %s56
    %s73 = sphi 0, %s57
    %s81 = sphi 0, %s83
    %s84 = sphi 0, %s81
    %s85 = sphi 0, %s84
    %s101 = sphi 0, %s85
  $region4: #{rescrc_forward.2} parent=0 // loop_header_branch
    %11 = sbr.rel (%p9) target = $region8
  $region5: #{rescrc_forward.2} parent=0 // loop_body
    %s13 = ssub.s32 %s8, 1
    %s14 = ssub.s32 %s8, 2
    %s21 = sadd.s32 1, %s16
    %p22 = scmp.ge.s32.totalorder %s21, 1
    %s23 = scalar_select %p22, 0, %s21
    %s24 = sadd.s32 1, %s15
    %s25 = scalar_select %p22, %s24, %s15
    %p26 = scmp.ge.s32.totalorder %s25, 2
    %s27 = scalar_select %p26, 0, %s25
    %s29 = sadd.s32 %s28, 1
    %p32 = scmp.eq.s32.totalorder %s8, 1
    %p33 = scmp.ne.s32.totalorder %s28, %s30
    %p34 = scmp.eq.s32.totalorder %s8, 0
    %p35 = por %p33, %p34
    %p36 = scmp.ne.s32.totalorder %s28, %s30
    %p37 = scmp.eq.s32.totalorder %s13, 1
    %p38 = por %p36, %p37
    %p39 = scmp.ne.s32.totalorder %s30, %s31
    %p40 = scmp.eq.s32.totalorder %s13, 0
    %p41 = por %p39, %p40
    %p42 = scmp.ne.s32.totalorder %s30, %s31
    %p43 = scmp.eq.s32.totalorder %s14, 1
    %p44 = por %p42, %p43
    %p46 = scmp.ne.s32.totalorder %s31, %s45
    %p47 = scmp.eq.s32.totalorder %s14, 0
    %p48 = por %p46, %p47
    %s49 = ssub.s32 %s15, %s27
    %s50 = ssub.s32 %s16, %s23
    %s51 = sor.u32 %s49, %s50
    %p52 = scmp.eq.s32.totalorder %s51, 0
    %s54 = sadd.s32 %s53, 1
    %s55 = scalar_select %p52, %s53, %s54
    %p58 = pneg %p52
    %p59 = scmp.eq.s32.totalorder %s8, 1
    %p60 = por %p58, %p59
    %p61 = scmp.ne.s32.totalorder %s53, %s56
    %p62 = scmp.eq.s32.totalorder %s8, 0
    %p63 = por %p61, %p62
    %p64 = scmp.ne.s32.totalorder %s53, %s56
    %p65 = scmp.eq.s32.totalorder %s13, 1
    %p66 = por %p64, %p65
    %p67 = scmp.ne.s32.totalorder %s56, %s57
    %p68 = scmp.eq.s32.totalorder %s13, 0
    %p69 = por %p67, %p68
    %p70 = scmp.ne.s32.totalorder %s56, %s57
    %p71 = scmp.eq.s32.totalorder %s14, 1
    %p72 = por %p70, %p71
    %p74 = scmp.ne.s32.totalorder %s57, %s73
    %p75 = scmp.eq.s32.totalorder %s14, 0
    %p76 = por %p74, %p75
    %s77 = ssub.s32 %s15, %s27
    %s78 = ssub.s32 %s16, %s23
    %s79 = sor.u32 %s77, %s78
    %p80 = scmp.eq.s32.totalorder %s79, 0
    %s82 = sadd.s32 %s81, 1
    %s83 = scalar_select %p80, %s81, %s82
    %p86 = pneg %p80
    %p87 = scmp.eq.s32.totalorder %s8, 1
    %p88 = por %p86, %p87
    %p89 = scmp.ne.s32.totalorder %s81, %s84
    %p90 = scmp.eq.s32.totalorder %s8, 0
    %p91 = por %p89, %p90
    %p92 = scmp.ne.s32.totalorder %s81, %s84
    %p93 = scmp.eq.s32.totalorder %s13, 1
    %p94 = por %p92, %p93
    %p95 = scmp.ne.s32.totalorder %s84, %s85
    %p96 = scmp.eq.s32.totalorder %s13, 0
    %p97 = por %p95, %p96
    %p98 = scmp.ne.s32.totalorder %s84, %s85
    %p99 = scmp.eq.s32.totalorder %s14, 1
    %p100 = por %p98, %p99
    %p102 = scmp.ne.s32.totalorder %s85, %s101
    %p103 = scmp.eq.s32.totalorder %s14, 0
    %p104 = por %p102, %p103
    %p105 = scmp.le.s32.totalorder 1, %s8
    %p106 = scmp.lt.s32.totalorder %s8, 3
    %p107 = pnand %p105, %p106
    %p108 = pneg %p107
    // Predicated region
    $region9: #{rescrc_forward.2} parent=5 // pred_check
      _
    $region10: #{rescrc_forward.2} parent=5 // pred_check_branch
      %110 = sbr.rel (%p107) target = $region12
    $region11: #{rescrc_forward.2} parent=5 // pred_region
      %s111 = ssub.s32 %s8, 1
      // Predicated region
      $region13: #{rescrc_forward.2} parent=11 // pred_check
        %p112 = pneg %p41
      $region14: #{rescrc_forward.2} parent=11 // pred_check_branch
        %114 = sbr.rel (%p112) target = $region16
      $region15: #{rescrc_forward.2} parent=11 // pred_region
        _
      $region16: #{rescrc_forward.2} parent=11 // pred_fallthru
        _
    $region12: #{rescrc_forward.2} parent=5 // pred_fallthru
      _
    %p115 = scmp.lt.s32.totalorder %s8, 2
    // Predicated region
    $region17: #{rescrc_forward.2} parent=5 // pred_check
      %p116 = pneg %p115
    $region18: #{rescrc_forward.2} parent=5 // pred_check_branch
      %118 = sbr.rel (%p116) target = $region20
    $region19: #{rescrc_forward.2} parent=5 // pred_region
      // Predicated region
      $region21: #{rescrc_forward.2} parent=19 // pred_check
        %p119 = pneg %p63
      $region22: #{rescrc_forward.2} parent=19 // pred_check_branch
        %121 = sbr.rel (%p119) target = $region24
      $region23: #{rescrc_forward.2} parent=19 // pred_region
        %s122 = smul.u32 32, %s16
        %p123 = scmp.lt.s32.totalorder %s15, 1
        %s124 = scalar_select %p123, %s15, 1
        %p125 = scmp.lt.s32.totalorder %s122, 31
        %s126 = scalar_select %p125, %s122, 31
        %s127 = smul.addr %s124, 864
        %s128 = sadd.s32 %s126, %s127
        %s129 = smul.addr %s128, 8
        %s130 = scalar_lea.vmem %s1, %s129
        %s131 = smul.u32 32, %s16
      $region24: #{rescrc_forward.2} parent=19 // pred_fallthru
        _
    $region20: #{rescrc_forward.2} parent=5 // pred_fallthru
      _
    %p132 = scmp.le.s32.totalorder 1, %s8
    %p133 = scmp.lt.s32.totalorder %s8, 3
    %p134 = pnand %p132, %p133
    %p135 = pneg %p134
    // Predicated region
    $region25: #{rescrc_forward.2} parent=5 // pred_check
      _
    $region26: #{rescrc_forward.2} parent=5 // pred_check_branch
      %137 = sbr.rel (%p134) target = $region28
    $region27: #{rescrc_forward.2} parent=5 // pred_region
      %s138 = ssub.s32 %s8, 1
      %p139 = pneg %p41
      %p140 = pneg %p38
      %s141 = smul.u32 32, %s18
      %p142 = scmp.lt.s32.totalorder %s17, 1
      %s143 = scalar_select %p142, %s17, 1
      %p144 = scmp.lt.s32.totalorder %s141, 31
      %s145 = scalar_select %p144, %s141, 31
      %s146 = smul.addr %s143, 864
      %s147 = sadd.s32 %s145, %s146
      %s148 = smul.addr %s147, 8
      %s149 = scalar_lea.vmem %s1, %s148
      %p150 = pneg %p69
      %p151 = pneg %p66
      %p152 = pneg %p97
      %p153 = pneg %p94
      %s154 = smul.u32 32, %s18
      %p155 = scmp.lt.s32.totalorder %s17, 1
      %s156 = scalar_select %p155, %s17, 1
      %p157 = scmp.lt.s32.totalorder %s154, 31
      %s158 = scalar_select %p157, %s154, 31
      %s159 = smul.addr %s156, 32
      %s160 = sadd.s32 %s158, %s159
      %s161 = smul.addr %s160, 8
      %s162 = scalar_lea.vmem %s2, %s161
      %s163 = smul.u32 32, %s18
      %p164 = scmp.lt.s32.totalorder %s17, 1
      %s165 = scalar_select %p164, %s17, 1
      %p166 = scmp.lt.s32.totalorder %s163, 31
      %s167 = scalar_select %p166, %s163, 31
      %s168 = smul.addr %s165, 864
      %s169 = sadd.s32 %s167, %s168
      %s170 = smul.addr %s169, 8
      %s171 = scalar_lea.vmem %s1, %s170
      %s172 = smul.u32 32, %s18
      %s173 = smul.u32 32, %s18
      %p174 = scmp.lt.s32.totalorder %s17, 1
      %s175 = scalar_select %p174, %s17, 1
      %p176 = scmp.lt.s32.totalorder %s173, 31
      %s177 = scalar_select %p176, %s173, 31
      %s178 = smul.addr %s175, 32
      %s179 = sadd.s32 %s177, %s178
      %s180 = smul.addr %s179, 8
      %s181 = scalar_lea.vmem %s2, %s180
      %s182 = smul.u32 32, %s18
      %v183 = vld [vmem:[%s0] sm:$0xff]
      %v184 = vld [vmem:[%s0 + $0x8] sm:$0xff]
      %v185 = vld [vmem:[%s171] sm:$0xff]
      %v186 = vld [vmem:[%s171 + $0x8] sm:$0xff]
      %v187 = vld [vmem:[%s171 + $0x10] sm:$0xff]
      %v188 = vld [vmem:[%s171 + $0x18] sm:$0xff]
      %v189 = vld [vmem:[%s171 + $0x20] sm:$0xff]
      %v190 = vld [vmem:[%s171 + $0x28] sm:$0xff]
      %v191 = vld [vmem:[%s171 + $0x30] sm:$0xff]
      %v192 = vld [vmem:[%s171 + $0x38] sm:$0xff]
      %v193 = vld [vmem:[%s171 + $0x40] sm:$0xff]
      %v194 = vld [vmem:[%s171 + $0x48] sm:$0xff]
      %v195 = vld [vmem:[%s171 + $0x50] sm:$0xff]
      %v196 = vld [vmem:[%s171 + $0x58] sm:$0xff]
      %v197 = vld [vmem:[%s171 + $0x60] sm:$0xff]
      %v198 = vld [vmem:[%s171 + $0x68] sm:$0xff]
      %v199 = vld [vmem:[%s171 + $0x70] sm:$0xff]
      %v200 = vld [vmem:[%s171 + $0x78] sm:$0xff]
      %v201 = vld [vmem:[%s171 + $0x80] sm:$0xff]
      %v202 = vld [vmem:[%s171 + $0x88] sm:$0xff]
      %v203 = vld [vmem:[%s171 + $0x90] sm:$0xff]
      %v204 = vld [vmem:[%s171 + $0x98] sm:$0xff]
      %v205 = vld [vmem:[%s171 + $0xa0] sm:$0xff]
      %v206 = vld [vmem:[%s171 + $0xa8] sm:$0xff]
      %v207 = vld [vmem:[%s171 + $0xb0] sm:$0xff]
      %v208 = vld [vmem:[%s171 + $0xb8] sm:$0xff]
      %v209 = vld [vmem:[%s171 + $0xc0] sm:$0xff]
      %v210 = vld [vmem:[%s171 + $0xc8] sm:$0xff]
      %v211 = vld [vmem:[%s171 + $0xd0] sm:$0xff]
      %v212 = vld [vmem:[%s171 + $0xd8] sm:$0xff]
      %v213 = vld [vmem:[%s171 + $0xe0] sm:$0xff]
      %v214 = vld [vmem:[%s171 + $0xe8] sm:$0xff]
      %v215 = vld [vmem:[%s171 + $0xf0] sm:$0xff]
      %v216 = vld [vmem:[%s171 + $0xf8] sm:$0xff]
      %v217 = vld [vmem:[%s171 + $0x100] sm:$0xff]
      %v218 = vld [vmem:[%s171 + $0x108] sm:$0xff]
      %v219 = vld [vmem:[%s171 + $0x110] sm:$0xff]
      %v220 = vld [vmem:[%s171 + $0x118] sm:$0xff]
      %v221 = vld [vmem:[%s171 + $0x120] sm:$0xff]
      %v222 = vld [vmem:[%s171 + $0x128] sm:$0xff]
      %v223 = vld [vmem:[%s171 + $0x130] sm:$0xff]
      %v224 = vld [vmem:[%s171 + $0x138] sm:$0xff]
      %v225 = vld [vmem:[%s171 + $0x140] sm:$0xff]
      %v226 = vld [vmem:[%s171 + $0x148] sm:$0xff]
      %v227 = vld [vmem:[%s171 + $0x150] sm:$0xff]
      %v228 = vld [vmem:[%s171 + $0x158] sm:$0xff]
      %v229 = vld [vmem:[%s171 + $0x160] sm:$0xff]
      %v230 = vld [vmem:[%s171 + $0x168] sm:$0xff]
      %v231 = vld [vmem:[%s171 + $0x170] sm:$0xff]
      %v232 = vld [vmem:[%s171 + $0x178] sm:$0xff]
      %v233 = vld [vmem:[%s171 + $0x180] sm:$0xff]
      %v234 = vld [vmem:[%s171 + $0x188] sm:$0xff]
      %v235 = vld [vmem:[%s171 + $0x190] sm:$0xff]
      %v236 = vld [vmem:[%s171 + $0x198] sm:$0xff]
      %v237 = vld [vmem:[%s171 + $0x1a0] sm:$0xff]
      %v238 = vld [vmem:[%s171 + $0x1a8] sm:$0xff]
      %v239 = vld [vmem:[%s171 + $0x1b0] sm:$0xff]
      %v240 = vld [vmem:[%s171 + $0x1b8] sm:$0xff]
      %v241 = vld [vmem:[%s171 + $0x1c0] sm:$0xff]
      %v242 = vld [vmem:[%s171 + $0x1c8] sm:$0xff]
      %v243 = vld [vmem:[%s171 + $0x1d0] sm:$0xff]
      %v244 = vld [vmem:[%s171 + $0x1d8] sm:$0xff]
      %v245 = vld [vmem:[%s171 + $0x1e0] sm:$0xff]
      %v246 = vld [vmem:[%s171 + $0x1e8] sm:$0xff]
      %v247 = vld [vmem:[%s171 + $0x1f0] sm:$0xff]
      %v248 = vld [vmem:[%s171 + $0x1f8] sm:$0xff]
      %v249 = vld [vmem:[%s171 + $0x200] sm:$0xff]
      %v250 = vld [vmem:[%s171 + $0x208] sm:$0xff]
      %v251 = vld [vmem:[%s171 + $0x210] sm:$0xff]
      %v252 = vld [vmem:[%s171 + $0x218] sm:$0xff]
      %v253 = vld [vmem:[%s171 + $0x220] sm:$0xff]
      %v254 = vld [vmem:[%s171 + $0x228] sm:$0xff]
      %v255 = vld [vmem:[%s171 + $0x230] sm:$0xff]
      %v256 = vld [vmem:[%s171 + $0x238] sm:$0xff]
      %v257 = vld [vmem:[%s171 + $0x240] sm:$0xff]
      %v258 = vld [vmem:[%s171 + $0x248] sm:$0xff]
      %v259 = vld [vmem:[%s171 + $0x250] sm:$0xff]
      %v260 = vld [vmem:[%s171 + $0x258] sm:$0xff]
      %v261 = vld [vmem:[%s171 + $0x260] sm:$0xff]
      %v262 = vld [vmem:[%s171 + $0x268] sm:$0xff]
      %v263 = vld [vmem:[%s171 + $0x270] sm:$0xff]
      %v264 = vld [vmem:[%s171 + $0x278] sm:$0xff]
      %v265 = vld [vmem:[%s171 + $0x280] sm:$0xff]
      %v266 = vld [vmem:[%s171 + $0x288] sm:$0xff]
      %v267 = vld [vmem:[%s171 + $0x290] sm:$0xff]
      %v268 = vld [vmem:[%s171 + $0x298] sm:$0xff]
      %v269 = vld [vmem:[%s171 + $0x2a0] sm:$0xff]
      %v270 = vld [vmem:[%s171 + $0x2a8] sm:$0xff]
      %v271 = vld [vmem:[%s171 + $0x2b0] sm:$0xff]
      %v272 = vld [vmem:[%s171 + $0x2b8] sm:$0xff]
      %v273 = vld [vmem:[%s171 + $0x2c0] sm:$0xff]
      %v274 = vld [vmem:[%s171 + $0x2c8] sm:$0xff]
      %v275 = vld [vmem:[%s171 + $0x2d0] sm:$0xff]
      %v276 = vld [vmem:[%s171 + $0x2d8] sm:$0xff]
      %v277 = vld [vmem:[%s171 + $0x2e0] sm:$0xff]
      %v278 = vld [vmem:[%s171 + $0x2e8] sm:$0xff]
      %v279 = vld [vmem:[%s171 + $0x2f0] sm:$0xff]
      %v280 = vld [vmem:[%s171 + $0x2f8] sm:$0xff]
      %v281 = vld [vmem:[%s171 + $0x300] sm:$0xff]
      %v282 = vld [vmem:[%s171 + $0x308] sm:$0xff]
      %v283 = vld [vmem:[%s171 + $0x310] sm:$0xff]
      %v284 = vld [vmem:[%s171 + $0x318] sm:$0xff]
      %v285 = vld [vmem:[%s171 + $0x320] sm:$0xff]
      %v286 = vld [vmem:[%s171 + $0x328] sm:$0xff]
      %v287 = vld [vmem:[%s171 + $0x330] sm:$0xff]
      %v288 = vld [vmem:[%s171 + $0x338] sm:$0xff]
      %v289 = vld [vmem:[%s171 + $0x340] sm:$0xff]
      %v290 = vld [vmem:[%s171 + $0x348] sm:$0xff]
      %v291 = vld [vmem:[%s171 + $0x350] sm:$0xff]
      %v292 = vld [vmem:[%s171 + $0x358] sm:$0xff]
      %v293 = vld [vmem:[%s171 + $0x360] sm:$0xff]
      %v294 = vld [vmem:[%s171 + $0x368] sm:$0xff]
      %v295 = vld [vmem:[%s171 + $0x370] sm:$0xff]
      %v296 = vld [vmem:[%s171 + $0x378] sm:$0xff]
      %v297 = vld [vmem:[%s171 + $0x380] sm:$0xff]
      %v298 = vld [vmem:[%s171 + $0x388] sm:$0xff]
      %v299 = vld [vmem:[%s171 + $0x390] sm:$0xff]
      %v300 = vld [vmem:[%s171 + $0x398] sm:$0xff]
      %v301 = vld [vmem:[%s171 + $0x3a0] sm:$0xff]
      %v302 = vld [vmem:[%s171 + $0x3a8] sm:$0xff]
      %v303 = vld [vmem:[%s171 + $0x3b0] sm:$0xff]
      %v304 = vld [vmem:[%s171 + $0x3b8] sm:$0xff]
      %v305 = vld [vmem:[%s171 + $0x3c0] sm:$0xff]
      %v306 = vld [vmem:[%s171 + $0x3c8] sm:$0xff]
      %v307 = vld [vmem:[%s171 + $0x3d0] sm:$0xff]
      %v308 = vld [vmem:[%s171 + $0x3d8] sm:$0xff]
      %v309 = vld [vmem:[%s171 + $0x3e0] sm:$0xff]
      %v310 = vld [vmem:[%s171 + $0x3e8] sm:$0xff]
      %v311 = vld [vmem:[%s171 + $0x3f0] sm:$0xff]
      %v312 = vld [vmem:[%s171 + $0x3f8] sm:$0xff]
      %v313 = vld [vmem:[%s171 + $0x400] sm:$0xff]
      %v314 = vld [vmem:[%s171 + $0x408] sm:$0xff]
      %v315 = vld [vmem:[%s171 + $0x410] sm:$0xff]
      %v316 = vld [vmem:[%s171 + $0x418] sm:$0xff]
      %v317 = vld [vmem:[%s171 + $0x420] sm:$0xff]
      %v318 = vld [vmem:[%s171 + $0x428] sm:$0xff]
      %v319 = vld [vmem:[%s171 + $0x430] sm:$0xff]
      %v320 = vld [vmem:[%s171 + $0x438] sm:$0xff]
      %v321 = vld [vmem:[%s171 + $0x440] sm:$0xff]
      %v322 = vld [vmem:[%s171 + $0x448] sm:$0xff]
      %v323 = vld [vmem:[%s171 + $0x450] sm:$0xff]
      %v324 = vld [vmem:[%s171 + $0x458] sm:$0xff]
      %v325 = vld [vmem:[%s171 + $0x460] sm:$0xff]
      %v326 = vld [vmem:[%s171 + $0x468] sm:$0xff]
      %v327 = vld [vmem:[%s171 + $0x470] sm:$0xff]
      %v328 = vld [vmem:[%s171 + $0x478] sm:$0xff]
      %v329 = vld [vmem:[%s171 + $0x480] sm:$0xff]
      %v330 = vld [vmem:[%s171 + $0x488] sm:$0xff]
      %v331 = vld [vmem:[%s171 + $0x490] sm:$0xff]
      %v332 = vld [vmem:[%s171 + $0x498] sm:$0xff]
      %v333 = vld [vmem:[%s171 + $0x4a0] sm:$0xff]
      %v334 = vld [vmem:[%s171 + $0x4a8] sm:$0xff]
      %v335 = vld [vmem:[%s171 + $0x4b0] sm:$0xff]
      %v336 = vld [vmem:[%s171 + $0x4b8] sm:$0xff]
      %v337 = vld [vmem:[%s171 + $0x4c0] sm:$0xff]
      %v338 = vld [vmem:[%s171 + $0x4c8] sm:$0xff]
      %v339 = vld [vmem:[%s171 + $0x4d0] sm:$0xff]
      %v340 = vld [vmem:[%s171 + $0x4d8] sm:$0xff]
      %v341 = vld [vmem:[%s171 + $0x4e0] sm:$0xff]
      %v342 = vld [vmem:[%s171 + $0x4e8] sm:$0xff]
      %v343 = vld [vmem:[%s171 + $0x4f0] sm:$0xff]
      %v344 = vld [vmem:[%s171 + $0x4f8] sm:$0xff]
      %v345 = vld [vmem:[%s171 + $0x500] sm:$0xff]
      %v346 = vld [vmem:[%s171 + $0x508] sm:$0xff]
      %v347 = vld [vmem:[%s171 + $0x510] sm:$0xff]
      %v348 = vld [vmem:[%s171 + $0x518] sm:$0xff]
      %v349 = vld [vmem:[%s171 + $0x520] sm:$0xff]
      %v350 = vld [vmem:[%s171 + $0x528] sm:$0xff]
      %v351 = vld [vmem:[%s171 + $0x530] sm:$0xff]
      %v352 = vld [vmem:[%s171 + $0x538] sm:$0xff]
      %v353 = vld [vmem:[%s171 + $0x540] sm:$0xff]
      %v354 = vld [vmem:[%s171 + $0x548] sm:$0xff]
      %v355 = vld [vmem:[%s171 + $0x550] sm:$0xff]
      %v356 = vld [vmem:[%s171 + $0x558] sm:$0xff]
      %v357 = vld [vmem:[%s171 + $0x560] sm:$0xff]
      %v358 = vld [vmem:[%s171 + $0x568] sm:$0xff]
      %v359 = vld [vmem:[%s171 + $0x570] sm:$0xff]
      %v360 = vld [vmem:[%s171 + $0x578] sm:$0xff]
      %v361 = vld [vmem:[%s171 + $0x580] sm:$0xff]
      %v362 = vld [vmem:[%s171 + $0x588] sm:$0xff]
      %v363 = vld [vmem:[%s171 + $0x590] sm:$0xff]
      %v364 = vld [vmem:[%s171 + $0x598] sm:$0xff]
      %v365 = vld [vmem:[%s171 + $0x5a0] sm:$0xff]
      %v366 = vld [vmem:[%s171 + $0x5a8] sm:$0xff]
      %v367 = vld [vmem:[%s171 + $0x5b0] sm:$0xff]
      %v368 = vld [vmem:[%s171 + $0x5b8] sm:$0xff]
      %v369 = vld [vmem:[%s171 + $0x5c0] sm:$0xff]
      %v370 = vld [vmem:[%s171 + $0x5c8] sm:$0xff]
      %v371 = vld [vmem:[%s171 + $0x5d0] sm:$0xff]
      %v372 = vld [vmem:[%s171 + $0x5d8] sm:$0xff]
      %v373 = vld [vmem:[%s171 + $0x5e0] sm:$0xff]
      %v374 = vld [vmem:[%s171 + $0x5e8] sm:$0xff]
      %v375 = vld [vmem:[%s171 + $0x5f0] sm:$0xff]
      %v376 = vld [vmem:[%s171 + $0x5f8] sm:$0xff]
      %v377 = vld [vmem:[%s171 + $0x600] sm:$0xff]
      %v378 = vld [vmem:[%s171 + $0x608] sm:$0xff]
      %v379 = vld [vmem:[%s171 + $0x610] sm:$0xff]
      %v380 = vld [vmem:[%s171 + $0x618] sm:$0xff]
      %v381 = vld [vmem:[%s171 + $0x620] sm:$0xff]
      %v382 = vld [vmem:[%s171 + $0x628] sm:$0xff]
      %v383 = vld [vmem:[%s171 + $0x630] sm:$0xff]
      %v384 = vld [vmem:[%s171 + $0x638] sm:$0xff]
      %v385 = vld [vmem:[%s171 + $0x640] sm:$0xff]
      %v386 = vld [vmem:[%s171 + $0x648] sm:$0xff]
      %v387 = vld [vmem:[%s171 + $0x650] sm:$0xff]
      %v388 = vld [vmem:[%s171 + $0x658] sm:$0xff]
      %v389 = vld [vmem:[%s171 + $0x660] sm:$0xff]
      %v390 = vld [vmem:[%s171 + $0x668] sm:$0xff]
      %v391 = vld [vmem:[%s171 + $0x670] sm:$0xff]
      %v392 = vld [vmem:[%s171 + $0x678] sm:$0xff]
      %v393 = vld [vmem:[%s171 + $0x680] sm:$0xff]
      %v394 = vld [vmem:[%s171 + $0x688] sm:$0xff]
      %v395 = vld [vmem:[%s171 + $0x690] sm:$0xff]
      %v396 = vld [vmem:[%s171 + $0x698] sm:$0xff]
      %v397 = vld [vmem:[%s171 + $0x6a0] sm:$0xff]
      %v398 = vld [vmem:[%s171 + $0x6a8] sm:$0xff]
      %v399 = vld [vmem:[%s171 + $0x6b0] sm:$0xff]
      %v400 = vld [vmem:[%s171 + $0x6b8] sm:$0xff]
      %v401 = vld [vmem:[%s171 + $0x6c0] sm:$0xff]
      %v402 = vld [vmem:[%s171 + $0x6c8] sm:$0xff]
      %v403 = vld [vmem:[%s171 + $0x6d0] sm:$0xff]
      %v404 = vld [vmem:[%s171 + $0x6d8] sm:$0xff]
      %v405 = vld [vmem:[%s171 + $0x6e0] sm:$0xff]
      %v406 = vld [vmem:[%s171 + $0x6e8] sm:$0xff]
      %v407 = vld [vmem:[%s171 + $0x6f0] sm:$0xff]
      %v408 = vld [vmem:[%s171 + $0x6f8] sm:$0xff]
      %v409 = vld [vmem:[%s171 + $0x700] sm:$0xff]
      %v410 = vld [vmem:[%s171 + $0x708] sm:$0xff]
      %v411 = vld [vmem:[%s171 + $0x710] sm:$0xff]
      %v412 = vld [vmem:[%s171 + $0x718] sm:$0xff]
      %v413 = vld [vmem:[%s171 + $0x720] sm:$0xff]
      %v414 = vld [vmem:[%s171 + $0x728] sm:$0xff]
      %v415 = vld [vmem:[%s171 + $0x730] sm:$0xff]
      %v416 = vld [vmem:[%s171 + $0x738] sm:$0xff]
      %v417 = vld [vmem:[%s171 + $0x740] sm:$0xff]
      %v418 = vld [vmem:[%s171 + $0x748] sm:$0xff]
      %v419 = vld [vmem:[%s171 + $0x750] sm:$0xff]
      %v420 = vld [vmem:[%s171 + $0x758] sm:$0xff]
      %v421 = vld [vmem:[%s171 + $0x760] sm:$0xff]
      %v422 = vld [vmem:[%s171 + $0x768] sm:$0xff]
      %v423 = vld [vmem:[%s171 + $0x770] sm:$0xff]
      %v424 = vld [vmem:[%s171 + $0x778] sm:$0xff]
      %v425 = vld [vmem:[%s171 + $0x780] sm:$0xff]
      %v426 = vld [vmem:[%s171 + $0x788] sm:$0xff]
      %v427 = vld [vmem:[%s171 + $0x790] sm:$0xff]
      %v428 = vld [vmem:[%s171 + $0x798] sm:$0xff]
      %v429 = vld [vmem:[%s171 + $0x7a0] sm:$0xff]
      %v430 = vld [vmem:[%s171 + $0x7a8] sm:$0xff]
      %v431 = vld [vmem:[%s171 + $0x7b0] sm:$0xff]
      %v432 = vld [vmem:[%s171 + $0x7b8] sm:$0xff]
      %v433 = vld [vmem:[%s171 + $0x7c0] sm:$0xff]
      %v434 = vld [vmem:[%s171 + $0x7c8] sm:$0xff]
      %v435 = vld [vmem:[%s171 + $0x7d0] sm:$0xff]
      %v436 = vld [vmem:[%s171 + $0x7d8] sm:$0xff]
      %v437 = vld [vmem:[%s171 + $0x7e0] sm:$0xff]
      %v438 = vld [vmem:[%s171 + $0x7e8] sm:$0xff]
      %v439 = vld [vmem:[%s171 + $0x7f0] sm:$0xff]
      %v440 = vld [vmem:[%s171 + $0x7f8] sm:$0xff]
      %v441 = vld [vmem:[%s171 + $0x800] sm:$0xff]
      %v442 = vld [vmem:[%s171 + $0x808] sm:$0xff]
      %v443 = vld [vmem:[%s171 + $0x810] sm:$0xff]
      %v444 = vld [vmem:[%s171 + $0x818] sm:$0xff]
      %v445 = vld [vmem:[%s171 + $0x820] sm:$0xff]
      %v446 = vld [vmem:[%s171 + $0x828] sm:$0xff]
      %v447 = vld [vmem:[%s171 + $0x830] sm:$0xff]
      %v448 = vld [vmem:[%s171 + $0x838] sm:$0xff]
      %v449 = vld [vmem:[%s171 + $0x840] sm:$0xff]
      %v450 = vld [vmem:[%s171 + $0x848] sm:$0xff]
      %v451 = vld [vmem:[%s171 + $0x850] sm:$0xff]
      %v452 = vld [vmem:[%s171 + $0x858] sm:$0xff]
      %v453 = vld [vmem:[%s171 + $0x860] sm:$0xff]
      %v454 = vld [vmem:[%s171 + $0x868] sm:$0xff]
      %v455 = vld [vmem:[%s171 + $0x870] sm:$0xff]
      %v456 = vld [vmem:[%s171 + $0x878] sm:$0xff]
      %v457 = vld [vmem:[%s171 + $0x880] sm:$0xff]
      %v458 = vld [vmem:[%s171 + $0x888] sm:$0xff]
      %v459 = vld [vmem:[%s171 + $0x890] sm:$0xff]
      %v460 = vld [vmem:[%s171 + $0x898] sm:$0xff]
      %v461 = vld [vmem:[%s171 + $0x8a0] sm:$0xff]
      %v462 = vld [vmem:[%s171 + $0x8a8] sm:$0xff]
      %v463 = vld [vmem:[%s171 + $0x8b0] sm:$0xff]
      %v464 = vld [vmem:[%s171 + $0x8b8] sm:$0xff]
      %v465 = vld [vmem:[%s171 + $0x8c0] sm:$0xff]
      %v466 = vld [vmem:[%s171 + $0x8c8] sm:$0xff]
      %v467 = vld [vmem:[%s171 + $0x8d0] sm:$0xff]
      %v468 = vld [vmem:[%s171 + $0x8d8] sm:$0xff]
      %v469 = vld [vmem:[%s171 + $0x8e0] sm:$0xff]
      %v470 = vld [vmem:[%s171 + $0x8e8] sm:$0xff]
      %v471 = vld [vmem:[%s171 + $0x8f0] sm:$0xff]
      %v472 = vld [vmem:[%s171 + $0x8f8] sm:$0xff]
      %v473 = vld [vmem:[%s171 + $0x900] sm:$0xff]
      %v474 = vld [vmem:[%s171 + $0x908] sm:$0xff]
      %v475 = vld [vmem:[%s171 + $0x910] sm:$0xff]
      %v476 = vld [vmem:[%s171 + $0x918] sm:$0xff]
      %v477 = vld [vmem:[%s171 + $0x920] sm:$0xff]
      %v478 = vld [vmem:[%s171 + $0x928] sm:$0xff]
      %v479 = vld [vmem:[%s171 + $0x930] sm:$0xff]
      %v480 = vld [vmem:[%s171 + $0x938] sm:$0xff]
      %v481 = vld [vmem:[%s171 + $0x940] sm:$0xff]
      %v482 = vld [vmem:[%s171 + $0x948] sm:$0xff]
      %v483 = vld [vmem:[%s171 + $0x950] sm:$0xff]
      %v484 = vld [vmem:[%s171 + $0x958] sm:$0xff]
      %v485 = vld [vmem:[%s171 + $0x960] sm:$0xff]
      %v486 = vld [vmem:[%s171 + $0x968] sm:$0xff]
      %v487 = vld [vmem:[%s171 + $0x970] sm:$0xff]
      %v488 = vld [vmem:[%s171 + $0x978] sm:$0xff]
      %v489 = vld [vmem:[%s171 + $0x980] sm:$0xff]
      %v490 = vld [vmem:[%s171 + $0x988] sm:$0xff]
      %v491 = vld [vmem:[%s171 + $0x990] sm:$0xff]
      %v492 = vld [vmem:[%s171 + $0x998] sm:$0xff]
      %v493 = vld [vmem:[%s171 + $0x9a0] sm:$0xff]
      %v494 = vld [vmem:[%s171 + $0x9a8] sm:$0xff]
      %v495 = vld [vmem:[%s171 + $0x9b0] sm:$0xff]
      %v496 = vld [vmem:[%s171 + $0x9b8] sm:$0xff]
      %v497 = vld [vmem:[%s171 + $0x9c0] sm:$0xff]
      %v498 = vld [vmem:[%s171 + $0x9c8] sm:$0xff]
      %v499 = vld [vmem:[%s171 + $0x9d0] sm:$0xff]
      %v500 = vld [vmem:[%s171 + $0x9d8] sm:$0xff]
      %v501 = vld [vmem:[%s171 + $0x9e0] sm:$0xff]
      %v502 = vld [vmem:[%s171 + $0x9e8] sm:$0xff]
      %v503 = vld [vmem:[%s171 + $0x9f0] sm:$0xff]
      %v504 = vld [vmem:[%s171 + $0x9f8] sm:$0xff]
      %v505 = vld [vmem:[%s171 + $0xa00] sm:$0xff]
      %v506 = vld [vmem:[%s171 + $0xa08] sm:$0xff]
      %v507 = vld [vmem:[%s171 + $0xa10] sm:$0xff]
      %v508 = vld [vmem:[%s171 + $0xa18] sm:$0xff]
      %v509 = vld [vmem:[%s171 + $0xa20] sm:$0xff]
      %v510 = vld [vmem:[%s171 + $0xa28] sm:$0xff]
      %v511 = vld [vmem:[%s171 + $0xa30] sm:$0xff]
      %v512 = vld [vmem:[%s171 + $0xa38] sm:$0xff]
      %v513 = vld [vmem:[%s171 + $0xa40] sm:$0xff]
      %v514 = vld [vmem:[%s171 + $0xa48] sm:$0xff]
      %v515 = vld [vmem:[%s171 + $0xa50] sm:$0xff]
      %v516 = vld [vmem:[%s171 + $0xa58] sm:$0xff]
      %v517 = vld [vmem:[%s171 + $0xa60] sm:$0xff]
      %v518 = vld [vmem:[%s171 + $0xa68] sm:$0xff]
      %v519 = vld [vmem:[%s171 + $0xa70] sm:$0xff]
      %v520 = vld [vmem:[%s171 + $0xa78] sm:$0xff]
      %v521 = vld [vmem:[%s171 + $0xa80] sm:$0xff]
      %v522 = vld [vmem:[%s171 + $0xa88] sm:$0xff]
      %v523 = vld [vmem:[%s171 + $0xa90] sm:$0xff]
      %v524 = vld [vmem:[%s171 + $0xa98] sm:$0xff]
      %v525 = vld [vmem:[%s171 + $0xaa0] sm:$0xff]
      %v526 = vld [vmem:[%s171 + $0xaa8] sm:$0xff]
      %v527 = vld [vmem:[%s171 + $0xab0] sm:$0xff]
      %v528 = vld [vmem:[%s171 + $0xab8] sm:$0xff]
      %v529 = vld [vmem:[%s171 + $0xac0] sm:$0xff]
      %v530 = vld [vmem:[%s171 + $0xac8] sm:$0xff]
      %v531 = vld [vmem:[%s171 + $0xad0] sm:$0xff]
      %v532 = vld [vmem:[%s171 + $0xad8] sm:$0xff]
      %v533 = vld [vmem:[%s171 + $0xae0] sm:$0xff]
      %v534 = vld [vmem:[%s171 + $0xae8] sm:$0xff]
      %v535 = vld [vmem:[%s171 + $0xaf0] sm:$0xff]
      %v536 = vld [vmem:[%s171 + $0xaf8] sm:$0xff]
      %v537 = vld [vmem:[%s171 + $0xb00] sm:$0xff]
      %v538 = vld [vmem:[%s171 + $0xb08] sm:$0xff]
      %v539 = vld [vmem:[%s171 + $0xb10] sm:$0xff]
      %v540 = vld [vmem:[%s171 + $0xb18] sm:$0xff]
      %v541 = vld [vmem:[%s171 + $0xb20] sm:$0xff]
      %v542 = vld [vmem:[%s171 + $0xb28] sm:$0xff]
      %v543 = vld [vmem:[%s171 + $0xb30] sm:$0xff]
      %v544 = vld [vmem:[%s171 + $0xb38] sm:$0xff]
      %v545 = vld [vmem:[%s171 + $0xb40] sm:$0xff]
      %v546 = vld [vmem:[%s171 + $0xb48] sm:$0xff]
      %v547 = vld [vmem:[%s171 + $0xb50] sm:$0xff]
      %v548 = vld [vmem:[%s171 + $0xb58] sm:$0xff]
      %v549 = vld [vmem:[%s171 + $0xb60] sm:$0xff]
      %v550 = vld [vmem:[%s171 + $0xb68] sm:$0xff]
      %v551 = vld [vmem:[%s171 + $0xb70] sm:$0xff]
      %v552 = vld [vmem:[%s171 + $0xb78] sm:$0xff]
      %v553 = vld [vmem:[%s171 + $0xb80] sm:$0xff]
      %v554 = vld [vmem:[%s171 + $0xb88] sm:$0xff]
      %v555 = vld [vmem:[%s171 + $0xb90] sm:$0xff]
      %v556 = vld [vmem:[%s171 + $0xb98] sm:$0xff]
      %v557 = vld [vmem:[%s171 + $0xba0] sm:$0xff]
      %v558 = vld [vmem:[%s171 + $0xba8] sm:$0xff]
      %v559 = vld [vmem:[%s171 + $0xbb0] sm:$0xff]
      %v560 = vld [vmem:[%s171 + $0xbb8] sm:$0xff]
      %v561 = vld [vmem:[%s171 + $0xbc0] sm:$0xff]
      %v562 = vld [vmem:[%s171 + $0xbc8] sm:$0xff]
      %v563 = vld [vmem:[%s171 + $0xbd0] sm:$0xff]
      %v564 = vld [vmem:[%s171 + $0xbd8] sm:$0xff]
      %v565 = vld [vmem:[%s171 + $0xbe0] sm:$0xff]
      %v566 = vld [vmem:[%s171 + $0xbe8] sm:$0xff]
      %v567 = vld [vmem:[%s171 + $0xbf0] sm:$0xff]
      %v568 = vld [vmem:[%s171 + $0xbf8] sm:$0xff]
      %v569 = vld [vmem:[%s171 + $0xc00] sm:$0xff]
      %v570 = vld [vmem:[%s171 + $0xc08] sm:$0xff]
      %v571 = vld [vmem:[%s171 + $0xc10] sm:$0xff]
      %v572 = vld [vmem:[%s171 + $0xc18] sm:$0xff]
      %v573 = vld [vmem:[%s171 + $0xc20] sm:$0xff]
      %v574 = vld [vmem:[%s171 + $0xc28] sm:$0xff]
      %v575 = vld [vmem:[%s171 + $0xc30] sm:$0xff]
      %v576 = vld [vmem:[%s171 + $0xc38] sm:$0xff]
      %v577 = vld [vmem:[%s171 + $0xc40] sm:$0xff]
      %v578 = vld [vmem:[%s171 + $0xc48] sm:$0xff]
      %v579 = vld [vmem:[%s171 + $0xc50] sm:$0xff]
      %v580 = vld [vmem:[%s171 + $0xc58] sm:$0xff]
      %v581 = vld [vmem:[%s171 + $0xc60] sm:$0xff]
      %v582 = vld [vmem:[%s171 + $0xc68] sm:$0xff]
      %v583 = vld [vmem:[%s171 + $0xc70] sm:$0xff]
      %v584 = vld [vmem:[%s171 + $0xc78] sm:$0xff]
      %v585 = vld [vmem:[%s171 + $0xc80] sm:$0xff]
      %v586 = vld [vmem:[%s171 + $0xc88] sm:$0xff]
      %v587 = vld [vmem:[%s171 + $0xc90] sm:$0xff]
      %v588 = vld [vmem:[%s171 + $0xc98] sm:$0xff]
      %v589 = vld [vmem:[%s171 + $0xca0] sm:$0xff]
      %v590 = vld [vmem:[%s171 + $0xca8] sm:$0xff]
      %v591 = vld [vmem:[%s171 + $0xcb0] sm:$0xff]
      %v592 = vld [vmem:[%s171 + $0xcb8] sm:$0xff]
      %v593 = vld [vmem:[%s171 + $0xcc0] sm:$0xff]
      %v594 = vld [vmem:[%s171 + $0xcc8] sm:$0xff]
      %v595 = vld [vmem:[%s171 + $0xcd0] sm:$0xff]
      %v596 = vld [vmem:[%s171 + $0xcd8] sm:$0xff]
      %v597 = vld [vmem:[%s171 + $0xce0] sm:$0xff]
      %v598 = vld [vmem:[%s171 + $0xce8] sm:$0xff]
      %v599 = vld [vmem:[%s171 + $0xcf0] sm:$0xff]
      %v600 = vld [vmem:[%s171 + $0xcf8] sm:$0xff]
      %v601 = vld [vmem:[%s171 + $0xd00] sm:$0xff]
      %v602 = vld [vmem:[%s171 + $0xd08] sm:$0xff]
      %v603 = vld [vmem:[%s171 + $0xd10] sm:$0xff]
      %v604 = vld [vmem:[%s171 + $0xd18] sm:$0xff]
      %v605 = vld [vmem:[%s171 + $0xd20] sm:$0xff]
      %v606 = vld [vmem:[%s171 + $0xd28] sm:$0xff]
      %v607 = vld [vmem:[%s171 + $0xd30] sm:$0xff]
      %v608 = vld [vmem:[%s171 + $0xd38] sm:$0xff]
      %v609 = vld [vmem:[%s171 + $0xd40] sm:$0xff]
      %v610 = vld [vmem:[%s171 + $0xd48] sm:$0xff]
      %v611 = vld [vmem:[%s171 + $0xd50] sm:$0xff]
      %v612 = vld [vmem:[%s171 + $0xd58] sm:$0xff]
      %v613 = vld [vmem:[%s171 + $0xd60] sm:$0xff]
      %v614 = vld [vmem:[%s171 + $0xd68] sm:$0xff]
      %v615 = vld [vmem:[%s171 + $0xd70] sm:$0xff]
      %v616 = vld [vmem:[%s171 + $0xd78] sm:$0xff]
      %v617 = vld [vmem:[%s171 + $0xd80] sm:$0xff]
      %v618 = vld [vmem:[%s171 + $0xd88] sm:$0xff]
      %v619 = vld [vmem:[%s171 + $0xd90] sm:$0xff]
      %v620 = vld [vmem:[%s171 + $0xd98] sm:$0xff]
      %v621 = vld [vmem:[%s171 + $0xda0] sm:$0xff]
      %v622 = vld [vmem:[%s171 + $0xda8] sm:$0xff]
      %v623 = vld [vmem:[%s171 + $0xdb0] sm:$0xff]
      %v624 = vld [vmem:[%s171 + $0xdb8] sm:$0xff]
      %v625 = vld [vmem:[%s171 + $0xdc0] sm:$0xff]
      %v626 = vld [vmem:[%s171 + $0xdc8] sm:$0xff]
      %v627 = vld [vmem:[%s171 + $0xdd0] sm:$0xff]
      %v628 = vld [vmem:[%s171 + $0xdd8] sm:$0xff]
      %v629 = vld [vmem:[%s171 + $0xde0] sm:$0xff]
      %v630 = vld [vmem:[%s171 + $0xde8] sm:$0xff]
      %v631 = vld [vmem:[%s171 + $0xdf0] sm:$0xff]
      %v632 = vld [vmem:[%s171 + $0xdf8] sm:$0xff]
      %v633 = vld [vmem:[%s171 + $0xe00] sm:$0xff]
      %v634 = vld [vmem:[%s171 + $0xe08] sm:$0xff]
      %v635 = vld [vmem:[%s171 + $0xe10] sm:$0xff]
      %v636 = vld [vmem:[%s171 + $0xe18] sm:$0xff]
      %v637 = vld [vmem:[%s171 + $0xe20] sm:$0xff]
      %v638 = vld [vmem:[%s171 + $0xe28] sm:$0xff]
      %v639 = vld [vmem:[%s171 + $0xe30] sm:$0xff]
      %v640 = vld [vmem:[%s171 + $0xe38] sm:$0xff]
      %v641 = vld [vmem:[%s171 + $0xe40] sm:$0xff]
      %v642 = vld [vmem:[%s171 + $0xe48] sm:$0xff]
      %v643 = vld [vmem:[%s171 + $0xe50] sm:$0xff]
      %v644 = vld [vmem:[%s171 + $0xe58] sm:$0xff]
      %v645 = vld [vmem:[%s171 + $0xe60] sm:$0xff]
      %v646 = vld [vmem:[%s171 + $0xe68] sm:$0xff]
      %v647 = vld [vmem:[%s171 + $0xe70] sm:$0xff]
      %v648 = vld [vmem:[%s171 + $0xe78] sm:$0xff]
      %v649 = vld [vmem:[%s171 + $0xe80] sm:$0xff]
      %v650 = vld [vmem:[%s171 + $0xe88] sm:$0xff]
      %v651 = vld [vmem:[%s171 + $0xe90] sm:$0xff]
      %v652 = vld [vmem:[%s171 + $0xe98] sm:$0xff]
      %v653 = vld [vmem:[%s171 + $0xea0] sm:$0xff]
      %v654 = vld [vmem:[%s171 + $0xea8] sm:$0xff]
      %v655 = vld [vmem:[%s171 + $0xeb0] sm:$0xff]
      %v656 = vld [vmem:[%s171 + $0xeb8] sm:$0xff]
      %v657 = vld [vmem:[%s171 + $0xec0] sm:$0xff]
      %v658 = vld [vmem:[%s171 + $0xec8] sm:$0xff]
      %v659 = vld [vmem:[%s171 + $0xed0] sm:$0xff]
      %v660 = vld [vmem:[%s171 + $0xed8] sm:$0xff]
      %v661 = vld [vmem:[%s171 + $0xee0] sm:$0xff]
      %v662 = vld [vmem:[%s171 + $0xee8] sm:$0xff]
      %v663 = vld [vmem:[%s171 + $0xef0] sm:$0xff]
      %v664 = vld [vmem:[%s171 + $0xef8] sm:$0xff]
      %v665 = vld [vmem:[%s171 + $0xf00] sm:$0xff]
      %v666 = vld [vmem:[%s171 + $0xf08] sm:$0xff]
      %v667 = vld [vmem:[%s171 + $0xf10] sm:$0xff]
      %v668 = vld [vmem:[%s171 + $0xf18] sm:$0xff]
      %v669 = vld [vmem:[%s171 + $0xf20] sm:$0xff]
      %v670 = vld [vmem:[%s171 + $0xf28] sm:$0xff]
      %v671 = vld [vmem:[%s171 + $0xf30] sm:$0xff]
      %v672 = vld [vmem:[%s171 + $0xf38] sm:$0xff]
      %v673 = vld [vmem:[%s171 + $0xf40] sm:$0xff]
      %v674 = vld [vmem:[%s171 + $0xf48] sm:$0xff]
      %v675 = vld [vmem:[%s171 + $0xf50] sm:$0xff]
      %v676 = vld [vmem:[%s171 + $0xf58] sm:$0xff]
      %v677 = vld [vmem:[%s171 + $0xf60] sm:$0xff]
      %v678 = vld [vmem:[%s171 + $0xf68] sm:$0xff]
      %v679 = vld [vmem:[%s171 + $0xf70] sm:$0xff]
      %v680 = vld [vmem:[%s171 + $0xf78] sm:$0xff]
      %v681 = vld [vmem:[%s171 + $0xf80] sm:$0xff]
      %v682 = vld [vmem:[%s171 + $0xf88] sm:$0xff]
      %v683 = vld [vmem:[%s171 + $0xf90] sm:$0xff]
      %v684 = vld [vmem:[%s171 + $0xf98] sm:$0xff]
      %v685 = vld [vmem:[%s171 + $0xfa0] sm:$0xff]
      %v686 = vld [vmem:[%s171 + $0xfa8] sm:$0xff]
      %v687 = vld [vmem:[%s171 + $0xfb0] sm:$0xff]
      %v688 = vld [vmem:[%s171 + $0xfb8] sm:$0xff]
      %v689 = vld [vmem:[%s171 + $0xfc0] sm:$0xff]
      %v690 = vld [vmem:[%s171 + $0xfc8] sm:$0xff]
      %v691 = vld [vmem:[%s171 + $0xfd0] sm:$0xff]
      %v692 = vld [vmem:[%s171 + $0xfd8] sm:$0xff]
      %v693 = vld [vmem:[%s171 + $0xfe0] sm:$0xff]
      %v694 = vld [vmem:[%s171 + $0xfe8] sm:$0xff]
      %v695 = vld [vmem:[%s171 + $0xff0] sm:$0xff]
      %v696 = vld [vmem:[%s171 + $0xff8] sm:$0xff]
      %v697 = vld [vmem:[%s171 + $0x1000] sm:$0xff]
      %v698 = vld [vmem:[%s171 + $0x1008] sm:$0xff]
      %v699 = vld [vmem:[%s171 + $0x1010] sm:$0xff]
      %v700 = vld [vmem:[%s171 + $0x1018] sm:$0xff]
      %v701 = vld [vmem:[%s171 + $0x1020] sm:$0xff]
      %v702 = vld [vmem:[%s171 + $0x1028] sm:$0xff]
      %v703 = vld [vmem:[%s171 + $0x1030] sm:$0xff]
      %v704 = vld [vmem:[%s171 + $0x1038] sm:$0xff]
      %v705 = vld [vmem:[%s171 + $0x1040] sm:$0xff]
      %v706 = vld [vmem:[%s171 + $0x1048] sm:$0xff]
      %v707 = vld [vmem:[%s171 + $0x1050] sm:$0xff]
      %v708 = vld [vmem:[%s171 + $0x1058] sm:$0xff]
      %v709 = vld [vmem:[%s171 + $0x1060] sm:$0xff]
      %v710 = vld [vmem:[%s171 + $0x1068] sm:$0xff]
      %v711 = vld [vmem:[%s171 + $0x1070] sm:$0xff]
      %v712 = vld [vmem:[%s171 + $0x1078] sm:$0xff]
      %v713 = vld [vmem:[%s171 + $0x1080] sm:$0xff]
      %v714 = vld [vmem:[%s171 + $0x1088] sm:$0xff]
      %v715 = vld [vmem:[%s171 + $0x1090] sm:$0xff]
      %v716 = vld [vmem:[%s171 + $0x1098] sm:$0xff]
      %v717 = vld [vmem:[%s171 + $0x10a0] sm:$0xff]
      %v718 = vld [vmem:[%s171 + $0x10a8] sm:$0xff]
      %v719 = vld [vmem:[%s171 + $0x10b0] sm:$0xff]
      %v720 = vld [vmem:[%s171 + $0x10b8] sm:$0xff]
      %v721 = vld [vmem:[%s171 + $0x10c0] sm:$0xff]
      %v722 = vld [vmem:[%s171 + $0x10c8] sm:$0xff]
      %v723 = vld [vmem:[%s171 + $0x10d0] sm:$0xff]
      %v724 = vld [vmem:[%s171 + $0x10d8] sm:$0xff]
      %v725 = vld [vmem:[%s171 + $0x10e0] sm:$0xff]
      %v726 = vld [vmem:[%s171 + $0x10e8] sm:$0xff]
      %v727 = vld [vmem:[%s171 + $0x10f0] sm:$0xff]
      %v728 = vld [vmem:[%s171 + $0x10f8] sm:$0xff]
      %v729 = vld [vmem:[%s171 + $0x1100] sm:$0xff]
      %v730 = vld [vmem:[%s171 + $0x1108] sm:$0xff]
      %v731 = vld [vmem:[%s171 + $0x1110] sm:$0xff]
      %v732 = vld [vmem:[%s171 + $0x1118] sm:$0xff]
      %v733 = vld [vmem:[%s171 + $0x1120] sm:$0xff]
      %v734 = vld [vmem:[%s171 + $0x1128] sm:$0xff]
      %v735 = vld [vmem:[%s171 + $0x1130] sm:$0xff]
      %v736 = vld [vmem:[%s171 + $0x1138] sm:$0xff]
      %v737 = vld [vmem:[%s171 + $0x1140] sm:$0xff]
      %v738 = vld [vmem:[%s171 + $0x1148] sm:$0xff]
      %v739 = vld [vmem:[%s171 + $0x1150] sm:$0xff]
      %v740 = vld [vmem:[%s171 + $0x1158] sm:$0xff]
      %v741 = vld [vmem:[%s171 + $0x1160] sm:$0xff]
      %v742 = vld [vmem:[%s171 + $0x1168] sm:$0xff]
      %v743 = vld [vmem:[%s171 + $0x1170] sm:$0xff]
      %v744 = vld [vmem:[%s171 + $0x1178] sm:$0xff]
      %v745 = vld [vmem:[%s171 + $0x1180] sm:$0xff]
      %v746 = vld [vmem:[%s171 + $0x1188] sm:$0xff]
      %v747 = vld [vmem:[%s171 + $0x1190] sm:$0xff]
      %v748 = vld [vmem:[%s171 + $0x1198] sm:$0xff]
      %v749 = vld [vmem:[%s171 + $0x11a0] sm:$0xff]
      %v750 = vld [vmem:[%s171 + $0x11a8] sm:$0xff]
      %v751 = vld [vmem:[%s171 + $0x11b0] sm:$0xff]
      %v752 = vld [vmem:[%s171 + $0x11b8] sm:$0xff]
      %v753 = vld [vmem:[%s171 + $0x11c0] sm:$0xff]
      %v754 = vld [vmem:[%s171 + $0x11c8] sm:$0xff]
      %v755 = vld [vmem:[%s171 + $0x11d0] sm:$0xff]
      %v756 = vld [vmem:[%s171 + $0x11d8] sm:$0xff]
      %v757 = vld [vmem:[%s171 + $0x11e0] sm:$0xff]
      %v758 = vld [vmem:[%s171 + $0x11e8] sm:$0xff]
      %v759 = vld [vmem:[%s171 + $0x11f0] sm:$0xff]
      %v760 = vld [vmem:[%s171 + $0x11f8] sm:$0xff]
      %v761 = vld [vmem:[%s171 + $0x1200] sm:$0xff]
      %v762 = vld [vmem:[%s171 + $0x1208] sm:$0xff]
      %v763 = vld [vmem:[%s171 + $0x1210] sm:$0xff]
      %v764 = vld [vmem:[%s171 + $0x1218] sm:$0xff]
      %v765 = vld [vmem:[%s171 + $0x1220] sm:$0xff]
      %v766 = vld [vmem:[%s171 + $0x1228] sm:$0xff]
      %v767 = vld [vmem:[%s171 + $0x1230] sm:$0xff]
      %v768 = vld [vmem:[%s171 + $0x1238] sm:$0xff]
      %v769 = vld [vmem:[%s171 + $0x1240] sm:$0xff]
      %v770 = vld [vmem:[%s171 + $0x1248] sm:$0xff]
      %v771 = vld [vmem:[%s171 + $0x1250] sm:$0xff]
      %v772 = vld [vmem:[%s171 + $0x1258] sm:$0xff]
      %v773 = vld [vmem:[%s171 + $0x1260] sm:$0xff]
      %v774 = vld [vmem:[%s171 + $0x1268] sm:$0xff]
      %v775 = vld [vmem:[%s171 + $0x1270] sm:$0xff]
      %v776 = vld [vmem:[%s171 + $0x1278] sm:$0xff]
      %v777 = vld [vmem:[%s171 + $0x1280] sm:$0xff]
      %v778 = vld [vmem:[%s171 + $0x1288] sm:$0xff]
      %v779 = vld [vmem:[%s171 + $0x1290] sm:$0xff]
      %v780 = vld [vmem:[%s171 + $0x1298] sm:$0xff]
      %v781 = vld [vmem:[%s171 + $0x12a0] sm:$0xff]
      %v782 = vld [vmem:[%s171 + $0x12a8] sm:$0xff]
      %v783 = vld [vmem:[%s171 + $0x12b0] sm:$0xff]
      %v784 = vld [vmem:[%s171 + $0x12b8] sm:$0xff]
      %v785 = vld [vmem:[%s171 + $0x12c0] sm:$0xff]
      %v786 = vld [vmem:[%s171 + $0x12c8] sm:$0xff]
      %v787 = vld [vmem:[%s171 + $0x12d0] sm:$0xff]
      %v788 = vld [vmem:[%s171 + $0x12d8] sm:$0xff]
      %v789 = vld [vmem:[%s171 + $0x12e0] sm:$0xff]
      %v790 = vld [vmem:[%s171 + $0x12e8] sm:$0xff]
      %v791 = vld [vmem:[%s171 + $0x12f0] sm:$0xff]
      %v792 = vld [vmem:[%s171 + $0x12f8] sm:$0xff]
      %v793 = vld [vmem:[%s171 + $0x1300] sm:$0xff]
      %v794 = vld [vmem:[%s171 + $0x1308] sm:$0xff]
      %v795 = vld [vmem:[%s171 + $0x1310] sm:$0xff]
      %v796 = vld [vmem:[%s171 + $0x1318] sm:$0xff]
      %v797 = vld [vmem:[%s171 + $0x1320] sm:$0xff]
      %v798 = vld [vmem:[%s171 + $0x1328] sm:$0xff]
      %v799 = vld [vmem:[%s171 + $0x1330] sm:$0xff]
      %v800 = vld [vmem:[%s171 + $0x1338] sm:$0xff]
      %v801 = vld [vmem:[%s171 + $0x1340] sm:$0xff]
      %v802 = vld [vmem:[%s171 + $0x1348] sm:$0xff]
      %v803 = vld [vmem:[%s171 + $0x1350] sm:$0xff]
      %v804 = vld [vmem:[%s171 + $0x1358] sm:$0xff]
      %v805 = vld [vmem:[%s171 + $0x1360] sm:$0xff]
      %v806 = vld [vmem:[%s171 + $0x1368] sm:$0xff]
      %v807 = vld [vmem:[%s171 + $0x1370] sm:$0xff]
      %v808 = vld [vmem:[%s171 + $0x1378] sm:$0xff]
      %v809 = vld [vmem:[%s171 + $0x1380] sm:$0xff]
      %v810 = vld [vmem:[%s171 + $0x1388] sm:$0xff]
      %v811 = vld [vmem:[%s171 + $0x1390] sm:$0xff]
      %v812 = vld [vmem:[%s171 + $0x1398] sm:$0xff]
      %v813 = vld [vmem:[%s171 + $0x13a0] sm:$0xff]
      %v814 = vld [vmem:[%s171 + $0x13a8] sm:$0xff]
      %v815 = vld [vmem:[%s171 + $0x13b0] sm:$0xff]
      %v816 = vld [vmem:[%s171 + $0x13b8] sm:$0xff]
      %v817 = vld [vmem:[%s171 + $0x13c0] sm:$0xff]
      %v818 = vld [vmem:[%s171 + $0x13c8] sm:$0xff]
      %v819 = vld [vmem:[%s171 + $0x13d0] sm:$0xff]
      %v820 = vld [vmem:[%s171 + $0x13d8] sm:$0xff]
      %v821 = vld [vmem:[%s171 + $0x13e0] sm:$0xff]
      %v822 = vld [vmem:[%s171 + $0x13e8] sm:$0xff]
      %v823 = vld [vmem:[%s171 + $0x13f0] sm:$0xff]
      %v824 = vld [vmem:[%s171 + $0x13f8] sm:$0xff]
      %v825 = vld [vmem:[%s171 + $0x1400] sm:$0xff]
      %v826 = vld [vmem:[%s171 + $0x1408] sm:$0xff]
      %v827 = vld [vmem:[%s171 + $0x1410] sm:$0xff]
      %v828 = vld [vmem:[%s171 + $0x1418] sm:$0xff]
      %v829 = vld [vmem:[%s171 + $0x1420] sm:$0xff]
      %v830 = vld [vmem:[%s171 + $0x1428] sm:$0xff]
      %v831 = vld [vmem:[%s171 + $0x1430] sm:$0xff]
      %v832 = vld [vmem:[%s171 + $0x1438] sm:$0xff]
      %v833 = vld [vmem:[%s171 + $0x1440] sm:$0xff]
      %v834 = vld [vmem:[%s171 + $0x1448] sm:$0xff]
      %v835 = vld [vmem:[%s171 + $0x1450] sm:$0xff]
      %v836 = vld [vmem:[%s171 + $0x1458] sm:$0xff]
      %v837 = vld [vmem:[%s171 + $0x1460] sm:$0xff]
      %v838 = vld [vmem:[%s171 + $0x1468] sm:$0xff]
      %v839 = vld [vmem:[%s171 + $0x1470] sm:$0xff]
      %v840 = vld [vmem:[%s171 + $0x1478] sm:$0xff]
      %v841 = vld [vmem:[%s171 + $0x1480] sm:$0xff]
      %v842 = vld [vmem:[%s171 + $0x1488] sm:$0xff]
      %v843 = vld [vmem:[%s171 + $0x1490] sm:$0xff]
      %v844 = vld [vmem:[%s171 + $0x1498] sm:$0xff]
      %v845 = vld [vmem:[%s171 + $0x14a0] sm:$0xff]
      %v846 = vld [vmem:[%s171 + $0x14a8] sm:$0xff]
      %v847 = vld [vmem:[%s171 + $0x14b0] sm:$0xff]
      %v848 = vld [vmem:[%s171 + $0x14b8] sm:$0xff]
      %v849 = vld [vmem:[%s171 + $0x14c0] sm:$0xff]
      %v850 = vld [vmem:[%s171 + $0x14c8] sm:$0xff]
      %v851 = vld [vmem:[%s171 + $0x14d0] sm:$0xff]
      %v852 = vld [vmem:[%s171 + $0x14d8] sm:$0xff]
      %v853 = vld [vmem:[%s171 + $0x14e0] sm:$0xff]
      %v854 = vld [vmem:[%s171 + $0x14e8] sm:$0xff]
      %v855 = vld [vmem:[%s171 + $0x14f0] sm:$0xff]
      %v856 = vld [vmem:[%s171 + $0x14f8] sm:$0xff]
      %v857 = vld [vmem:[%s171 + $0x1500] sm:$0xff]
      %v858 = vld [vmem:[%s171 + $0x1508] sm:$0xff]
      %v859 = vld [vmem:[%s171 + $0x1510] sm:$0xff]
      %v860 = vld [vmem:[%s171 + $0x1518] sm:$0xff]
      %v861 = vld [vmem:[%s171 + $0x1520] sm:$0xff]
      %v862 = vld [vmem:[%s171 + $0x1528] sm:$0xff]
      %v863 = vld [vmem:[%s171 + $0x1530] sm:$0xff]
      %v864 = vld [vmem:[%s171 + $0x1538] sm:$0xff]
      %v865 = vld [vmem:[%s171 + $0x1540] sm:$0xff]
      %v866 = vld [vmem:[%s171 + $0x1548] sm:$0xff]
      %v867 = vld [vmem:[%s171 + $0x1550] sm:$0xff]
      %v868 = vld [vmem:[%s171 + $0x1558] sm:$0xff]
      %v869 = vld [vmem:[%s171 + $0x1560] sm:$0xff]
      %v870 = vld [vmem:[%s171 + $0x1568] sm:$0xff]
      %v871 = vld [vmem:[%s171 + $0x1570] sm:$0xff]
      %v872 = vld [vmem:[%s171 + $0x1578] sm:$0xff]
      %v873 = vld [vmem:[%s171 + $0x1580] sm:$0xff]
      %v874 = vld [vmem:[%s171 + $0x1588] sm:$0xff]
      %v875 = vld [vmem:[%s171 + $0x1590] sm:$0xff]
      %v876 = vld [vmem:[%s171 + $0x1598] sm:$0xff]
      %v877 = vld [vmem:[%s171 + $0x15a0] sm:$0xff]
      %v878 = vld [vmem:[%s171 + $0x15a8] sm:$0xff]
      %v879 = vld [vmem:[%s171 + $0x15b0] sm:$0xff]
      %v880 = vld [vmem:[%s171 + $0x15b8] sm:$0xff]
      %v881 = vld [vmem:[%s171 + $0x15c0] sm:$0xff]
      %v882 = vld [vmem:[%s171 + $0x15c8] sm:$0xff]
      %v883 = vld [vmem:[%s171 + $0x15d0] sm:$0xff]
      %v884 = vld [vmem:[%s171 + $0x15d8] sm:$0xff]
      %v885 = vld [vmem:[%s171 + $0x15e0] sm:$0xff]
      %v886 = vld [vmem:[%s171 + $0x15e8] sm:$0xff]
      %v887 = vld [vmem:[%s171 + $0x15f0] sm:$0xff]
      %v888 = vld [vmem:[%s171 + $0x15f8] sm:$0xff]
      %v889 = vld [vmem:[%s171 + $0x1600] sm:$0xff]
      %v890 = vld [vmem:[%s171 + $0x1608] sm:$0xff]
      %v891 = vld [vmem:[%s171 + $0x1610] sm:$0xff]
      %v892 = vld [vmem:[%s171 + $0x1618] sm:$0xff]
      %v893 = vld [vmem:[%s171 + $0x1620] sm:$0xff]
      %v894 = vld [vmem:[%s171 + $0x1628] sm:$0xff]
      %v895 = vld [vmem:[%s171 + $0x1630] sm:$0xff]
      %v896 = vld [vmem:[%s171 + $0x1638] sm:$0xff]
      %v897 = vld [vmem:[%s171 + $0x1640] sm:$0xff]
      %v898 = vld [vmem:[%s171 + $0x1648] sm:$0xff]
      %v899 = vld [vmem:[%s171 + $0x1650] sm:$0xff]
      %v900 = vld [vmem:[%s171 + $0x1658] sm:$0xff]
      %v901 = vld [vmem:[%s171 + $0x1660] sm:$0xff]
      %v902 = vld [vmem:[%s171 + $0x1668] sm:$0xff]
      %v903 = vld [vmem:[%s171 + $0x1670] sm:$0xff]
      %v904 = vld [vmem:[%s171 + $0x1678] sm:$0xff]
      %v905 = vld [vmem:[%s171 + $0x1680] sm:$0xff]
      %v906 = vld [vmem:[%s171 + $0x1688] sm:$0xff]
      %v907 = vld [vmem:[%s171 + $0x1690] sm:$0xff]
      %v908 = vld [vmem:[%s171 + $0x1698] sm:$0xff]
      %v909 = vld [vmem:[%s171 + $0x16a0] sm:$0xff]
      %v910 = vld [vmem:[%s171 + $0x16a8] sm:$0xff]
      %v911 = vld [vmem:[%s171 + $0x16b0] sm:$0xff]
      %v912 = vld [vmem:[%s171 + $0x16b8] sm:$0xff]
      %v913 = vld [vmem:[%s171 + $0x16c0] sm:$0xff]
      %v914 = vld [vmem:[%s171 + $0x16c8] sm:$0xff]
      %v915 = vld [vmem:[%s171 + $0x16d0] sm:$0xff]
      %v916 = vld [vmem:[%s171 + $0x16d8] sm:$0xff]
      %v917 = vld [vmem:[%s171 + $0x16e0] sm:$0xff]
      %v918 = vld [vmem:[%s171 + $0x16e8] sm:$0xff]
      %v919 = vld [vmem:[%s171 + $0x16f0] sm:$0xff]
      %v920 = vld [vmem:[%s171 + $0x16f8] sm:$0xff]
      %v921 = vld [vmem:[%s171 + $0x1700] sm:$0xff]
      %v922 = vld [vmem:[%s171 + $0x1708] sm:$0xff]
      %v923 = vld [vmem:[%s171 + $0x1710] sm:$0xff]
      %v924 = vld [vmem:[%s171 + $0x1718] sm:$0xff]
      %v925 = vld [vmem:[%s171 + $0x1720] sm:$0xff]
      %v926 = vld [vmem:[%s171 + $0x1728] sm:$0xff]
      %v927 = vld [vmem:[%s171 + $0x1730] sm:$0xff]
      %v928 = vld [vmem:[%s171 + $0x1738] sm:$0xff]
      %v929 = vld [vmem:[%s171 + $0x1740] sm:$0xff]
      %v930 = vld [vmem:[%s171 + $0x1748] sm:$0xff]
      %v931 = vld [vmem:[%s171 + $0x1750] sm:$0xff]
      %v932 = vld [vmem:[%s171 + $0x1758] sm:$0xff]
      %v933 = vld [vmem:[%s171 + $0x1760] sm:$0xff]
      %v934 = vld [vmem:[%s171 + $0x1768] sm:$0xff]
      %v935 = vld [vmem:[%s171 + $0x1770] sm:$0xff]
      %v936 = vld [vmem:[%s171 + $0x1778] sm:$0xff]
      %v937 = vld [vmem:[%s171 + $0x1780] sm:$0xff]
      %v938 = vld [vmem:[%s171 + $0x1788] sm:$0xff]
      %v939 = vld [vmem:[%s171 + $0x1790] sm:$0xff]
      %v940 = vld [vmem:[%s171 + $0x1798] sm:$0xff]
      %v941 = vld [vmem:[%s171 + $0x17a0] sm:$0xff]
      %v942 = vld [vmem:[%s171 + $0x17a8] sm:$0xff]
      %v943 = vld [vmem:[%s171 + $0x17b0] sm:$0xff]
      %v944 = vld [vmem:[%s171 + $0x17b8] sm:$0xff]
      %v945 = vld [vmem:[%s171 + $0x17c0] sm:$0xff]
      %v946 = vld [vmem:[%s171 + $0x17c8] sm:$0xff]
      %v947 = vld [vmem:[%s171 + $0x17d0] sm:$0xff]
      %v948 = vld [vmem:[%s171 + $0x17d8] sm:$0xff]
      %v949 = vld [vmem:[%s171 + $0x17e0] sm:$0xff]
      %v950 = vld [vmem:[%s171 + $0x17e8] sm:$0xff]
      %v951 = vld [vmem:[%s171 + $0x17f0] sm:$0xff]
      %v952 = vld [vmem:[%s171 + $0x17f8] sm:$0xff]
      %v953 = vld [vmem:[%s171 + $0x1800] sm:$0xff]
      %v954 = vld [vmem:[%s171 + $0x1808] sm:$0xff]
      %v955 = vld [vmem:[%s171 + $0x1810] sm:$0xff]
      %v956 = vld [vmem:[%s171 + $0x1818] sm:$0xff]
      %v957 = vld [vmem:[%s171 + $0x1820] sm:$0xff]
      %v958 = vld [vmem:[%s171 + $0x1828] sm:$0xff]
      %v959 = vld [vmem:[%s171 + $0x1830] sm:$0xff]
      %v960 = vld [vmem:[%s171 + $0x1838] sm:$0xff]
      %v961 = vld [vmem:[%s171 + $0x1840] sm:$0xff]
      %v962 = vld [vmem:[%s171 + $0x1848] sm:$0xff]
      %v963 = vld [vmem:[%s171 + $0x1850] sm:$0xff]
      %v964 = vld [vmem:[%s171 + $0x1858] sm:$0xff]
      %v965 = vld [vmem:[%s171 + $0x1860] sm:$0xff]
      %v966 = vld [vmem:[%s171 + $0x1868] sm:$0xff]
      %v967 = vld [vmem:[%s171 + $0x1870] sm:$0xff]
      %v968 = vld [vmem:[%s171 + $0x1878] sm:$0xff]
      %v969 = vld [vmem:[%s171 + $0x1880] sm:$0xff]
      %v970 = vld [vmem:[%s171 + $0x1888] sm:$0xff]
      %v971 = vld [vmem:[%s171 + $0x1890] sm:$0xff]
      %v972 = vld [vmem:[%s171 + $0x1898] sm:$0xff]
      %v973 = vld [vmem:[%s171 + $0x18a0] sm:$0xff]
      %v974 = vld [vmem:[%s171 + $0x18a8] sm:$0xff]
      %v975 = vld [vmem:[%s171 + $0x18b0] sm:$0xff]
      %v976 = vld [vmem:[%s171 + $0x18b8] sm:$0xff]
      %v977 = vld [vmem:[%s171 + $0x18c0] sm:$0xff]
      %v978 = vld [vmem:[%s171 + $0x18c8] sm:$0xff]
      %v979 = vld [vmem:[%s171 + $0x18d0] sm:$0xff]
      %v980 = vld [vmem:[%s171 + $0x18d8] sm:$0xff]
      %v981 = vld [vmem:[%s171 + $0x18e0] sm:$0xff]
      %v982 = vld [vmem:[%s171 + $0x18e8] sm:$0xff]
      %v983 = vld [vmem:[%s171 + $0x18f0] sm:$0xff]
      %v984 = vld [vmem:[%s171 + $0x18f8] sm:$0xff]
      %v985 = vld [vmem:[%s171 + $0x1900] sm:$0xff]
      %v986 = vld [vmem:[%s171 + $0x1908] sm:$0xff]
      %v987 = vld [vmem:[%s171 + $0x1910] sm:$0xff]
      %v988 = vld [vmem:[%s171 + $0x1918] sm:$0xff]
      %v989 = vld [vmem:[%s171 + $0x1920] sm:$0xff]
      %v990 = vld [vmem:[%s171 + $0x1928] sm:$0xff]
      %v991 = vld [vmem:[%s171 + $0x1930] sm:$0xff]
      %v992 = vld [vmem:[%s171 + $0x1938] sm:$0xff]
      %v993 = vld [vmem:[%s171 + $0x1940] sm:$0xff]
      %v994 = vld [vmem:[%s171 + $0x1948] sm:$0xff]
      %v995 = vld [vmem:[%s171 + $0x1950] sm:$0xff]
      %v996 = vld [vmem:[%s171 + $0x1958] sm:$0xff]
      %v997 = vld [vmem:[%s171 + $0x1960] sm:$0xff]
      %v998 = vld [vmem:[%s171 + $0x1968] sm:$0xff]
      %v999 = vld [vmem:[%s171 + $0x1970] sm:$0xff]
      %v1000 = vld [vmem:[%s171 + $0x1978] sm:$0xff]
      %v1001 = vld [vmem:[%s171 + $0x1980] sm:$0xff]
      %v1002 = vld [vmem:[%s171 + $0x1988] sm:$0xff]
      %v1003 = vld [vmem:[%s171 + $0x1990] sm:$0xff]
      %v1004 = vld [vmem:[%s171 + $0x1998] sm:$0xff]
      %v1005 = vld [vmem:[%s171 + $0x19a0] sm:$0xff]
      %v1006 = vld [vmem:[%s171 + $0x19a8] sm:$0xff]
      %v1007 = vld [vmem:[%s171 + $0x19b0] sm:$0xff]
      %v1008 = vld [vmem:[%s171 + $0x19b8] sm:$0xff]
      %v1009 = vld [vmem:[%s171 + $0x19c0] sm:$0xff]
      %v1010 = vld [vmem:[%s171 + $0x19c8] sm:$0xff]
      %v1011 = vld [vmem:[%s171 + $0x19d0] sm:$0xff]
      %v1012 = vld [vmem:[%s171 + $0x19d8] sm:$0xff]
      %v1013 = vld [vmem:[%s171 + $0x19e0] sm:$0xff]
      %v1014 = vld [vmem:[%s171 + $0x19e8] sm:$0xff]
      %v1015 = vld [vmem:[%s171 + $0x19f0] sm:$0xff]
      %v1016 = vld [vmem:[%s171 + $0x19f8] sm:$0xff]
      %v1017 = vld [vmem:[%s171 + $0x1a00] sm:$0xff]
      %v1018 = vld [vmem:[%s171 + $0x1a08] sm:$0xff]
      %v1019 = vld [vmem:[%s171 + $0x1a10] sm:$0xff]
      %v1020 = vld [vmem:[%s171 + $0x1a18] sm:$0xff]
      %v1021 = vld [vmem:[%s171 + $0x1a20] sm:$0xff]
      %v1022 = vld [vmem:[%s171 + $0x1a28] sm:$0xff]
      %v1023 = vld [vmem:[%s171 + $0x1a30] sm:$0xff]
      %v1024 = vld [vmem:[%s171 + $0x1a38] sm:$0xff]
      %v1025 = vld [vmem:[%s171 + $0x1a40] sm:$0xff]
      %v1026 = vld [vmem:[%s171 + $0x1a48] sm:$0xff]
      %v1027 = vld [vmem:[%s171 + $0x1a50] sm:$0xff]
      %v1028 = vld [vmem:[%s171 + $0x1a58] sm:$0xff]
      %v1029 = vld [vmem:[%s171 + $0x1a60] sm:$0xff]
      %v1030 = vld [vmem:[%s171 + $0x1a68] sm:$0xff]
      %v1031 = vld [vmem:[%s171 + $0x1a70] sm:$0xff]
      %v1032 = vld [vmem:[%s171 + $0x1a78] sm:$0xff]
      %v1033 = vld [vmem:[%s171 + $0x1a80] sm:$0xff]
      %v1034 = vld [vmem:[%s171 + $0x1a88] sm:$0xff]
      %v1035 = vld [vmem:[%s171 + $0x1a90] sm:$0xff]
      %v1036 = vld [vmem:[%s171 + $0x1a98] sm:$0xff]
      %v1037 = vld [vmem:[%s171 + $0x1aa0] sm:$0xff]
      %v1038 = vld [vmem:[%s171 + $0x1aa8] sm:$0xff]
      %v1039 = vld [vmem:[%s171 + $0x1ab0] sm:$0xff]
      %v1040 = vld [vmem:[%s171 + $0x1ab8] sm:$0xff]
      %v1041 = vld [vmem:[%s171 + $0x1ac0] sm:$0xff]
      %v1042 = vld [vmem:[%s171 + $0x1ac8] sm:$0xff]
      %v1043 = vld [vmem:[%s171 + $0x1ad0] sm:$0xff]
      %v1044 = vld [vmem:[%s171 + $0x1ad8] sm:$0xff]
      %v1045 = vld [vmem:[%s171 + $0x1ae0] sm:$0xff]
      %v1046 = vld [vmem:[%s171 + $0x1ae8] sm:$0xff]
      %v1047 = vld [vmem:[%s171 + $0x1af0] sm:$0xff]
      %v1048 = vld [vmem:[%s171 + $0x1af8] sm:$0xff]
      %vm1049 = vcmask 719872
      %v1051 = vsel %vm1049, %v184, 0
      %1053 = vmatpush.msra.mxu0 %v665
      %1054 = vmatpush.msra.mxu0 %v633
      %1055 = vmatpush.msra.mxu0 %v601
      %1056 = vmatpush.msra.mxu0 %v569
      %1057 = vmatpush.msra.mxu0 %v537
      %1058 = vmatpush.msra.mxu0 %v505
      %1059 = vmatpush.msra.mxu0 %v473
      %1060 = vmatpush.msra.mxu0 %v441
      %1061 = vmatpush.msra.mxu0 %v409
      %1062 = vmatpush.msra.mxu0 %v377
      %1063 = vmatpush.msra.mxu0 %v345
      %1064 = vmatpush.msra.mxu0 %v313
      %1065 = vmatpush.msra.mxu0 %v281
      %1066 = vmatpush.msra.mxu0 %v249
      %1067 = vmatpush.msra.mxu0 %v217
      %1068 = vmatpush.msra.mxu0 %v185
      %1069 = vmatmul.f32.gmra.mxu0 %v183
      %v1070 = vpop.f32.mrf.mxu0
      %v1071 = vadd.f32 0.0, %v1070
      %1072 = vdwg.mxu0
      %1073 = vmatpush.msra.mxu0 0.0
      %1074 = vmatpush.msra.mxu0 0.0
      %1075 = vmatpush.msra.mxu0 0.0
      %1076 = vmatpush.msra.mxu0 0.0
      %1077 = vmatpush.msra.mxu0 0.0
      %1078 = vmatpush.msra.mxu0 %v1017
      %1079 = vmatpush.msra.mxu0 %v985
      %1080 = vmatpush.msra.mxu0 %v953
      %1081 = vmatpush.msra.mxu0 %v921
      %1082 = vmatpush.msra.mxu0 %v889
      %1083 = vmatpush.msra.mxu0 %v857
      %1084 = vmatpush.msra.mxu0 %v825
      %1085 = vmatpush.msra.mxu0 %v793
      %1086 = vmatpush.msra.mxu0 %v761
      %1087 = vmatpush.msra.mxu0 %v729
      %1088 = vmatpush.msra.mxu0 %v697
      %1089 = vmatmul.f32.gmra.mxu0 %v1051
      %v1090 = vpop.f32.mrf.mxu0
      %v1091 = vadd.f32 %v1071, %v1090
      %1092 = vdwg.mxu0
      %1093 = vmatpush.msra.mxu0 %v666
      %1094 = vmatpush.msra.mxu0 %v634
      %1095 = vmatpush.msra.mxu0 %v602
      %1096 = vmatpush.msra.mxu0 %v570
      %1097 = vmatpush.msra.mxu0 %v538
      %1098 = vmatpush.msra.mxu0 %v506
      %1099 = vmatpush.msra.mxu0 %v474
      %1100 = vmatpush.msra.mxu0 %v442
      %1101 = vmatpush.msra.mxu0 %v410
      %1102 = vmatpush.msra.mxu0 %v378
      %1103 = vmatpush.msra.mxu0 %v346
      %1104 = vmatpush.msra.mxu0 %v314
      %1105 = vmatpush.msra.mxu0 %v282
      %1106 = vmatpush.msra.mxu0 %v250
      %1107 = vmatpush.msra.mxu0 %v218
      %1108 = vmatpush.msra.mxu0 %v186
      %1109 = vmatmul.f32.gmra.mxu0 %v183
      %v1110 = vpop.f32.mrf.mxu0
      %v1111 = vadd.f32 0.0, %v1110
      %1112 = vdwg.mxu0
      %1113 = vmatpush.msra.mxu0 0.0
      %1114 = vmatpush.msra.mxu0 0.0
      %1115 = vmatpush.msra.mxu0 0.0
      %1116 = vmatpush.msra.mxu0 0.0
      %1117 = vmatpush.msra.mxu0 0.0
      %1118 = vmatpush.msra.mxu0 %v1018
      %1119 = vmatpush.msra.mxu0 %v986
      %1120 = vmatpush.msra.mxu0 %v954
      %1121 = vmatpush.msra.mxu0 %v922
      %1122 = vmatpush.msra.mxu0 %v890
      %1123 = vmatpush.msra.mxu0 %v858
      %1124 = vmatpush.msra.mxu0 %v826
      %1125 = vmatpush.msra.mxu0 %v794
      %1126 = vmatpush.msra.mxu0 %v762
      %1127 = vmatpush.msra.mxu0 %v730
      %1128 = vmatpush.msra.mxu0 %v698
      %1129 = vmatmul.f32.gmra.mxu0 %v1051
      %v1130 = vpop.f32.mrf.mxu0
      %v1131 = vadd.f32 %v1111, %v1130
      %1132 = vdwg.mxu0
      %1133 = vmatpush.msra.mxu0 %v667
      %1134 = vmatpush.msra.mxu0 %v635
      %1135 = vmatpush.msra.mxu0 %v603
      %1136 = vmatpush.msra.mxu0 %v571
      %1137 = vmatpush.msra.mxu0 %v539
      %1138 = vmatpush.msra.mxu0 %v507
      %1139 = vmatpush.msra.mxu0 %v475
      %1140 = vmatpush.msra.mxu0 %v443
      %1141 = vmatpush.msra.mxu0 %v411
      %1142 = vmatpush.msra.mxu0 %v379
      %1143 = vmatpush.msra.mxu0 %v347
      %1144 = vmatpush.msra.mxu0 %v315
      %1145 = vmatpush.msra.mxu0 %v283
      %1146 = vmatpush.msra.mxu0 %v251
      %1147 = vmatpush.msra.mxu0 %v219
      %1148 = vmatpush.msra.mxu0 %v187
      %1149 = vmatmul.f32.gmra.mxu0 %v183
      %v1150 = vpop.f32.mrf.mxu0
      %v1151 = vadd.f32 0.0, %v1150
      %1152 = vdwg.mxu0
      %1153 = vmatpush.msra.mxu0 0.0
      %1154 = vmatpush.msra.mxu0 0.0
      %1155 = vmatpush.msra.mxu0 0.0
      %1156 = vmatpush.msra.mxu0 0.0
      %1157 = vmatpush.msra.mxu0 0.0
      %1158 = vmatpush.msra.mxu0 %v1019
      %1159 = vmatpush.msra.mxu0 %v987
      %1160 = vmatpush.msra.mxu0 %v955
      %1161 = vmatpush.msra.mxu0 %v923
      %1162 = vmatpush.msra.mxu0 %v891
      %1163 = vmatpush.msra.mxu0 %v859
      %1164 = vmatpush.msra.mxu0 %v827
      %1165 = vmatpush.msra.mxu0 %v795
      %1166 = vmatpush.msra.mxu0 %v763
      %1167 = vmatpush.msra.mxu0 %v731
      %1168 = vmatpush.msra.mxu0 %v699
      %1169 = vmatmul.f32.gmra.mxu0 %v1051
      %v1170 = vpop.f32.mrf.mxu0
      %v1171 = vadd.f32 %v1151, %v1170
      %1172 = vdwg.mxu0
      %1173 = vmatpush.msra.mxu0 %v668
      %1174 = vmatpush.msra.mxu0 %v636
      %1175 = vmatpush.msra.mxu0 %v604
      %1176 = vmatpush.msra.mxu0 %v572
      %1177 = vmatpush.msra.mxu0 %v540
      %1178 = vmatpush.msra.mxu0 %v508
      %1179 = vmatpush.msra.mxu0 %v476
      %1180 = vmatpush.msra.mxu0 %v444
      %1181 = vmatpush.msra.mxu0 %v412
      %1182 = vmatpush.msra.mxu0 %v380
      %1183 = vmatpush.msra.mxu0 %v348
      %1184 = vmatpush.msra.mxu0 %v316
      %1185 = vmatpush.msra.mxu0 %v284
      %1186 = vmatpush.msra.mxu0 %v252
      %1187 = vmatpush.msra.mxu0 %v220
      %1188 = vmatpush.msra.mxu0 %v188
      %1189 = vmatmul.f32.gmra.mxu0 %v183
      %v1190 = vpop.f32.mrf.mxu0
      %v1191 = vadd.f32 0.0, %v1190
      %1192 = vdwg.mxu0
      %1193 = vmatpush.msra.mxu0 0.0
      %1194 = vmatpush.msra.mxu0 0.0
      %1195 = vmatpush.msra.mxu0 0.0
      %1196 = vmatpush.msra.mxu0 0.0
      %1197 = vmatpush.msra.mxu0 0.0
      %1198 = vmatpush.msra.mxu0 %v1020
      %1199 = vmatpush.msra.mxu0 %v988
      %1200 = vmatpush.msra.mxu0 %v956
      %1201 = vmatpush.msra.mxu0 %v924
      %1202 = vmatpush.msra.mxu0 %v892
      %1203 = vmatpush.msra.mxu0 %v860
      %1204 = vmatpush.msra.mxu0 %v828
      %1205 = vmatpush.msra.mxu0 %v796
      %1206 = vmatpush.msra.mxu0 %v764
      %1207 = vmatpush.msra.mxu0 %v732
      %1208 = vmatpush.msra.mxu0 %v700
      %1209 = vmatmul.f32.gmra.mxu0 %v1051
      %v1210 = vpop.f32.mrf.mxu0
      %v1211 = vadd.f32 %v1191, %v1210
      %1212 = vdwg.mxu0
      %1213 = vmatpush.msra.mxu0 %v669
      %1214 = vmatpush.msra.mxu0 %v637
      %1215 = vmatpush.msra.mxu0 %v605
      %1216 = vmatpush.msra.mxu0 %v573
      %1217 = vmatpush.msra.mxu0 %v541
      %1218 = vmatpush.msra.mxu0 %v509
      %1219 = vmatpush.msra.mxu0 %v477
      %1220 = vmatpush.msra.mxu0 %v445
      %1221 = vmatpush.msra.mxu0 %v413
      %1222 = vmatpush.msra.mxu0 %v381
      %1223 = vmatpush.msra.mxu0 %v349
      %1224 = vmatpush.msra.mxu0 %v317
      %1225 = vmatpush.msra.mxu0 %v285
      %1226 = vmatpush.msra.mxu0 %v253
      %1227 = vmatpush.msra.mxu0 %v221
      %1228 = vmatpush.msra.mxu0 %v189
      %1229 = vmatmul.f32.gmra.mxu0 %v183
      %v1230 = vpop.f32.mrf.mxu0
      %v1231 = vadd.f32 0.0, %v1230
      %1232 = vdwg.mxu0
      %1233 = vmatpush.msra.mxu0 0.0
      %1234 = vmatpush.msra.mxu0 0.0
      %1235 = vmatpush.msra.mxu0 0.0
      %1236 = vmatpush.msra.mxu0 0.0
      %1237 = vmatpush.msra.mxu0 0.0
      %1238 = vmatpush.msra.mxu0 %v1021
      %1239 = vmatpush.msra.mxu0 %v989
      %1240 = vmatpush.msra.mxu0 %v957
      %1241 = vmatpush.msra.mxu0 %v925
      %1242 = vmatpush.msra.mxu0 %v893
      %1243 = vmatpush.msra.mxu0 %v861
      %1244 = vmatpush.msra.mxu0 %v829
      %1245 = vmatpush.msra.mxu0 %v797
      %1246 = vmatpush.msra.mxu0 %v765
      %1247 = vmatpush.msra.mxu0 %v733
      %1248 = vmatpush.msra.mxu0 %v701
      %1249 = vmatmul.f32.gmra.mxu0 %v1051
      %v1250 = vpop.f32.mrf.mxu0
      %v1251 = vadd.f32 %v1231, %v1250
      %1252 = vdwg.mxu0
      %1253 = vmatpush.msra.mxu0 %v670
      %1254 = vmatpush.msra.mxu0 %v638
      %1255 = vmatpush.msra.mxu0 %v606
      %1256 = vmatpush.msra.mxu0 %v574
      %1257 = vmatpush.msra.mxu0 %v542
      %1258 = vmatpush.msra.mxu0 %v510
      %1259 = vmatpush.msra.mxu0 %v478
      %1260 = vmatpush.msra.mxu0 %v446
      %1261 = vmatpush.msra.mxu0 %v414
      %1262 = vmatpush.msra.mxu0 %v382
      %1263 = vmatpush.msra.mxu0 %v350
      %1264 = vmatpush.msra.mxu0 %v318
      %1265 = vmatpush.msra.mxu0 %v286
      %1266 = vmatpush.msra.mxu0 %v254
      %1267 = vmatpush.msra.mxu0 %v222
      %1268 = vmatpush.msra.mxu0 %v190
      %1269 = vmatmul.f32.gmra.mxu0 %v183
      %v1270 = vpop.f32.mrf.mxu0
      %v1271 = vadd.f32 0.0, %v1270
      %1272 = vdwg.mxu0
      %1273 = vmatpush.msra.mxu0 0.0
      %1274 = vmatpush.msra.mxu0 0.0
      %1275 = vmatpush.msra.mxu0 0.0
      %1276 = vmatpush.msra.mxu0 0.0
      %1277 = vmatpush.msra.mxu0 0.0
      %1278 = vmatpush.msra.mxu0 %v1022
      %1279 = vmatpush.msra.mxu0 %v990
      %1280 = vmatpush.msra.mxu0 %v958
      %1281 = vmatpush.msra.mxu0 %v926
      %1282 = vmatpush.msra.mxu0 %v894
      %1283 = vmatpush.msra.mxu0 %v862
      %1284 = vmatpush.msra.mxu0 %v830
      %1285 = vmatpush.msra.mxu0 %v798
      %1286 = vmatpush.msra.mxu0 %v766
      %1287 = vmatpush.msra.mxu0 %v734
      %1288 = vmatpush.msra.mxu0 %v702
      %1289 = vmatmul.f32.gmra.mxu0 %v1051
      %v1290 = vpop.f32.mrf.mxu0
      %v1291 = vadd.f32 %v1271, %v1290
      %1292 = vdwg.mxu0
      %1293 = vmatpush.msra.mxu0 %v671
      %1294 = vmatpush.msra.mxu0 %v639
      %1295 = vmatpush.msra.mxu0 %v607
      %1296 = vmatpush.msra.mxu0 %v575
      %1297 = vmatpush.msra.mxu0 %v543
      %1298 = vmatpush.msra.mxu0 %v511
      %1299 = vmatpush.msra.mxu0 %v479
      %1300 = vmatpush.msra.mxu0 %v447
      %1301 = vmatpush.msra.mxu0 %v415
      %1302 = vmatpush.msra.mxu0 %v383
      %1303 = vmatpush.msra.mxu0 %v351
      %1304 = vmatpush.msra.mxu0 %v319
      %1305 = vmatpush.msra.mxu0 %v287
      %1306 = vmatpush.msra.mxu0 %v255
      %1307 = vmatpush.msra.mxu0 %v223
      %1308 = vmatpush.msra.mxu0 %v191
      %1309 = vmatmul.f32.gmra.mxu0 %v183
      %v1310 = vpop.f32.mrf.mxu0
      %v1311 = vadd.f32 0.0, %v1310
      %1312 = vdwg.mxu0
      %1313 = vmatpush.msra.mxu0 0.0
      %1314 = vmatpush.msra.mxu0 0.0
      %1315 = vmatpush.msra.mxu0 0.0
      %1316 = vmatpush.msra.mxu0 0.0
      %1317 = vmatpush.msra.mxu0 0.0
      %1318 = vmatpush.msra.mxu0 %v1023
      %1319 = vmatpush.msra.mxu0 %v991
      %1320 = vmatpush.msra.mxu0 %v959
      %1321 = vmatpush.msra.mxu0 %v927
      %1322 = vmatpush.msra.mxu0 %v895
      %1323 = vmatpush.msra.mxu0 %v863
      %1324 = vmatpush.msra.mxu0 %v831
      %1325 = vmatpush.msra.mxu0 %v799
      %1326 = vmatpush.msra.mxu0 %v767
      %1327 = vmatpush.msra.mxu0 %v735
      %1328 = vmatpush.msra.mxu0 %v703
      %1329 = vmatmul.f32.gmra.mxu0 %v1051
      %v1330 = vpop.f32.mrf.mxu0
      %v1331 = vadd.f32 %v1311, %v1330
      %1332 = vdwg.mxu0
      %1333 = vmatpush.msra.mxu0 %v672
      %1334 = vmatpush.msra.mxu0 %v640
      %1335 = vmatpush.msra.mxu0 %v608
      %1336 = vmatpush.msra.mxu0 %v576
      %1337 = vmatpush.msra.mxu0 %v544
      %1338 = vmatpush.msra.mxu0 %v512
      %1339 = vmatpush.msra.mxu0 %v480
      %1340 = vmatpush.msra.mxu0 %v448
      %1341 = vmatpush.msra.mxu0 %v416
      %1342 = vmatpush.msra.mxu0 %v384
      %1343 = vmatpush.msra.mxu0 %v352
      %1344 = vmatpush.msra.mxu0 %v320
      %1345 = vmatpush.msra.mxu0 %v288
      %1346 = vmatpush.msra.mxu0 %v256
      %1347 = vmatpush.msra.mxu0 %v224
      %1348 = vmatpush.msra.mxu0 %v192
      %1349 = vmatmul.f32.gmra.mxu0 %v183
      %v1350 = vpop.f32.mrf.mxu0
      %v1351 = vadd.f32 0.0, %v1350
      %1352 = vdwg.mxu0
      %1353 = vmatpush.msra.mxu0 0.0
      %1354 = vmatpush.msra.mxu0 0.0
      %1355 = vmatpush.msra.mxu0 0.0
      %1356 = vmatpush.msra.mxu0 0.0
      %1357 = vmatpush.msra.mxu0 0.0
      %1358 = vmatpush.msra.mxu0 %v1024
      %1359 = vmatpush.msra.mxu0 %v992
      %1360 = vmatpush.msra.mxu0 %v960
      %1361 = vmatpush.msra.mxu0 %v928
      %1362 = vmatpush.msra.mxu0 %v896
      %1363 = vmatpush.msra.mxu0 %v864
      %1364 = vmatpush.msra.mxu0 %v832
      %1365 = vmatpush.msra.mxu0 %v800
      %1366 = vmatpush.msra.mxu0 %v768
      %1367 = vmatpush.msra.mxu0 %v736
      %1368 = vmatpush.msra.mxu0 %v704
      %1369 = vmatmul.f32.gmra.mxu0 %v1051
      %v1370 = vpop.f32.mrf.mxu0
      %v1371 = vadd.f32 %v1351, %v1370
      %1372 = vdwg.mxu0
      %1373 = vmatpush.msra.mxu0 %v673
      %1374 = vmatpush.msra.mxu0 %v641
      %1375 = vmatpush.msra.mxu0 %v609
      %1376 = vmatpush.msra.mxu0 %v577
      %1377 = vmatpush.msra.mxu0 %v545
      %1378 = vmatpush.msra.mxu0 %v513
      %1379 = vmatpush.msra.mxu0 %v481
      %1380 = vmatpush.msra.mxu0 %v449
      %1381 = vmatpush.msra.mxu0 %v417
      %1382 = vmatpush.msra.mxu0 %v385
      %1383 = vmatpush.msra.mxu0 %v353
      %1384 = vmatpush.msra.mxu0 %v321
      %1385 = vmatpush.msra.mxu0 %v289
      %1386 = vmatpush.msra.mxu0 %v257
      %1387 = vmatpush.msra.mxu0 %v225
      %1388 = vmatpush.msra.mxu0 %v193
      %1389 = vmatmul.f32.gmra.mxu0 %v183
      %v1390 = vpop.f32.mrf.mxu0
      %v1391 = vadd.f32 0.0, %v1390
      %1392 = vdwg.mxu0
      %1393 = vmatpush.msra.mxu0 0.0
      %1394 = vmatpush.msra.mxu0 0.0
      %1395 = vmatpush.msra.mxu0 0.0
      %1396 = vmatpush.msra.mxu0 0.0
      %1397 = vmatpush.msra.mxu0 0.0
      %1398 = vmatpush.msra.mxu0 %v1025
      %1399 = vmatpush.msra.mxu0 %v993
      %1400 = vmatpush.msra.mxu0 %v961
      %1401 = vmatpush.msra.mxu0 %v929
      %1402 = vmatpush.msra.mxu0 %v897
      %1403 = vmatpush.msra.mxu0 %v865
      %1404 = vmatpush.msra.mxu0 %v833
      %1405 = vmatpush.msra.mxu0 %v801
      %1406 = vmatpush.msra.mxu0 %v769
      %1407 = vmatpush.msra.mxu0 %v737
      %1408 = vmatpush.msra.mxu0 %v705
      %1409 = vmatmul.f32.gmra.mxu0 %v1051
      %v1410 = vpop.f32.mrf.mxu0
      %v1411 = vadd.f32 %v1391, %v1410
      %1412 = vdwg.mxu0
      %1413 = vmatpush.msra.mxu0 %v674
      %1414 = vmatpush.msra.mxu0 %v642
      %1415 = vmatpush.msra.mxu0 %v610
      %1416 = vmatpush.msra.mxu0 %v578
      %1417 = vmatpush.msra.mxu0 %v546
      %1418 = vmatpush.msra.mxu0 %v514
      %1419 = vmatpush.msra.mxu0 %v482
      %1420 = vmatpush.msra.mxu0 %v450
      %1421 = vmatpush.msra.mxu0 %v418
      %1422 = vmatpush.msra.mxu0 %v386
      %1423 = vmatpush.msra.mxu0 %v354
      %1424 = vmatpush.msra.mxu0 %v322
      %1425 = vmatpush.msra.mxu0 %v290
      %1426 = vmatpush.msra.mxu0 %v258
      %1427 = vmatpush.msra.mxu0 %v226
      %1428 = vmatpush.msra.mxu0 %v194
      %1429 = vmatmul.f32.gmra.mxu0 %v183
      %v1430 = vpop.f32.mrf.mxu0
      %v1431 = vadd.f32 0.0, %v1430
      %1432 = vdwg.mxu0
      %1433 = vmatpush.msra.mxu0 0.0
      %1434 = vmatpush.msra.mxu0 0.0
      %1435 = vmatpush.msra.mxu0 0.0
      %1436 = vmatpush.msra.mxu0 0.0
      %1437 = vmatpush.msra.mxu0 0.0
      %1438 = vmatpush.msra.mxu0 %v1026
      %1439 = vmatpush.msra.mxu0 %v994
      %1440 = vmatpush.msra.mxu0 %v962
      %1441 = vmatpush.msra.mxu0 %v930
      %1442 = vmatpush.msra.mxu0 %v898
      %1443 = vmatpush.msra.mxu0 %v866
      %1444 = vmatpush.msra.mxu0 %v834
      %1445 = vmatpush.msra.mxu0 %v802
      %1446 = vmatpush.msra.mxu0 %v770
      %1447 = vmatpush.msra.mxu0 %v738
      %1448 = vmatpush.msra.mxu0 %v706
      %1449 = vmatmul.f32.gmra.mxu0 %v1051
      %v1450 = vpop.f32.mrf.mxu0
      %v1451 = vadd.f32 %v1431, %v1450
      %1452 = vdwg.mxu0
      %1453 = vmatpush.msra.mxu0 %v675
      %1454 = vmatpush.msra.mxu0 %v643
      %1455 = vmatpush.msra.mxu0 %v611
      %1456 = vmatpush.msra.mxu0 %v579
      %1457 = vmatpush.msra.mxu0 %v547
      %1458 = vmatpush.msra.mxu0 %v515
      %1459 = vmatpush.msra.mxu0 %v483
      %1460 = vmatpush.msra.mxu0 %v451
      %1461 = vmatpush.msra.mxu0 %v419
      %1462 = vmatpush.msra.mxu0 %v387
      %1463 = vmatpush.msra.mxu0 %v355
      %1464 = vmatpush.msra.mxu0 %v323
      %1465 = vmatpush.msra.mxu0 %v291
      %1466 = vmatpush.msra.mxu0 %v259
      %1467 = vmatpush.msra.mxu0 %v227
      %1468 = vmatpush.msra.mxu0 %v195
      %1469 = vmatmul.f32.gmra.mxu0 %v183
      %v1470 = vpop.f32.mrf.mxu0
      %v1471 = vadd.f32 0.0, %v1470
      %1472 = vdwg.mxu0
      %1473 = vmatpush.msra.mxu0 0.0
      %1474 = vmatpush.msra.mxu0 0.0
      %1475 = vmatpush.msra.mxu0 0.0
      %1476 = vmatpush.msra.mxu0 0.0
      %1477 = vmatpush.msra.mxu0 0.0
      %1478 = vmatpush.msra.mxu0 %v1027
      %1479 = vmatpush.msra.mxu0 %v995
      %1480 = vmatpush.msra.mxu0 %v963
      %1481 = vmatpush.msra.mxu0 %v931
      %1482 = vmatpush.msra.mxu0 %v899
      %1483 = vmatpush.msra.mxu0 %v867
      %1484 = vmatpush.msra.mxu0 %v835
      %1485 = vmatpush.msra.mxu0 %v803
      %1486 = vmatpush.msra.mxu0 %v771
      %1487 = vmatpush.msra.mxu0 %v739
      %1488 = vmatpush.msra.mxu0 %v707
      %1489 = vmatmul.f32.gmra.mxu0 %v1051
      %v1490 = vpop.f32.mrf.mxu0
      %v1491 = vadd.f32 %v1471, %v1490
      %1492 = vdwg.mxu0
      %1493 = vmatpush.msra.mxu0 %v676
      %1494 = vmatpush.msra.mxu0 %v644
      %1495 = vmatpush.msra.mxu0 %v612
      %1496 = vmatpush.msra.mxu0 %v580
      %1497 = vmatpush.msra.mxu0 %v548
      %1498 = vmatpush.msra.mxu0 %v516
      %1499 = vmatpush.msra.mxu0 %v484
      %1500 = vmatpush.msra.mxu0 %v452
      %1501 = vmatpush.msra.mxu0 %v420
      %1502 = vmatpush.msra.mxu0 %v388
      %1503 = vmatpush.msra.mxu0 %v356
      %1504 = vmatpush.msra.mxu0 %v324
      %1505 = vmatpush.msra.mxu0 %v292
      %1506 = vmatpush.msra.mxu0 %v260
      %1507 = vmatpush.msra.mxu0 %v228
      %1508 = vmatpush.msra.mxu0 %v196
      %1509 = vmatmul.f32.gmra.mxu0 %v183
      %v1510 = vpop.f32.mrf.mxu0
      %v1511 = vadd.f32 0.0, %v1510
      %1512 = vdwg.mxu0
      %1513 = vmatpush.msra.mxu0 0.0
      %1514 = vmatpush.msra.mxu0 0.0
      %1515 = vmatpush.msra.mxu0 0.0
      %1516 = vmatpush.msra.mxu0 0.0
      %1517 = vmatpush.msra.mxu0 0.0
      %1518 = vmatpush.msra.mxu0 %v1028
      %1519 = vmatpush.msra.mxu0 %v996
      %1520 = vmatpush.msra.mxu0 %v964
      %1521 = vmatpush.msra.mxu0 %v932
      %1522 = vmatpush.msra.mxu0 %v900
      %1523 = vmatpush.msra.mxu0 %v868
      %1524 = vmatpush.msra.mxu0 %v836
      %1525 = vmatpush.msra.mxu0 %v804
      %1526 = vmatpush.msra.mxu0 %v772
      %1527 = vmatpush.msra.mxu0 %v740
      %1528 = vmatpush.msra.mxu0 %v708
      %1529 = vmatmul.f32.gmra.mxu0 %v1051
      %v1530 = vpop.f32.mrf.mxu0
      %v1531 = vadd.f32 %v1511, %v1530
      %1532 = vdwg.mxu0
      %1533 = vmatpush.msra.mxu0 %v677
      %1534 = vmatpush.msra.mxu0 %v645
      %1535 = vmatpush.msra.mxu0 %v613
      %1536 = vmatpush.msra.mxu0 %v581
      %1537 = vmatpush.msra.mxu0 %v549
      %1538 = vmatpush.msra.mxu0 %v517
      %1539 = vmatpush.msra.mxu0 %v485
      %1540 = vmatpush.msra.mxu0 %v453
      %1541 = vmatpush.msra.mxu0 %v421
      %1542 = vmatpush.msra.mxu0 %v389
      %1543 = vmatpush.msra.mxu0 %v357
      %1544 = vmatpush.msra.mxu0 %v325
      %1545 = vmatpush.msra.mxu0 %v293
      %1546 = vmatpush.msra.mxu0 %v261
      %1547 = vmatpush.msra.mxu0 %v229
      %1548 = vmatpush.msra.mxu0 %v197
      %1549 = vmatmul.f32.gmra.mxu0 %v183
      %v1550 = vpop.f32.mrf.mxu0
      %v1551 = vadd.f32 0.0, %v1550
      %1552 = vdwg.mxu0
      %1553 = vmatpush.msra.mxu0 0.0
      %1554 = vmatpush.msra.mxu0 0.0
      %1555 = vmatpush.msra.mxu0 0.0
      %1556 = vmatpush.msra.mxu0 0.0
      %1557 = vmatpush.msra.mxu0 0.0
      %1558 = vmatpush.msra.mxu0 %v1029
      %1559 = vmatpush.msra.mxu0 %v997
      %1560 = vmatpush.msra.mxu0 %v965
      %1561 = vmatpush.msra.mxu0 %v933
      %1562 = vmatpush.msra.mxu0 %v901
      %1563 = vmatpush.msra.mxu0 %v869
      %1564 = vmatpush.msra.mxu0 %v837
      %1565 = vmatpush.msra.mxu0 %v805
      %1566 = vmatpush.msra.mxu0 %v773
      %1567 = vmatpush.msra.mxu0 %v741
      %1568 = vmatpush.msra.mxu0 %v709
      %1569 = vmatmul.f32.gmra.mxu0 %v1051
      %v1570 = vpop.f32.mrf.mxu0
      %v1571 = vadd.f32 %v1551, %v1570
      %1572 = vdwg.mxu0
      %1573 = vmatpush.msra.mxu0 %v678
      %1574 = vmatpush.msra.mxu0 %v646
      %1575 = vmatpush.msra.mxu0 %v614
      %1576 = vmatpush.msra.mxu0 %v582
      %1577 = vmatpush.msra.mxu0 %v550
      %1578 = vmatpush.msra.mxu0 %v518
      %1579 = vmatpush.msra.mxu0 %v486
      %1580 = vmatpush.msra.mxu0 %v454
      %1581 = vmatpush.msra.mxu0 %v422
      %1582 = vmatpush.msra.mxu0 %v390
      %1583 = vmatpush.msra.mxu0 %v358
      %1584 = vmatpush.msra.mxu0 %v326
      %1585 = vmatpush.msra.mxu0 %v294
      %1586 = vmatpush.msra.mxu0 %v262
      %1587 = vmatpush.msra.mxu0 %v230
      %1588 = vmatpush.msra.mxu0 %v198
      %1589 = vmatmul.f32.gmra.mxu0 %v183
      %v1590 = vpop.f32.mrf.mxu0
      %v1591 = vadd.f32 0.0, %v1590
      %1592 = vdwg.mxu0
      %1593 = vmatpush.msra.mxu0 0.0
      %1594 = vmatpush.msra.mxu0 0.0
      %1595 = vmatpush.msra.mxu0 0.0
      %1596 = vmatpush.msra.mxu0 0.0
      %1597 = vmatpush.msra.mxu0 0.0
      %1598 = vmatpush.msra.mxu0 %v1030
      %1599 = vmatpush.msra.mxu0 %v998
      %1600 = vmatpush.msra.mxu0 %v966
      %1601 = vmatpush.msra.mxu0 %v934
      %1602 = vmatpush.msra.mxu0 %v902
      %1603 = vmatpush.msra.mxu0 %v870
      %1604 = vmatpush.msra.mxu0 %v838
      %1605 = vmatpush.msra.mxu0 %v806
      %1606 = vmatpush.msra.mxu0 %v774
      %1607 = vmatpush.msra.mxu0 %v742
      %1608 = vmatpush.msra.mxu0 %v710
      %1609 = vmatmul.f32.gmra.mxu0 %v1051
      %v1610 = vpop.f32.mrf.mxu0
      %v1611 = vadd.f32 %v1591, %v1610
      %1612 = vdwg.mxu0
      %1613 = vmatpush.msra.mxu0 %v679
      %1614 = vmatpush.msra.mxu0 %v647
      %1615 = vmatpush.msra.mxu0 %v615
      %1616 = vmatpush.msra.mxu0 %v583
      %1617 = vmatpush.msra.mxu0 %v551
      %1618 = vmatpush.msra.mxu0 %v519
      %1619 = vmatpush.msra.mxu0 %v487
      %1620 = vmatpush.msra.mxu0 %v455
      %1621 = vmatpush.msra.mxu0 %v423
      %1622 = vmatpush.msra.mxu0 %v391
      %1623 = vmatpush.msra.mxu0 %v359
      %1624 = vmatpush.msra.mxu0 %v327
      %1625 = vmatpush.msra.mxu0 %v295
      %1626 = vmatpush.msra.mxu0 %v263
      %1627 = vmatpush.msra.mxu0 %v231
      %1628 = vmatpush.msra.mxu0 %v199
      %1629 = vmatmul.f32.gmra.mxu0 %v183
      %v1630 = vpop.f32.mrf.mxu0
      %v1631 = vadd.f32 0.0, %v1630
      %1632 = vdwg.mxu0
      %1633 = vmatpush.msra.mxu0 0.0
      %1634 = vmatpush.msra.mxu0 0.0
      %1635 = vmatpush.msra.mxu0 0.0
      %1636 = vmatpush.msra.mxu0 0.0
      %1637 = vmatpush.msra.mxu0 0.0
      %1638 = vmatpush.msra.mxu0 %v1031
      %1639 = vmatpush.msra.mxu0 %v999
      %1640 = vmatpush.msra.mxu0 %v967
      %1641 = vmatpush.msra.mxu0 %v935
      %1642 = vmatpush.msra.mxu0 %v903
      %1643 = vmatpush.msra.mxu0 %v871
      %1644 = vmatpush.msra.mxu0 %v839
      %1645 = vmatpush.msra.mxu0 %v807
      %1646 = vmatpush.msra.mxu0 %v775
      %1647 = vmatpush.msra.mxu0 %v743
      %1648 = vmatpush.msra.mxu0 %v711
      %1649 = vmatmul.f32.gmra.mxu0 %v1051
      %v1650 = vpop.f32.mrf.mxu0
      %v1651 = vadd.f32 %v1631, %v1650
      %1652 = vdwg.mxu0
      %1653 = vmatpush.msra.mxu0 %v680
      %1654 = vmatpush.msra.mxu0 %v648
      %1655 = vmatpush.msra.mxu0 %v616
      %1656 = vmatpush.msra.mxu0 %v584
      %1657 = vmatpush.msra.mxu0 %v552
      %1658 = vmatpush.msra.mxu0 %v520
      %1659 = vmatpush.msra.mxu0 %v488
      %1660 = vmatpush.msra.mxu0 %v456
      %1661 = vmatpush.msra.mxu0 %v424
      %1662 = vmatpush.msra.mxu0 %v392
      %1663 = vmatpush.msra.mxu0 %v360
      %1664 = vmatpush.msra.mxu0 %v328
      %1665 = vmatpush.msra.mxu0 %v296
      %1666 = vmatpush.msra.mxu0 %v264
      %1667 = vmatpush.msra.mxu0 %v232
      %1668 = vmatpush.msra.mxu0 %v200
      %1669 = vmatmul.f32.gmra.mxu0 %v183
      %v1670 = vpop.f32.mrf.mxu0
      %v1671 = vadd.f32 0.0, %v1670
      %1672 = vdwg.mxu0
      %1673 = vmatpush.msra.mxu0 0.0
      %1674 = vmatpush.msra.mxu0 0.0
      %1675 = vmatpush.msra.mxu0 0.0
      %1676 = vmatpush.msra.mxu0 0.0
      %1677 = vmatpush.msra.mxu0 0.0
      %1678 = vmatpush.msra.mxu0 %v1032
      %1679 = vmatpush.msra.mxu0 %v1000
      %1680 = vmatpush.msra.mxu0 %v968
      %1681 = vmatpush.msra.mxu0 %v936
      %1682 = vmatpush.msra.mxu0 %v904
      %1683 = vmatpush.msra.mxu0 %v872
      %1684 = vmatpush.msra.mxu0 %v840
      %1685 = vmatpush.msra.mxu0 %v808
      %1686 = vmatpush.msra.mxu0 %v776
      %1687 = vmatpush.msra.mxu0 %v744
      %1688 = vmatpush.msra.mxu0 %v712
      %1689 = vmatmul.f32.gmra.mxu0 %v1051
      %v1690 = vpop.f32.mrf.mxu0
      %v1691 = vadd.f32 %v1671, %v1690
      %1692 = vdwg.mxu0
      %1693 = vmatpush.msra.mxu0 %v681
      %1694 = vmatpush.msra.mxu0 %v649
      %1695 = vmatpush.msra.mxu0 %v617
      %1696 = vmatpush.msra.mxu0 %v585
      %1697 = vmatpush.msra.mxu0 %v553
      %1698 = vmatpush.msra.mxu0 %v521
      %1699 = vmatpush.msra.mxu0 %v489
      %1700 = vmatpush.msra.mxu0 %v457
      %1701 = vmatpush.msra.mxu0 %v425
      %1702 = vmatpush.msra.mxu0 %v393
      %1703 = vmatpush.msra.mxu0 %v361
      %1704 = vmatpush.msra.mxu0 %v329
      %1705 = vmatpush.msra.mxu0 %v297
      %1706 = vmatpush.msra.mxu0 %v265
      %1707 = vmatpush.msra.mxu0 %v233
      %1708 = vmatpush.msra.mxu0 %v201
      %1709 = vmatmul.f32.gmra.mxu0 %v183
      %v1710 = vpop.f32.mrf.mxu0
      %v1711 = vadd.f32 0.0, %v1710
      %1712 = vdwg.mxu0
      %1713 = vmatpush.msra.mxu0 0.0
      %1714 = vmatpush.msra.mxu0 0.0
      %1715 = vmatpush.msra.mxu0 0.0
      %1716 = vmatpush.msra.mxu0 0.0
      %1717 = vmatpush.msra.mxu0 0.0
      %1718 = vmatpush.msra.mxu0 %v1033
      %1719 = vmatpush.msra.mxu0 %v1001
      %1720 = vmatpush.msra.mxu0 %v969
      %1721 = vmatpush.msra.mxu0 %v937
      %1722 = vmatpush.msra.mxu0 %v905
      %1723 = vmatpush.msra.mxu0 %v873
      %1724 = vmatpush.msra.mxu0 %v841
      %1725 = vmatpush.msra.mxu0 %v809
      %1726 = vmatpush.msra.mxu0 %v777
      %1727 = vmatpush.msra.mxu0 %v745
      %1728 = vmatpush.msra.mxu0 %v713
      %1729 = vmatmul.f32.gmra.mxu0 %v1051
      %v1730 = vpop.f32.mrf.mxu0
      %v1731 = vadd.f32 %v1711, %v1730
      %1732 = vdwg.mxu0
      %1733 = vmatpush.msra.mxu0 %v682
      %1734 = vmatpush.msra.mxu0 %v650
      %1735 = vmatpush.msra.mxu0 %v618
      %1736 = vmatpush.msra.mxu0 %v586
      %1737 = vmatpush.msra.mxu0 %v554
      %1738 = vmatpush.msra.mxu0 %v522
      %1739 = vmatpush.msra.mxu0 %v490
      %1740 = vmatpush.msra.mxu0 %v458
      %1741 = vmatpush.msra.mxu0 %v426
      %1742 = vmatpush.msra.mxu0 %v394
      %1743 = vmatpush.msra.mxu0 %v362
      %1744 = vmatpush.msra.mxu0 %v330
      %1745 = vmatpush.msra.mxu0 %v298
      %1746 = vmatpush.msra.mxu0 %v266
      %1747 = vmatpush.msra.mxu0 %v234
      %1748 = vmatpush.msra.mxu0 %v202
      %1749 = vmatmul.f32.gmra.mxu0 %v183
      %v1750 = vpop.f32.mrf.mxu0
      %v1751 = vadd.f32 0.0, %v1750
      %1752 = vdwg.mxu0
      %1753 = vmatpush.msra.mxu0 0.0
      %1754 = vmatpush.msra.mxu0 0.0
      %1755 = vmatpush.msra.mxu0 0.0
      %1756 = vmatpush.msra.mxu0 0.0
      %1757 = vmatpush.msra.mxu0 0.0
      %1758 = vmatpush.msra.mxu0 %v1034
      %1759 = vmatpush.msra.mxu0 %v1002
      %1760 = vmatpush.msra.mxu0 %v970
      %1761 = vmatpush.msra.mxu0 %v938
      %1762 = vmatpush.msra.mxu0 %v906
      %1763 = vmatpush.msra.mxu0 %v874
      %1764 = vmatpush.msra.mxu0 %v842
      %1765 = vmatpush.msra.mxu0 %v810
      %1766 = vmatpush.msra.mxu0 %v778
      %1767 = vmatpush.msra.mxu0 %v746
      %1768 = vmatpush.msra.mxu0 %v714
      %1769 = vmatmul.f32.gmra.mxu0 %v1051
      %v1770 = vpop.f32.mrf.mxu0
      %v1771 = vadd.f32 %v1751, %v1770
      %1772 = vdwg.mxu0
      %1773 = vmatpush.msra.mxu0 %v683
      %1774 = vmatpush.msra.mxu0 %v651
      %1775 = vmatpush.msra.mxu0 %v619
      %1776 = vmatpush.msra.mxu0 %v587
      %1777 = vmatpush.msra.mxu0 %v555
      %1778 = vmatpush.msra.mxu0 %v523
      %1779 = vmatpush.msra.mxu0 %v491
      %1780 = vmatpush.msra.mxu0 %v459
      %1781 = vmatpush.msra.mxu0 %v427
      %1782 = vmatpush.msra.mxu0 %v395
      %1783 = vmatpush.msra.mxu0 %v363
      %1784 = vmatpush.msra.mxu0 %v331
      %1785 = vmatpush.msra.mxu0 %v299
      %1786 = vmatpush.msra.mxu0 %v267
      %1787 = vmatpush.msra.mxu0 %v235
      %1788 = vmatpush.msra.mxu0 %v203
      %1789 = vmatmul.f32.gmra.mxu0 %v183
      %v1790 = vpop.f32.mrf.mxu0
      %v1791 = vadd.f32 0.0, %v1790
      %1792 = vdwg.mxu0
      %1793 = vmatpush.msra.mxu0 0.0
      %1794 = vmatpush.msra.mxu0 0.0
      %1795 = vmatpush.msra.mxu0 0.0
      %1796 = vmatpush.msra.mxu0 0.0
      %1797 = vmatpush.msra.mxu0 0.0
      %1798 = vmatpush.msra.mxu0 %v1035
      %1799 = vmatpush.msra.mxu0 %v1003
      %1800 = vmatpush.msra.mxu0 %v971
      %1801 = vmatpush.msra.mxu0 %v939
      %1802 = vmatpush.msra.mxu0 %v907
      %1803 = vmatpush.msra.mxu0 %v875
      %1804 = vmatpush.msra.mxu0 %v843
      %1805 = vmatpush.msra.mxu0 %v811
      %1806 = vmatpush.msra.mxu0 %v779
      %1807 = vmatpush.msra.mxu0 %v747
      %1808 = vmatpush.msra.mxu0 %v715
      %1809 = vmatmul.f32.gmra.mxu0 %v1051
      %v1810 = vpop.f32.mrf.mxu0
      %v1811 = vadd.f32 %v1791, %v1810
      %1812 = vdwg.mxu0
      %1813 = vmatpush.msra.mxu0 %v684
      %1814 = vmatpush.msra.mxu0 %v652
      %1815 = vmatpush.msra.mxu0 %v620
      %1816 = vmatpush.msra.mxu0 %v588
      %1817 = vmatpush.msra.mxu0 %v556
      %1818 = vmatpush.msra.mxu0 %v524
      %1819 = vmatpush.msra.mxu0 %v492
      %1820 = vmatpush.msra.mxu0 %v460
      %1821 = vmatpush.msra.mxu0 %v428
      %1822 = vmatpush.msra.mxu0 %v396
      %1823 = vmatpush.msra.mxu0 %v364
      %1824 = vmatpush.msra.mxu0 %v332
      %1825 = vmatpush.msra.mxu0 %v300
      %1826 = vmatpush.msra.mxu0 %v268
      %1827 = vmatpush.msra.mxu0 %v236
      %1828 = vmatpush.msra.mxu0 %v204
      %1829 = vmatmul.f32.gmra.mxu0 %v183
      %v1830 = vpop.f32.mrf.mxu0
      %v1831 = vadd.f32 0.0, %v1830
      %1832 = vdwg.mxu0
      %1833 = vmatpush.msra.mxu0 0.0
      %1834 = vmatpush.msra.mxu0 0.0
      %1835 = vmatpush.msra.mxu0 0.0
      %1836 = vmatpush.msra.mxu0 0.0
      %1837 = vmatpush.msra.mxu0 0.0
      %1838 = vmatpush.msra.mxu0 %v1036
      %1839 = vmatpush.msra.mxu0 %v1004
      %1840 = vmatpush.msra.mxu0 %v972
      %1841 = vmatpush.msra.mxu0 %v940
      %1842 = vmatpush.msra.mxu0 %v908
      %1843 = vmatpush.msra.mxu0 %v876
      %1844 = vmatpush.msra.mxu0 %v844
      %1845 = vmatpush.msra.mxu0 %v812
      %1846 = vmatpush.msra.mxu0 %v780
      %1847 = vmatpush.msra.mxu0 %v748
      %1848 = vmatpush.msra.mxu0 %v716
      %1849 = vmatmul.f32.gmra.mxu0 %v1051
      %v1850 = vpop.f32.mrf.mxu0
      %v1851 = vadd.f32 %v1831, %v1850
      %1852 = vdwg.mxu0
      %1853 = vmatpush.msra.mxu0 %v685
      %1854 = vmatpush.msra.mxu0 %v653
      %1855 = vmatpush.msra.mxu0 %v621
      %1856 = vmatpush.msra.mxu0 %v589
      %1857 = vmatpush.msra.mxu0 %v557
      %1858 = vmatpush.msra.mxu0 %v525
      %1859 = vmatpush.msra.mxu0 %v493
      %1860 = vmatpush.msra.mxu0 %v461
      %1861 = vmatpush.msra.mxu0 %v429
      %1862 = vmatpush.msra.mxu0 %v397
      %1863 = vmatpush.msra.mxu0 %v365
      %1864 = vmatpush.msra.mxu0 %v333
      %1865 = vmatpush.msra.mxu0 %v301
      %1866 = vmatpush.msra.mxu0 %v269
      %1867 = vmatpush.msra.mxu0 %v237
      %1868 = vmatpush.msra.mxu0 %v205
      %1869 = vmatmul.f32.gmra.mxu0 %v183
      %v1870 = vpop.f32.mrf.mxu0
      %v1871 = vadd.f32 0.0, %v1870
      %1872 = vdwg.mxu0
      %1873 = vmatpush.msra.mxu0 0.0
      %1874 = vmatpush.msra.mxu0 0.0
      %1875 = vmatpush.msra.mxu0 0.0
      %1876 = vmatpush.msra.mxu0 0.0
      %1877 = vmatpush.msra.mxu0 0.0
      %1878 = vmatpush.msra.mxu0 %v1037
      %1879 = vmatpush.msra.mxu0 %v1005
      %1880 = vmatpush.msra.mxu0 %v973
      %1881 = vmatpush.msra.mxu0 %v941
      %1882 = vmatpush.msra.mxu0 %v909
      %1883 = vmatpush.msra.mxu0 %v877
      %1884 = vmatpush.msra.mxu0 %v845
      %1885 = vmatpush.msra.mxu0 %v813
      %1886 = vmatpush.msra.mxu0 %v781
      %1887 = vmatpush.msra.mxu0 %v749
      %1888 = vmatpush.msra.mxu0 %v717
      %1889 = vmatmul.f32.gmra.mxu0 %v1051
      %v1890 = vpop.f32.mrf.mxu0
      %v1891 = vadd.f32 %v1871, %v1890
      %1892 = vdwg.mxu0
      %1893 = vmatpush.msra.mxu0 %v686
      %1894 = vmatpush.msra.mxu0 %v654
      %1895 = vmatpush.msra.mxu0 %v622
      %1896 = vmatpush.msra.mxu0 %v590
      %1897 = vmatpush.msra.mxu0 %v558
      %1898 = vmatpush.msra.mxu0 %v526
      %1899 = vmatpush.msra.mxu0 %v494
      %1900 = vmatpush.msra.mxu0 %v462
      %1901 = vmatpush.msra.mxu0 %v430
      %1902 = vmatpush.msra.mxu0 %v398
      %1903 = vmatpush.msra.mxu0 %v366
      %1904 = vmatpush.msra.mxu0 %v334
      %1905 = vmatpush.msra.mxu0 %v302
      %1906 = vmatpush.msra.mxu0 %v270
      %1907 = vmatpush.msra.mxu0 %v238
      %1908 = vmatpush.msra.mxu0 %v206
      %1909 = vmatmul.f32.gmra.mxu0 %v183
      %v1910 = vpop.f32.mrf.mxu0
      %v1911 = vadd.f32 0.0, %v1910
      %1912 = vdwg.mxu0
      %1913 = vmatpush.msra.mxu0 0.0
      %1914 = vmatpush.msra.mxu0 0.0
      %1915 = vmatpush.msra.mxu0 0.0
      %1916 = vmatpush.msra.mxu0 0.0
      %1917 = vmatpush.msra.mxu0 0.0
      %1918 = vmatpush.msra.mxu0 %v1038
      %1919 = vmatpush.msra.mxu0 %v1006
      %1920 = vmatpush.msra.mxu0 %v974
      %1921 = vmatpush.msra.mxu0 %v942
      %1922 = vmatpush.msra.mxu0 %v910
      %1923 = vmatpush.msra.mxu0 %v878
      %1924 = vmatpush.msra.mxu0 %v846
      %1925 = vmatpush.msra.mxu0 %v814
      %1926 = vmatpush.msra.mxu0 %v782
      %1927 = vmatpush.msra.mxu0 %v750
      %1928 = vmatpush.msra.mxu0 %v718
      %1929 = vmatmul.f32.gmra.mxu0 %v1051
      %v1930 = vpop.f32.mrf.mxu0
      %v1931 = vadd.f32 %v1911, %v1930
      %1932 = vdwg.mxu0
      %1933 = vmatpush.msra.mxu0 %v687
      %1934 = vmatpush.msra.mxu0 %v655
      %1935 = vmatpush.msra.mxu0 %v623
      %1936 = vmatpush.msra.mxu0 %v591
      %1937 = vmatpush.msra.mxu0 %v559
      %1938 = vmatpush.msra.mxu0 %v527
      %1939 = vmatpush.msra.mxu0 %v495
      %1940 = vmatpush.msra.mxu0 %v463
      %1941 = vmatpush.msra.mxu0 %v431
      %1942 = vmatpush.msra.mxu0 %v399
      %1943 = vmatpush.msra.mxu0 %v367
      %1944 = vmatpush.msra.mxu0 %v335
      %1945 = vmatpush.msra.mxu0 %v303
      %1946 = vmatpush.msra.mxu0 %v271
      %1947 = vmatpush.msra.mxu0 %v239
      %1948 = vmatpush.msra.mxu0 %v207
      %1949 = vmatmul.f32.gmra.mxu0 %v183
      %v1950 = vpop.f32.mrf.mxu0
      %v1951 = vadd.f32 0.0, %v1950
      %1952 = vdwg.mxu0
      %1953 = vmatpush.msra.mxu0 0.0
      %1954 = vmatpush.msra.mxu0 0.0
      %1955 = vmatpush.msra.mxu0 0.0
      %1956 = vmatpush.msra.mxu0 0.0
      %1957 = vmatpush.msra.mxu0 0.0
      %1958 = vmatpush.msra.mxu0 %v1039
      %1959 = vmatpush.msra.mxu0 %v1007
      %1960 = vmatpush.msra.mxu0 %v975
      %1961 = vmatpush.msra.mxu0 %v943
      %1962 = vmatpush.msra.mxu0 %v911
      %1963 = vmatpush.msra.mxu0 %v879
      %1964 = vmatpush.msra.mxu0 %v847
      %1965 = vmatpush.msra.mxu0 %v815
      %1966 = vmatpush.msra.mxu0 %v783
      %1967 = vmatpush.msra.mxu0 %v751
      %1968 = vmatpush.msra.mxu0 %v719
      %1969 = vmatmul.f32.gmra.mxu0 %v1051
      %v1970 = vpop.f32.mrf.mxu0
      %v1971 = vadd.f32 %v1951, %v1970
      %1972 = vdwg.mxu0
      %1973 = vmatpush.msra.mxu0 %v688
      %1974 = vmatpush.msra.mxu0 %v656
      %1975 = vmatpush.msra.mxu0 %v624
      %1976 = vmatpush.msra.mxu0 %v592
      %1977 = vmatpush.msra.mxu0 %v560
      %1978 = vmatpush.msra.mxu0 %v528
      %1979 = vmatpush.msra.mxu0 %v496
      %1980 = vmatpush.msra.mxu0 %v464
      %1981 = vmatpush.msra.mxu0 %v432
      %1982 = vmatpush.msra.mxu0 %v400
      %1983 = vmatpush.msra.mxu0 %v368
      %1984 = vmatpush.msra.mxu0 %v336
      %1985 = vmatpush.msra.mxu0 %v304
      %1986 = vmatpush.msra.mxu0 %v272
      %1987 = vmatpush.msra.mxu0 %v240
      %1988 = vmatpush.msra.mxu0 %v208
      %1989 = vmatmul.f32.gmra.mxu0 %v183
      %v1990 = vpop.f32.mrf.mxu0
      %v1991 = vadd.f32 0.0, %v1990
      %1992 = vdwg.mxu0
      %1993 = vmatpush.msra.mxu0 0.0
      %1994 = vmatpush.msra.mxu0 0.0
      %1995 = vmatpush.msra.mxu0 0.0
      %1996 = vmatpush.msra.mxu0 0.0
      %1997 = vmatpush.msra.mxu0 0.0
      %1998 = vmatpush.msra.mxu0 %v1040
      %1999 = vmatpush.msra.mxu0 %v1008
      %2000 = vmatpush.msra.mxu0 %v976
      %2001 = vmatpush.msra.mxu0 %v944
      %2002 = vmatpush.msra.mxu0 %v912
      %2003 = vmatpush.msra.mxu0 %v880
      %2004 = vmatpush.msra.mxu0 %v848
      %2005 = vmatpush.msra.mxu0 %v816
      %2006 = vmatpush.msra.mxu0 %v784
      %2007 = vmatpush.msra.mxu0 %v752
      %2008 = vmatpush.msra.mxu0 %v720
      %2009 = vmatmul.f32.gmra.mxu0 %v1051
      %v2010 = vpop.f32.mrf.mxu0
      %v2011 = vadd.f32 %v1991, %v2010
      %2012 = vdwg.mxu0
      %2013 = vmatpush.msra.mxu0 %v689
      %2014 = vmatpush.msra.mxu0 %v657
      %2015 = vmatpush.msra.mxu0 %v625
      %2016 = vmatpush.msra.mxu0 %v593
      %2017 = vmatpush.msra.mxu0 %v561
      %2018 = vmatpush.msra.mxu0 %v529
      %2019 = vmatpush.msra.mxu0 %v497
      %2020 = vmatpush.msra.mxu0 %v465
      %2021 = vmatpush.msra.mxu0 %v433
      %2022 = vmatpush.msra.mxu0 %v401
      %2023 = vmatpush.msra.mxu0 %v369
      %2024 = vmatpush.msra.mxu0 %v337
      %2025 = vmatpush.msra.mxu0 %v305
      %2026 = vmatpush.msra.mxu0 %v273
      %2027 = vmatpush.msra.mxu0 %v241
      %2028 = vmatpush.msra.mxu0 %v209
      %2029 = vmatmul.f32.gmra.mxu0 %v183
      %v2030 = vpop.f32.mrf.mxu0
      %v2031 = vadd.f32 0.0, %v2030
      %2032 = vdwg.mxu0
      %2033 = vmatpush.msra.mxu0 0.0
      %2034 = vmatpush.msra.mxu0 0.0
      %2035 = vmatpush.msra.mxu0 0.0
      %2036 = vmatpush.msra.mxu0 0.0
      %2037 = vmatpush.msra.mxu0 0.0
      %2038 = vmatpush.msra.mxu0 %v1041
      %2039 = vmatpush.msra.mxu0 %v1009
      %2040 = vmatpush.msra.mxu0 %v977
      %2041 = vmatpush.msra.mxu0 %v945
      %2042 = vmatpush.msra.mxu0 %v913
      %2043 = vmatpush.msra.mxu0 %v881
      %2044 = vmatpush.msra.mxu0 %v849
      %2045 = vmatpush.msra.mxu0 %v817
      %2046 = vmatpush.msra.mxu0 %v785
      %2047 = vmatpush.msra.mxu0 %v753
      %2048 = vmatpush.msra.mxu0 %v721
      %2049 = vmatmul.f32.gmra.mxu0 %v1051
      %v2050 = vpop.f32.mrf.mxu0
      %v2051 = vadd.f32 %v2031, %v2050
      %2052 = vdwg.mxu0
      %2053 = vmatpush.msra.mxu0 %v690
      %2054 = vmatpush.msra.mxu0 %v658
      %2055 = vmatpush.msra.mxu0 %v626
      %2056 = vmatpush.msra.mxu0 %v594
      %2057 = vmatpush.msra.mxu0 %v562
      %2058 = vmatpush.msra.mxu0 %v530
      %2059 = vmatpush.msra.mxu0 %v498
      %2060 = vmatpush.msra.mxu0 %v466
      %2061 = vmatpush.msra.mxu0 %v434
      %2062 = vmatpush.msra.mxu0 %v402
      %2063 = vmatpush.msra.mxu0 %v370
      %2064 = vmatpush.msra.mxu0 %v338
      %2065 = vmatpush.msra.mxu0 %v306
      %2066 = vmatpush.msra.mxu0 %v274
      %2067 = vmatpush.msra.mxu0 %v242
      %2068 = vmatpush.msra.mxu0 %v210
      %2069 = vmatmul.f32.gmra.mxu0 %v183
      %v2070 = vpop.f32.mrf.mxu0
      %v2071 = vadd.f32 0.0, %v2070
      %2072 = vdwg.mxu0
      %2073 = vmatpush.msra.mxu0 0.0
      %2074 = vmatpush.msra.mxu0 0.0
      %2075 = vmatpush.msra.mxu0 0.0
      %2076 = vmatpush.msra.mxu0 0.0
      %2077 = vmatpush.msra.mxu0 0.0
      %2078 = vmatpush.msra.mxu0 %v1042
      %2079 = vmatpush.msra.mxu0 %v1010
      %2080 = vmatpush.msra.mxu0 %v978
      %2081 = vmatpush.msra.mxu0 %v946
      %2082 = vmatpush.msra.mxu0 %v914
      %2083 = vmatpush.msra.mxu0 %v882
      %2084 = vmatpush.msra.mxu0 %v850
      %2085 = vmatpush.msra.mxu0 %v818
      %2086 = vmatpush.msra.mxu0 %v786
      %2087 = vmatpush.msra.mxu0 %v754
      %2088 = vmatpush.msra.mxu0 %v722
      %2089 = vmatmul.f32.gmra.mxu0 %v1051
      %v2090 = vpop.f32.mrf.mxu0
      %v2091 = vadd.f32 %v2071, %v2090
      %2092 = vdwg.mxu0
      %2093 = vmatpush.msra.mxu0 %v691
      %2094 = vmatpush.msra.mxu0 %v659
      %2095 = vmatpush.msra.mxu0 %v627
      %2096 = vmatpush.msra.mxu0 %v595
      %2097 = vmatpush.msra.mxu0 %v563
      %2098 = vmatpush.msra.mxu0 %v531
      %2099 = vmatpush.msra.mxu0 %v499
      %2100 = vmatpush.msra.mxu0 %v467
      %2101 = vmatpush.msra.mxu0 %v435
      %2102 = vmatpush.msra.mxu0 %v403
      %2103 = vmatpush.msra.mxu0 %v371
      %2104 = vmatpush.msra.mxu0 %v339
      %2105 = vmatpush.msra.mxu0 %v307
      %2106 = vmatpush.msra.mxu0 %v275
      %2107 = vmatpush.msra.mxu0 %v243
      %2108 = vmatpush.msra.mxu0 %v211
      %2109 = vmatmul.f32.gmra.mxu0 %v183
      %v2110 = vpop.f32.mrf.mxu0
      %v2111 = vadd.f32 0.0, %v2110
      %2112 = vdwg.mxu0
      %2113 = vmatpush.msra.mxu0 0.0
      %2114 = vmatpush.msra.mxu0 0.0
      %2115 = vmatpush.msra.mxu0 0.0
      %2116 = vmatpush.msra.mxu0 0.0
      %2117 = vmatpush.msra.mxu0 0.0
      %2118 = vmatpush.msra.mxu0 %v1043
      %2119 = vmatpush.msra.mxu0 %v1011
      %2120 = vmatpush.msra.mxu0 %v979
      %2121 = vmatpush.msra.mxu0 %v947
      %2122 = vmatpush.msra.mxu0 %v915
      %2123 = vmatpush.msra.mxu0 %v883
      %2124 = vmatpush.msra.mxu0 %v851
      %2125 = vmatpush.msra.mxu0 %v819
      %2126 = vmatpush.msra.mxu0 %v787
      %2127 = vmatpush.msra.mxu0 %v755
      %2128 = vmatpush.msra.mxu0 %v723
      %2129 = vmatmul.f32.gmra.mxu0 %v1051
      %v2130 = vpop.f32.mrf.mxu0
      %v2131 = vadd.f32 %v2111, %v2130
      %2132 = vdwg.mxu0
      %2133 = vmatpush.msra.mxu0 %v692
      %2134 = vmatpush.msra.mxu0 %v660
      %2135 = vmatpush.msra.mxu0 %v628
      %2136 = vmatpush.msra.mxu0 %v596
      %2137 = vmatpush.msra.mxu0 %v564
      %2138 = vmatpush.msra.mxu0 %v532
      %2139 = vmatpush.msra.mxu0 %v500
      %2140 = vmatpush.msra.mxu0 %v468
      %2141 = vmatpush.msra.mxu0 %v436
      %2142 = vmatpush.msra.mxu0 %v404
      %2143 = vmatpush.msra.mxu0 %v372
      %2144 = vmatpush.msra.mxu0 %v340
      %2145 = vmatpush.msra.mxu0 %v308
      %2146 = vmatpush.msra.mxu0 %v276
      %2147 = vmatpush.msra.mxu0 %v244
      %2148 = vmatpush.msra.mxu0 %v212
      %2149 = vmatmul.f32.gmra.mxu0 %v183
      %v2150 = vpop.f32.mrf.mxu0
      %v2151 = vadd.f32 0.0, %v2150
      %2152 = vdwg.mxu0
      %2153 = vmatpush.msra.mxu0 0.0
      %2154 = vmatpush.msra.mxu0 0.0
      %2155 = vmatpush.msra.mxu0 0.0
      %2156 = vmatpush.msra.mxu0 0.0
      %2157 = vmatpush.msra.mxu0 0.0
      %2158 = vmatpush.msra.mxu0 %v1044
      %2159 = vmatpush.msra.mxu0 %v1012
      %2160 = vmatpush.msra.mxu0 %v980
      %2161 = vmatpush.msra.mxu0 %v948
      %2162 = vmatpush.msra.mxu0 %v916
      %2163 = vmatpush.msra.mxu0 %v884
      %2164 = vmatpush.msra.mxu0 %v852
      %2165 = vmatpush.msra.mxu0 %v820
      %2166 = vmatpush.msra.mxu0 %v788
      %2167 = vmatpush.msra.mxu0 %v756
      %2168 = vmatpush.msra.mxu0 %v724
      %2169 = vmatmul.f32.gmra.mxu0 %v1051
      %v2170 = vpop.f32.mrf.mxu0
      %v2171 = vadd.f32 %v2151, %v2170
      %2172 = vdwg.mxu0
      %2173 = vmatpush.msra.mxu0 %v693
      %2174 = vmatpush.msra.mxu0 %v661
      %2175 = vmatpush.msra.mxu0 %v629
      %2176 = vmatpush.msra.mxu0 %v597
      %2177 = vmatpush.msra.mxu0 %v565
      %2178 = vmatpush.msra.mxu0 %v533
      %2179 = vmatpush.msra.mxu0 %v501
      %2180 = vmatpush.msra.mxu0 %v469
      %2181 = vmatpush.msra.mxu0 %v437
      %2182 = vmatpush.msra.mxu0 %v405
      %2183 = vmatpush.msra.mxu0 %v373
      %2184 = vmatpush.msra.mxu0 %v341
      %2185 = vmatpush.msra.mxu0 %v309
      %2186 = vmatpush.msra.mxu0 %v277
      %2187 = vmatpush.msra.mxu0 %v245
      %2188 = vmatpush.msra.mxu0 %v213
      %2189 = vmatmul.f32.gmra.mxu0 %v183
      %v2190 = vpop.f32.mrf.mxu0
      %v2191 = vadd.f32 0.0, %v2190
      %2192 = vdwg.mxu0
      %2193 = vmatpush.msra.mxu0 0.0
      %2194 = vmatpush.msra.mxu0 0.0
      %2195 = vmatpush.msra.mxu0 0.0
      %2196 = vmatpush.msra.mxu0 0.0
      %2197 = vmatpush.msra.mxu0 0.0
      %2198 = vmatpush.msra.mxu0 %v1045
      %2199 = vmatpush.msra.mxu0 %v1013
      %2200 = vmatpush.msra.mxu0 %v981
      %2201 = vmatpush.msra.mxu0 %v949
      %2202 = vmatpush.msra.mxu0 %v917
      %2203 = vmatpush.msra.mxu0 %v885
      %2204 = vmatpush.msra.mxu0 %v853
      %2205 = vmatpush.msra.mxu0 %v821
      %2206 = vmatpush.msra.mxu0 %v789
      %2207 = vmatpush.msra.mxu0 %v757
      %2208 = vmatpush.msra.mxu0 %v725
      %2209 = vmatmul.f32.gmra.mxu0 %v1051
      %v2210 = vpop.f32.mrf.mxu0
      %v2211 = vadd.f32 %v2191, %v2210
      %2212 = vdwg.mxu0
      %2213 = vmatpush.msra.mxu0 %v694
      %2214 = vmatpush.msra.mxu0 %v662
      %2215 = vmatpush.msra.mxu0 %v630
      %2216 = vmatpush.msra.mxu0 %v598
      %2217 = vmatpush.msra.mxu0 %v566
      %2218 = vmatpush.msra.mxu0 %v534
      %2219 = vmatpush.msra.mxu0 %v502
      %2220 = vmatpush.msra.mxu0 %v470
      %2221 = vmatpush.msra.mxu0 %v438
      %2222 = vmatpush.msra.mxu0 %v406
      %2223 = vmatpush.msra.mxu0 %v374
      %2224 = vmatpush.msra.mxu0 %v342
      %2225 = vmatpush.msra.mxu0 %v310
      %2226 = vmatpush.msra.mxu0 %v278
      %2227 = vmatpush.msra.mxu0 %v246
      %2228 = vmatpush.msra.mxu0 %v214
      %2229 = vmatmul.f32.gmra.mxu0 %v183
      %v2230 = vpop.f32.mrf.mxu0
      %v2231 = vadd.f32 0.0, %v2230
      %2232 = vdwg.mxu0
      %2233 = vmatpush.msra.mxu0 0.0
      %2234 = vmatpush.msra.mxu0 0.0
      %2235 = vmatpush.msra.mxu0 0.0
      %2236 = vmatpush.msra.mxu0 0.0
      %2237 = vmatpush.msra.mxu0 0.0
      %2238 = vmatpush.msra.mxu0 %v1046
      %2239 = vmatpush.msra.mxu0 %v1014
      %2240 = vmatpush.msra.mxu0 %v982
      %2241 = vmatpush.msra.mxu0 %v950
      %2242 = vmatpush.msra.mxu0 %v918
      %2243 = vmatpush.msra.mxu0 %v886
      %2244 = vmatpush.msra.mxu0 %v854
      %2245 = vmatpush.msra.mxu0 %v822
      %2246 = vmatpush.msra.mxu0 %v790
      %2247 = vmatpush.msra.mxu0 %v758
      %2248 = vmatpush.msra.mxu0 %v726
      %2249 = vmatmul.f32.gmra.mxu0 %v1051
      %v2250 = vpop.f32.mrf.mxu0
      %v2251 = vadd.f32 %v2231, %v2250
      %2252 = vdwg.mxu0
      %2253 = vmatpush.msra.mxu0 %v695
      %2254 = vmatpush.msra.mxu0 %v663
      %2255 = vmatpush.msra.mxu0 %v631
      %2256 = vmatpush.msra.mxu0 %v599
      %2257 = vmatpush.msra.mxu0 %v567
      %2258 = vmatpush.msra.mxu0 %v535
      %2259 = vmatpush.msra.mxu0 %v503
      %2260 = vmatpush.msra.mxu0 %v471
      %2261 = vmatpush.msra.mxu0 %v439
      %2262 = vmatpush.msra.mxu0 %v407
      %2263 = vmatpush.msra.mxu0 %v375
      %2264 = vmatpush.msra.mxu0 %v343
      %2265 = vmatpush.msra.mxu0 %v311
      %2266 = vmatpush.msra.mxu0 %v279
      %2267 = vmatpush.msra.mxu0 %v247
      %2268 = vmatpush.msra.mxu0 %v215
      %2269 = vmatmul.f32.gmra.mxu0 %v183
      %v2270 = vpop.f32.mrf.mxu0
      %v2271 = vadd.f32 0.0, %v2270
      %2272 = vdwg.mxu0
      %2273 = vmatpush.msra.mxu0 0.0
      %2274 = vmatpush.msra.mxu0 0.0
      %2275 = vmatpush.msra.mxu0 0.0
      %2276 = vmatpush.msra.mxu0 0.0
      %2277 = vmatpush.msra.mxu0 0.0
      %2278 = vmatpush.msra.mxu0 %v1047
      %2279 = vmatpush.msra.mxu0 %v1015
      %2280 = vmatpush.msra.mxu0 %v983
      %2281 = vmatpush.msra.mxu0 %v951
      %2282 = vmatpush.msra.mxu0 %v919
      %2283 = vmatpush.msra.mxu0 %v887
      %2284 = vmatpush.msra.mxu0 %v855
      %2285 = vmatpush.msra.mxu0 %v823
      %2286 = vmatpush.msra.mxu0 %v791
      %2287 = vmatpush.msra.mxu0 %v759
      %2288 = vmatpush.msra.mxu0 %v727
      %2289 = vmatmul.f32.gmra.mxu0 %v1051
      %v2290 = vpop.f32.mrf.mxu0
      %v2291 = vadd.f32 %v2271, %v2290
      %2292 = vdwg.mxu0
      %2293 = vmatpush.msra.mxu0 %v696
      %2294 = vmatpush.msra.mxu0 %v664
      %2295 = vmatpush.msra.mxu0 %v632
      %2296 = vmatpush.msra.mxu0 %v600
      %2297 = vmatpush.msra.mxu0 %v568
      %2298 = vmatpush.msra.mxu0 %v536
      %2299 = vmatpush.msra.mxu0 %v504
      %2300 = vmatpush.msra.mxu0 %v472
      %2301 = vmatpush.msra.mxu0 %v440
      %2302 = vmatpush.msra.mxu0 %v408
      %2303 = vmatpush.msra.mxu0 %v376
      %2304 = vmatpush.msra.mxu0 %v344
      %2305 = vmatpush.msra.mxu0 %v312
      %2306 = vmatpush.msra.mxu0 %v280
      %2307 = vmatpush.msra.mxu0 %v248
      %2308 = vmatpush.msra.mxu0 %v216
      %2309 = vmatmul.f32.gmra.mxu0 %v183
      %v2310 = vpop.f32.mrf.mxu0
      %v2311 = vadd.f32 0.0, %v2310
      %2312 = vdwg.mxu0
      %2313 = vmatpush.msra.mxu0 0.0
      %2314 = vmatpush.msra.mxu0 0.0
      %2315 = vmatpush.msra.mxu0 0.0
      %2316 = vmatpush.msra.mxu0 0.0
      %2317 = vmatpush.msra.mxu0 0.0
      %2318 = vmatpush.msra.mxu0 %v1048
      %2319 = vmatpush.msra.mxu0 %v1016
      %2320 = vmatpush.msra.mxu0 %v984
      %2321 = vmatpush.msra.mxu0 %v952
      %2322 = vmatpush.msra.mxu0 %v920
      %2323 = vmatpush.msra.mxu0 %v888
      %2324 = vmatpush.msra.mxu0 %v856
      %2325 = vmatpush.msra.mxu0 %v824
      %2326 = vmatpush.msra.mxu0 %v792
      %2327 = vmatpush.msra.mxu0 %v760
      %2328 = vmatpush.msra.mxu0 %v728
      %2329 = vmatmul.f32.gmra.mxu0 %v1051
      %v2330 = vpop.f32.mrf.mxu0
      %v2331 = vadd.f32 %v2311, %v2330
      %2332 = vdwg.mxu0
      %v2333 = vmax.f32 %v1091, 0.0
      %v2334 = vmax.f32 %v1131, 0.0
      %v2335 = vmax.f32 %v1171, 0.0
      %v2336 = vmax.f32 %v1211, 0.0
      %v2337 = vmax.f32 %v1251, 0.0
      %v2338 = vmax.f32 %v1291, 0.0
      %v2339 = vmax.f32 %v1331, 0.0
      %v2340 = vmax.f32 %v1371, 0.0
      %v2341 = vmax.f32 %v1411, 0.0
      %v2342 = vmax.f32 %v1451, 0.0
      %v2343 = vmax.f32 %v1491, 0.0
      %v2344 = vmax.f32 %v1531, 0.0
      %v2345 = vmax.f32 %v1571, 0.0
      %v2346 = vmax.f32 %v1611, 0.0
      %v2347 = vmax.f32 %v1651, 0.0
      %v2348 = vmax.f32 %v1691, 0.0
      %v2349 = vmax.f32 %v1731, 0.0
      %v2350 = vmax.f32 %v1771, 0.0
      %v2351 = vmax.f32 %v1811, 0.0
      %v2352 = vmax.f32 %v1851, 0.0
      %v2353 = vmax.f32 %v1891, 0.0
      %v2354 = vmax.f32 %v1931, 0.0
      %v2355 = vmax.f32 %v1971, 0.0
      %v2356 = vmax.f32 %v2011, 0.0
      %v2357 = vmax.f32 %v2051, 0.0
      %v2358 = vmax.f32 %v2091, 0.0
      %v2359 = vmax.f32 %v2131, 0.0
      %v2360 = vmax.f32 %v2171, 0.0
      %v2361 = vmax.f32 %v2211, 0.0
      %v2362 = vmax.f32 %v2251, 0.0
      %v2363 = vmax.f32 %v2291, 0.0
      %v2364 = vmax.f32 %v2331, 0.0
      %2365 = vst [vmem:[%s181] sm:$0xff] %v2333
      %2366 = vst [vmem:[%s181 + $0x8] sm:$0xff] %v2334
      %2367 = vst [vmem:[%s181 + $0x10] sm:$0xff] %v2335
      %2368 = vst [vmem:[%s181 + $0x18] sm:$0xff] %v2336
      %2369 = vst [vmem:[%s181 + $0x20] sm:$0xff] %v2337
      %2370 = vst [vmem:[%s181 + $0x28] sm:$0xff] %v2338
      %2371 = vst [vmem:[%s181 + $0x30] sm:$0xff] %v2339
      %2372 = vst [vmem:[%s181 + $0x38] sm:$0xff] %v2340
      %2373 = vst [vmem:[%s181 + $0x40] sm:$0xff] %v2341
      %2374 = vst [vmem:[%s181 + $0x48] sm:$0xff] %v2342
      %2375 = vst [vmem:[%s181 + $0x50] sm:$0xff] %v2343
      %2376 = vst [vmem:[%s181 + $0x58] sm:$0xff] %v2344
      %2377 = vst [vmem:[%s181 + $0x60] sm:$0xff] %v2345
      %2378 = vst [vmem:[%s181 + $0x68] sm:$0xff] %v2346
      %2379 = vst [vmem:[%s181 + $0x70] sm:$0xff] %v2347
      %2380 = vst [vmem:[%s181 + $0x78] sm:$0xff] %v2348
      %2381 = vst [vmem:[%s181 + $0x80] sm:$0xff] %v2349
      %2382 = vst [vmem:[%s181 + $0x88] sm:$0xff] %v2350
      %2383 = vst [vmem:[%s181 + $0x90] sm:$0xff] %v2351
      %2384 = vst [vmem:[%s181 + $0x98] sm:$0xff] %v2352
      %2385 = vst [vmem:[%s181 + $0xa0] sm:$0xff] %v2353
      %2386 = vst [vmem:[%s181 + $0xa8] sm:$0xff] %v2354
      %2387 = vst [vmem:[%s181 + $0xb0] sm:$0xff] %v2355
      %2388 = vst [vmem:[%s181 + $0xb8] sm:$0xff] %v2356
      %2389 = vst [vmem:[%s181 + $0xc0] sm:$0xff] %v2357
      %2390 = vst [vmem:[%s181 + $0xc8] sm:$0xff] %v2358
      %2391 = vst [vmem:[%s181 + $0xd0] sm:$0xff] %v2359
      %2392 = vst [vmem:[%s181 + $0xd8] sm:$0xff] %v2360
      %2393 = vst [vmem:[%s181 + $0xe0] sm:$0xff] %v2361
      %2394 = vst [vmem:[%s181 + $0xe8] sm:$0xff] %v2362
      %2395 = vst [vmem:[%s181 + $0xf0] sm:$0xff] %v2363
      %2396 = vst [vmem:[%s181 + $0xf8] sm:$0xff] %v2364
      %s2397 = smul.u32 32, %s18
      %p2398 = scmp.lt.s32.totalorder %s17, 1
      %s2399 = scalar_select %p2398, %s17, 1
      %p2400 = scmp.lt.s32.totalorder %s2397, 31
      %s2401 = scalar_select %p2400, %s2397, 31
      %s2402 = smul.addr %s2399, 32
      %s2403 = sadd.s32 %s2401, %s2402
      %s2404 = smul.addr %s2403, 8
      %s2405 = scalar_lea.vmem %s2, %s2404
      // Predicated region
      $region29: #{rescrc_forward.2} parent=27 // pred_check
        %p2406 = pneg %p94
      $region30: #{rescrc_forward.2} parent=27 // pred_check_branch
        %2408 = sbr.rel (%p2406) target = $region32
      $region31: #{rescrc_forward.2} parent=27 // pred_region
        %s2409 = smul.u32 32, %s18
      $region32: #{rescrc_forward.2} parent=27 // pred_fallthru
        _
    $region28: #{rescrc_forward.2} parent=5 // pred_fallthru
      _
    %p2410 = scmp.le.s32.totalorder 2, %s8
    // Predicated region
    $region33: #{rescrc_forward.2} parent=5 // pred_check
      %p2411 = pneg %p2410
    $region34: #{rescrc_forward.2} parent=5 // pred_check_branch
      %2413 = sbr.rel (%p2411) target = $region36
    $region35: #{rescrc_forward.2} parent=5 // pred_region
      %s2414 = ssub.s32 %s8, 2
      // Predicated region
      $region37: #{rescrc_forward.2} parent=35 // pred_check
        %p2415 = pneg %p100
      $region38: #{rescrc_forward.2} parent=35 // pred_check_branch
        %2417 = sbr.rel (%p2415) target = $region40
      $region39: #{rescrc_forward.2} parent=35 // pred_region
        %s2418 = smul.u32 32, %s20
        %p2419 = scmp.lt.s32.totalorder %s19, 1
        %s2420 = scalar_select %p2419, %s19, 1
        %p2421 = scmp.lt.s32.totalorder %s2418, 31
        %s2422 = scalar_select %p2421, %s2418, 31
        %s2423 = smul.addr %s2420, 32
        %s2424 = sadd.s32 %s2422, %s2423
        %s2425 = smul.addr %s2424, 8
        %s2426 = scalar_lea.vmem %s2, %s2425
      $region40: #{rescrc_forward.2} parent=35 // pred_fallthru
        _
    $region36: #{rescrc_forward.2} parent=5 // pred_fallthru
      _
  $region6: #{rescrc_forward.2} parent=0 // loop_footer
    %s12 = sadd.s32 1, %s8
  $region7: #{rescrc_forward.2} parent=0 // loop_footer_branch
    %7 = sbr.rel target = $region3
  $region8: #{rescrc_forward.2} parent=0 // loop_exit
    _

// kernel: rescrc_forward.3
$region0: #{rescrc_forward.3}
  #allocation0 [shape = 'u32[]', space=smem, size = 0x4, offset = 0x4, fixed_abs, tag = 'smem constant byte address 0x4 - core index']
  #allocation1 [shape = 'u32[72,128]{1,0:T(1,128)}', space=vmem, size = 0x9000, scoped, tag = 'internal scratch']
  %s0 = inlined_call_operand.vmem [shape: f32[8,216], index: 0, kind: input, shape index: {}]
  %s1 = inlined_call_operand.vmem [shape: f32[2,216,4096], index: 1, kind: input, shape index: {}]
  %s2 = inlined_call_operand.vmem [shape: f32[2,8,4096], index: 2, kind: input, shape index: {}]
  %s3 = inlined_call_operand.vmem [shape: f32[2,8,4096], index: 3, kind: output, shape index: {}]
  %s4 = sld [smem:[#allocation0]]
  $region45: #{rescrc_forward.3} parent=0
    _
  %s6 = ssub.s32 1, %s4
  %s7 = scalar_select 0, %s6, %s4
  loop: start=0, step=1, limit=4
  $region2: #{rescrc_forward.3} parent=0 // loop_pre_header
    _
  $region3: #{rescrc_forward.3} parent=0 // loop_header
    %s9 = sphi 0, %s13
    %p10 = scmp.ge.s32.totalorder %s9, 4
    %s16 = sphi 0, %s28
    %s17 = sphi 0, %s24
    %s18 = sphi 0, %s16
    %s19 = sphi 0, %s17
    %s20 = sphi 0, %s18
    %s21 = sphi 0, %s19
    %s29 = sphi 0, %s29
    %s31 = sphi 0, %s29
    %s32 = sphi 0, %s31
    %s46 = sphi 0, %s32
    %s54 = sphi 0, %s56
    %s57 = sphi 0, %s54
    %s58 = sphi 0, %s57
    %s74 = sphi 0, %s58
    %s82 = sphi 0, %s84
    %s85 = sphi 0, %s82
    %s86 = sphi 0, %s85
    %s102 = sphi 0, %s86
    %s110 = sphi 0, %s112
    %s113 = sphi 0, %s110
    %s114 = sphi 0, %s113
    %s130 = sphi 0, %s114
  $region4: #{rescrc_forward.3} parent=0 // loop_header_branch
    %12 = sbr.rel (%p10) target = $region8
  $region5: #{rescrc_forward.3} parent=0 // loop_body
    %s14 = ssub.s32 %s9, 1
    %s15 = ssub.s32 %s9, 2
    %s22 = sadd.s32 1, %s17
    %p23 = scmp.ge.s32.totalorder %s22, 1
    %s24 = scalar_select %p23, 0, %s22
    %s25 = sadd.s32 1, %s16
    %s26 = scalar_select %p23, %s25, %s16
    %p27 = scmp.ge.s32.totalorder %s26, 2
    %s28 = scalar_select %p27, 0, %s26
    %s30 = sadd.s32 %s29, 1
    %p33 = scmp.eq.s32.totalorder %s9, 1
    %p34 = scmp.ne.s32.totalorder %s29, %s31
    %p35 = scmp.eq.s32.totalorder %s9, 0
    %p36 = por %p34, %p35
    %p37 = scmp.ne.s32.totalorder %s29, %s31
    %p38 = scmp.eq.s32.totalorder %s14, 1
    %p39 = por %p37, %p38
    %p40 = scmp.ne.s32.totalorder %s31, %s32
    %p41 = scmp.eq.s32.totalorder %s14, 0
    %p42 = por %p40, %p41
    %p43 = scmp.ne.s32.totalorder %s31, %s32
    %p44 = scmp.eq.s32.totalorder %s15, 1
    %p45 = por %p43, %p44
    %p47 = scmp.ne.s32.totalorder %s32, %s46
    %p48 = scmp.eq.s32.totalorder %s15, 0
    %p49 = por %p47, %p48
    %s50 = ssub.s32 %s16, %s28
    %s51 = ssub.s32 %s17, %s24
    %s52 = sor.u32 %s50, %s51
    %p53 = scmp.eq.s32.totalorder %s52, 0
    %s55 = sadd.s32 %s54, 1
    %s56 = scalar_select %p53, %s54, %s55
    %p59 = pneg %p53
    %p60 = scmp.eq.s32.totalorder %s9, 1
    %p61 = por %p59, %p60
    %p62 = scmp.ne.s32.totalorder %s54, %s57
    %p63 = scmp.eq.s32.totalorder %s9, 0
    %p64 = por %p62, %p63
    %p65 = scmp.ne.s32.totalorder %s54, %s57
    %p66 = scmp.eq.s32.totalorder %s14, 1
    %p67 = por %p65, %p66
    %p68 = scmp.ne.s32.totalorder %s57, %s58
    %p69 = scmp.eq.s32.totalorder %s14, 0
    %p70 = por %p68, %p69
    %p71 = scmp.ne.s32.totalorder %s57, %s58
    %p72 = scmp.eq.s32.totalorder %s15, 1
    %p73 = por %p71, %p72
    %p75 = scmp.ne.s32.totalorder %s58, %s74
    %p76 = scmp.eq.s32.totalorder %s15, 0
    %p77 = por %p75, %p76
    %s78 = ssub.s32 %s16, %s28
    %s79 = ssub.s32 %s17, %s24
    %s80 = sor.u32 %s78, %s79
    %p81 = scmp.eq.s32.totalorder %s80, 0
    %s83 = sadd.s32 %s82, 1
    %s84 = scalar_select %p81, %s82, %s83
    %p87 = pneg %p81
    %p88 = scmp.eq.s32.totalorder %s9, 1
    %p89 = por %p87, %p88
    %p90 = scmp.ne.s32.totalorder %s82, %s85
    %p91 = scmp.eq.s32.totalorder %s9, 0
    %p92 = por %p90, %p91
    %p93 = scmp.ne.s32.totalorder %s82, %s85
    %p94 = scmp.eq.s32.totalorder %s14, 1
    %p95 = por %p93, %p94
    %p96 = scmp.ne.s32.totalorder %s85, %s86
    %p97 = scmp.eq.s32.totalorder %s14, 0
    %p98 = por %p96, %p97
    %p99 = scmp.ne.s32.totalorder %s85, %s86
    %p100 = scmp.eq.s32.totalorder %s15, 1
    %p101 = por %p99, %p100
    %p103 = scmp.ne.s32.totalorder %s86, %s102
    %p104 = scmp.eq.s32.totalorder %s15, 0
    %p105 = por %p103, %p104
    %s106 = ssub.s32 %s16, %s28
    %s107 = ssub.s32 %s17, %s24
    %s108 = sor.u32 %s106, %s107
    %p109 = scmp.eq.s32.totalorder %s108, 0
    %s111 = sadd.s32 %s110, 1
    %s112 = scalar_select %p109, %s110, %s111
    %p115 = pneg %p109
    %p116 = scmp.eq.s32.totalorder %s9, 1
    %p117 = por %p115, %p116
    %p118 = scmp.ne.s32.totalorder %s110, %s113
    %p119 = scmp.eq.s32.totalorder %s9, 0
    %p120 = por %p118, %p119
    %p121 = scmp.ne.s32.totalorder %s110, %s113
    %p122 = scmp.eq.s32.totalorder %s14, 1
    %p123 = por %p121, %p122
    %p124 = scmp.ne.s32.totalorder %s113, %s114
    %p125 = scmp.eq.s32.totalorder %s14, 0
    %p126 = por %p124, %p125
    %p127 = scmp.ne.s32.totalorder %s113, %s114
    %p128 = scmp.eq.s32.totalorder %s15, 1
    %p129 = por %p127, %p128
    %p131 = scmp.ne.s32.totalorder %s114, %s130
    %p132 = scmp.eq.s32.totalorder %s15, 0
    %p133 = por %p131, %p132
    %p134 = scmp.le.s32.totalorder 1, %s9
    %p135 = scmp.lt.s32.totalorder %s9, 3
    %p136 = pnand %p134, %p135
    %p137 = pneg %p136
    // Predicated region
    $region9: #{rescrc_forward.3} parent=5 // pred_check
      _
    $region10: #{rescrc_forward.3} parent=5 // pred_check_branch
      %139 = sbr.rel (%p136) target = $region12
    $region11: #{rescrc_forward.3} parent=5 // pred_region
      %s140 = ssub.s32 %s9, 1
      // Predicated region
      $region13: #{rescrc_forward.3} parent=11 // pred_check
        %p141 = pneg %p42
      $region14: #{rescrc_forward.3} parent=11 // pred_check_branch
        %143 = sbr.rel (%p141) target = $region16
      $region15: #{rescrc_forward.3} parent=11 // pred_region
        _
      $region16: #{rescrc_forward.3} parent=11 // pred_fallthru
        _
    $region12: #{rescrc_forward.3} parent=5 // pred_fallthru
      _
    %p144 = scmp.lt.s32.totalorder %s9, 2
    // Predicated region
    $region17: #{rescrc_forward.3} parent=5 // pred_check
      %p145 = pneg %p144
    $region18: #{rescrc_forward.3} parent=5 // pred_check_branch
      %147 = sbr.rel (%p145) target = $region20
    $region19: #{rescrc_forward.3} parent=5 // pred_region
      // Predicated region
      $region21: #{rescrc_forward.3} parent=19 // pred_check
        %p148 = pneg %p64
      $region22: #{rescrc_forward.3} parent=19 // pred_check_branch
        %150 = sbr.rel (%p148) target = $region24
      $region23: #{rescrc_forward.3} parent=19 // pred_region
        %s151 = smul.u32 32, %s17
        %p152 = scmp.lt.s32.totalorder %s16, 1
        %s153 = scalar_select %p152, %s16, 1
        %p154 = scmp.lt.s32.totalorder %s151, 31
        %s155 = scalar_select %p154, %s151, 31
        %s156 = smul.addr %s153, 864
        %s157 = sadd.s32 %s155, %s156
        %s158 = smul.addr %s157, 8
        %s159 = scalar_lea.vmem %s1, %s158
        %s160 = smul.u32 32, %s17
      $region24: #{rescrc_forward.3} parent=19 // pred_fallthru
        _
      // Predicated region
      $region25: #{rescrc_forward.3} parent=19 // pred_check
        %p161 = pneg %p92
      $region26: #{rescrc_forward.3} parent=19 // pred_check_branch
        %163 = sbr.rel (%p161) target = $region28
      $region27: #{rescrc_forward.3} parent=19 // pred_region
        %s164 = smul.u32 32, %s17
        %p165 = scmp.lt.s32.totalorder %s16, 1
        %s166 = scalar_select %p165, %s16, 1
        %p167 = scmp.lt.s32.totalorder %s164, 31
        %s168 = scalar_select %p167, %s164, 31
        %s169 = smul.addr %s166, 32
        %s170 = sadd.s32 %s168, %s169
        %s171 = smul.addr %s170, 8
        %s172 = scalar_lea.vmem %s2, %s171
        %s173 = smul.u32 32, %s17
      $region28: #{rescrc_forward.3} parent=19 // pred_fallthru
        _
    $region20: #{rescrc_forward.3} parent=5 // pred_fallthru
      _
    %p174 = scmp.le.s32.totalorder 1, %s9
    %p175 = scmp.lt.s32.totalorder %s9, 3
    %p176 = pnand %p174, %p175
    %p177 = pneg %p176
    // Predicated region
    $region29: #{rescrc_forward.3} parent=5 // pred_check
      _
    $region30: #{rescrc_forward.3} parent=5 // pred_check_branch
      %179 = sbr.rel (%p176) target = $region32
    $region31: #{rescrc_forward.3} parent=5 // pred_region
      %s180 = ssub.s32 %s9, 1
      %p181 = pneg %p42
      %p182 = pneg %p39
      %s183 = smul.u32 32, %s19
      %p184 = scmp.lt.s32.totalorder %s18, 1
      %s185 = scalar_select %p184, %s18, 1
      %p186 = scmp.lt.s32.totalorder %s183, 31
      %s187 = scalar_select %p186, %s183, 31
      %s188 = smul.addr %s185, 864
      %s189 = sadd.s32 %s187, %s188
      %s190 = smul.addr %s189, 8
      %s191 = scalar_lea.vmem %s1, %s190
      %p192 = pneg %p70
      %p193 = pneg %p67
      %s194 = smul.u32 32, %s19
      %p195 = scmp.lt.s32.totalorder %s18, 1
      %s196 = scalar_select %p195, %s18, 1
      %p197 = scmp.lt.s32.totalorder %s194, 31
      %s198 = scalar_select %p197, %s194, 31
      %s199 = smul.addr %s196, 32
      %s200 = sadd.s32 %s198, %s199
      %s201 = smul.addr %s200, 8
      %s202 = scalar_lea.vmem %s2, %s201
      %p203 = pneg %p98
      %p204 = pneg %p95
      %p205 = pneg %p126
      %p206 = pneg %p123
      %s207 = smul.u32 32, %s19
      %p208 = scmp.lt.s32.totalorder %s18, 1
      %s209 = scalar_select %p208, %s18, 1
      %p210 = scmp.lt.s32.totalorder %s207, 31
      %s211 = scalar_select %p210, %s207, 31
      %s212 = smul.addr %s209, 32
      %s213 = sadd.s32 %s211, %s212
      %s214 = smul.addr %s213, 8
      %s215 = scalar_lea.vmem %s3, %s214
      %s216 = smul.u32 32, %s19
      %p217 = scmp.lt.s32.totalorder %s18, 1
      %s218 = scalar_select %p217, %s18, 1
      %p219 = scmp.lt.s32.totalorder %s216, 31
      %s220 = scalar_select %p219, %s216, 31
      %s221 = smul.addr %s218, 864
      %s222 = sadd.s32 %s220, %s221
      %s223 = smul.addr %s222, 8
      %s224 = scalar_lea.vmem %s1, %s223
      %s225 = smul.u32 32, %s19
      %s226 = smul.u32 32, %s19
      %p227 = scmp.lt.s32.totalorder %s18, 1
      %s228 = scalar_select %p227, %s18, 1
      %p229 = scmp.lt.s32.totalorder %s226, 31
      %s230 = scalar_select %p229, %s226, 31
      %s231 = smul.addr %s228, 32
      %s232 = sadd.s32 %s230, %s231
      %s233 = smul.addr %s232, 8
      %s234 = scalar_lea.vmem %s2, %s233
      %s235 = smul.u32 32, %s19
      %s236 = smul.u32 32, %s19
      %p237 = scmp.lt.s32.totalorder %s18, 1
      %s238 = scalar_select %p237, %s18, 1
      %p239 = scmp.lt.s32.totalorder %s236, 31
      %s240 = scalar_select %p239, %s236, 31
      %s241 = smul.addr %s238, 32
      %s242 = sadd.s32 %s240, %s241
      %s243 = smul.addr %s242, 8
      %s244 = scalar_lea.vmem %s3, %s243
      %s245 = smul.u32 32, %s19
      %v246 = vld [vmem:[%s0] sm:$0xff]
      %v247 = vld [vmem:[%s0 + $0x8] sm:$0xff]
      %v248 = vld [vmem:[%s224] sm:$0xff]
      %v249 = vld [vmem:[%s224 + $0x8] sm:$0xff]
      %v250 = vld [vmem:[%s224 + $0x10] sm:$0xff]
      %v251 = vld [vmem:[%s224 + $0x18] sm:$0xff]
      %v252 = vld [vmem:[%s224 + $0x20] sm:$0xff]
      %v253 = vld [vmem:[%s224 + $0x28] sm:$0xff]
      %v254 = vld [vmem:[%s224 + $0x30] sm:$0xff]
      %v255 = vld [vmem:[%s224 + $0x38] sm:$0xff]
      %v256 = vld [vmem:[%s224 + $0x40] sm:$0xff]
      %v257 = vld [vmem:[%s224 + $0x48] sm:$0xff]
      %v258 = vld [vmem:[%s224 + $0x50] sm:$0xff]
      %v259 = vld [vmem:[%s224 + $0x58] sm:$0xff]
      %v260 = vld [vmem:[%s224 + $0x60] sm:$0xff]
      %v261 = vld [vmem:[%s224 + $0x68] sm:$0xff]
      %v262 = vld [vmem:[%s224 + $0x70] sm:$0xff]
      %v263 = vld [vmem:[%s224 + $0x78] sm:$0xff]
      %v264 = vld [vmem:[%s224 + $0x80] sm:$0xff]
      %v265 = vld [vmem:[%s224 + $0x88] sm:$0xff]
      %v266 = vld [vmem:[%s224 + $0x90] sm:$0xff]
      %v267 = vld [vmem:[%s224 + $0x98] sm:$0xff]
      %v268 = vld [vmem:[%s224 + $0xa0] sm:$0xff]
      %v269 = vld [vmem:[%s224 + $0xa8] sm:$0xff]
      %v270 = vld [vmem:[%s224 + $0xb0] sm:$0xff]
      %v271 = vld [vmem:[%s224 + $0xb8] sm:$0xff]
      %v272 = vld [vmem:[%s224 + $0xc0] sm:$0xff]
      %v273 = vld [vmem:[%s224 + $0xc8] sm:$0xff]
      %v274 = vld [vmem:[%s224 + $0xd0] sm:$0xff]
      %v275 = vld [vmem:[%s224 + $0xd8] sm:$0xff]
      %v276 = vld [vmem:[%s224 + $0xe0] sm:$0xff]
      %v277 = vld [vmem:[%s224 + $0xe8] sm:$0xff]
      %v278 = vld [vmem:[%s224 + $0xf0] sm:$0xff]
      %v279 = vld [vmem:[%s224 + $0xf8] sm:$0xff]
      %v280 = vld [vmem:[%s224 + $0x100] sm:$0xff]
      %v281 = vld [vmem:[%s224 + $0x108] sm:$0xff]
      %v282 = vld [vmem:[%s224 + $0x110] sm:$0xff]
      %v283 = vld [vmem:[%s224 + $0x118] sm:$0xff]
      %v284 = vld [vmem:[%s224 + $0x120] sm:$0xff]
      %v285 = vld [vmem:[%s224 + $0x128] sm:$0xff]
      %v286 = vld [vmem:[%s224 + $0x130] sm:$0xff]
      %v287 = vld [vmem:[%s224 + $0x138] sm:$0xff]
      %v288 = vld [vmem:[%s224 + $0x140] sm:$0xff]
      %v289 = vld [vmem:[%s224 + $0x148] sm:$0xff]
      %v290 = vld [vmem:[%s224 + $0x150] sm:$0xff]
      %v291 = vld [vmem:[%s224 + $0x158] sm:$0xff]
      %v292 = vld [vmem:[%s224 + $0x160] sm:$0xff]
      %v293 = vld [vmem:[%s224 + $0x168] sm:$0xff]
      %v294 = vld [vmem:[%s224 + $0x170] sm:$0xff]
      %v295 = vld [vmem:[%s224 + $0x178] sm:$0xff]
      %v296 = vld [vmem:[%s224 + $0x180] sm:$0xff]
      %v297 = vld [vmem:[%s224 + $0x188] sm:$0xff]
      %v298 = vld [vmem:[%s224 + $0x190] sm:$0xff]
      %v299 = vld [vmem:[%s224 + $0x198] sm:$0xff]
      %v300 = vld [vmem:[%s224 + $0x1a0] sm:$0xff]
      %v301 = vld [vmem:[%s224 + $0x1a8] sm:$0xff]
      %v302 = vld [vmem:[%s224 + $0x1b0] sm:$0xff]
      %v303 = vld [vmem:[%s224 + $0x1b8] sm:$0xff]
      %v304 = vld [vmem:[%s224 + $0x1c0] sm:$0xff]
      %v305 = vld [vmem:[%s224 + $0x1c8] sm:$0xff]
      %v306 = vld [vmem:[%s224 + $0x1d0] sm:$0xff]
      %v307 = vld [vmem:[%s224 + $0x1d8] sm:$0xff]
      %v308 = vld [vmem:[%s224 + $0x1e0] sm:$0xff]
      %v309 = vld [vmem:[%s224 + $0x1e8] sm:$0xff]
      %v310 = vld [vmem:[%s224 + $0x1f0] sm:$0xff]
      %v311 = vld [vmem:[%s224 + $0x1f8] sm:$0xff]
      %v312 = vld [vmem:[%s224 + $0x200] sm:$0xff]
      %v313 = vld [vmem:[%s224 + $0x208] sm:$0xff]
      %v314 = vld [vmem:[%s224 + $0x210] sm:$0xff]
      %v315 = vld [vmem:[%s224 + $0x218] sm:$0xff]
      %v316 = vld [vmem:[%s224 + $0x220] sm:$0xff]
      %v317 = vld [vmem:[%s224 + $0x228] sm:$0xff]
      %v318 = vld [vmem:[%s224 + $0x230] sm:$0xff]
      %v319 = vld [vmem:[%s224 + $0x238] sm:$0xff]
      %v320 = vld [vmem:[%s224 + $0x240] sm:$0xff]
      %v321 = vld [vmem:[%s224 + $0x248] sm:$0xff]
      %v322 = vld [vmem:[%s224 + $0x250] sm:$0xff]
      %v323 = vld [vmem:[%s224 + $0x258] sm:$0xff]
      %v324 = vld [vmem:[%s224 + $0x260] sm:$0xff]
      %v325 = vld [vmem:[%s224 + $0x268] sm:$0xff]
      %v326 = vld [vmem:[%s224 + $0x270] sm:$0xff]
      %v327 = vld [vmem:[%s224 + $0x278] sm:$0xff]
      %v328 = vld [vmem:[%s224 + $0x280] sm:$0xff]
      %v329 = vld [vmem:[%s224 + $0x288] sm:$0xff]
      %v330 = vld [vmem:[%s224 + $0x290] sm:$0xff]
      %v331 = vld [vmem:[%s224 + $0x298] sm:$0xff]
      %v332 = vld [vmem:[%s224 + $0x2a0] sm:$0xff]
      %v333 = vld [vmem:[%s224 + $0x2a8] sm:$0xff]
      %v334 = vld [vmem:[%s224 + $0x2b0] sm:$0xff]
      %v335 = vld [vmem:[%s224 + $0x2b8] sm:$0xff]
      %v336 = vld [vmem:[%s224 + $0x2c0] sm:$0xff]
      %v337 = vld [vmem:[%s224 + $0x2c8] sm:$0xff]
      %v338 = vld [vmem:[%s224 + $0x2d0] sm:$0xff]
      %v339 = vld [vmem:[%s224 + $0x2d8] sm:$0xff]
      %v340 = vld [vmem:[%s224 + $0x2e0] sm:$0xff]
      %v341 = vld [vmem:[%s224 + $0x2e8] sm:$0xff]
      %v342 = vld [vmem:[%s224 + $0x2f0] sm:$0xff]
      %v343 = vld [vmem:[%s224 + $0x2f8] sm:$0xff]
      %v344 = vld [vmem:[%s224 + $0x300] sm:$0xff]
      %v345 = vld [vmem:[%s224 + $0x308] sm:$0xff]
      %v346 = vld [vmem:[%s224 + $0x310] sm:$0xff]
      %v347 = vld [vmem:[%s224 + $0x318] sm:$0xff]
      %v348 = vld [vmem:[%s224 + $0x320] sm:$0xff]
      %v349 = vld [vmem:[%s224 + $0x328] sm:$0xff]
      %v350 = vld [vmem:[%s224 + $0x330] sm:$0xff]
      %v351 = vld [vmem:[%s224 + $0x338] sm:$0xff]
      %v352 = vld [vmem:[%s224 + $0x340] sm:$0xff]
      %v353 = vld [vmem:[%s224 + $0x348] sm:$0xff]
      %v354 = vld [vmem:[%s224 + $0x350] sm:$0xff]
      %v355 = vld [vmem:[%s224 + $0x358] sm:$0xff]
      %v356 = vld [vmem:[%s224 + $0x360] sm:$0xff]
      %v357 = vld [vmem:[%s224 + $0x368] sm:$0xff]
      %v358 = vld [vmem:[%s224 + $0x370] sm:$0xff]
      %v359 = vld [vmem:[%s224 + $0x378] sm:$0xff]
      %v360 = vld [vmem:[%s224 + $0x380] sm:$0xff]
      %v361 = vld [vmem:[%s224 + $0x388] sm:$0xff]
      %v362 = vld [vmem:[%s224 + $0x390] sm:$0xff]
      %v363 = vld [vmem:[%s224 + $0x398] sm:$0xff]
      %v364 = vld [vmem:[%s224 + $0x3a0] sm:$0xff]
      %v365 = vld [vmem:[%s224 + $0x3a8] sm:$0xff]
      %v366 = vld [vmem:[%s224 + $0x3b0] sm:$0xff]
      %v367 = vld [vmem:[%s224 + $0x3b8] sm:$0xff]
      %v368 = vld [vmem:[%s224 + $0x3c0] sm:$0xff]
      %v369 = vld [vmem:[%s224 + $0x3c8] sm:$0xff]
      %v370 = vld [vmem:[%s224 + $0x3d0] sm:$0xff]
      %v371 = vld [vmem:[%s224 + $0x3d8] sm:$0xff]
      %v372 = vld [vmem:[%s224 + $0x3e0] sm:$0xff]
      %v373 = vld [vmem:[%s224 + $0x3e8] sm:$0xff]
      %v374 = vld [vmem:[%s224 + $0x3f0] sm:$0xff]
      %v375 = vld [vmem:[%s224 + $0x3f8] sm:$0xff]
      %v376 = vld [vmem:[%s224 + $0x400] sm:$0xff]
      %v377 = vld [vmem:[%s224 + $0x408] sm:$0xff]
      %v378 = vld [vmem:[%s224 + $0x410] sm:$0xff]
      %v379 = vld [vmem:[%s224 + $0x418] sm:$0xff]
      %v380 = vld [vmem:[%s224 + $0x420] sm:$0xff]
      %v381 = vld [vmem:[%s224 + $0x428] sm:$0xff]
      %v382 = vld [vmem:[%s224 + $0x430] sm:$0xff]
      %v383 = vld [vmem:[%s224 + $0x438] sm:$0xff]
      %v384 = vld [vmem:[%s224 + $0x440] sm:$0xff]
      %v385 = vld [vmem:[%s224 + $0x448] sm:$0xff]
      %v386 = vld [vmem:[%s224 + $0x450] sm:$0xff]
      %v387 = vld [vmem:[%s224 + $0x458] sm:$0xff]
      %v388 = vld [vmem:[%s224 + $0x460] sm:$0xff]
      %v389 = vld [vmem:[%s224 + $0x468] sm:$0xff]
      %v390 = vld [vmem:[%s224 + $0x470] sm:$0xff]
      %v391 = vld [vmem:[%s224 + $0x478] sm:$0xff]
      %v392 = vld [vmem:[%s224 + $0x480] sm:$0xff]
      %v393 = vld [vmem:[%s224 + $0x488] sm:$0xff]
      %v394 = vld [vmem:[%s224 + $0x490] sm:$0xff]
      %v395 = vld [vmem:[%s224 + $0x498] sm:$0xff]
      %v396 = vld [vmem:[%s224 + $0x4a0] sm:$0xff]
      %v397 = vld [vmem:[%s224 + $0x4a8] sm:$0xff]
      %v398 = vld [vmem:[%s224 + $0x4b0] sm:$0xff]
      %v399 = vld [vmem:[%s224 + $0x4b8] sm:$0xff]
      %v400 = vld [vmem:[%s224 + $0x4c0] sm:$0xff]
      %v401 = vld [vmem:[%s224 + $0x4c8] sm:$0xff]
      %v402 = vld [vmem:[%s224 + $0x4d0] sm:$0xff]
      %v403 = vld [vmem:[%s224 + $0x4d8] sm:$0xff]
      %v404 = vld [vmem:[%s224 + $0x4e0] sm:$0xff]
      %v405 = vld [vmem:[%s224 + $0x4e8] sm:$0xff]
      %v406 = vld [vmem:[%s224 + $0x4f0] sm:$0xff]
      %v407 = vld [vmem:[%s224 + $0x4f8] sm:$0xff]
      %v408 = vld [vmem:[%s224 + $0x500] sm:$0xff]
      %v409 = vld [vmem:[%s224 + $0x508] sm:$0xff]
      %v410 = vld [vmem:[%s224 + $0x510] sm:$0xff]
      %v411 = vld [vmem:[%s224 + $0x518] sm:$0xff]
      %v412 = vld [vmem:[%s224 + $0x520] sm:$0xff]
      %v413 = vld [vmem:[%s224 + $0x528] sm:$0xff]
      %v414 = vld [vmem:[%s224 + $0x530] sm:$0xff]
      %v415 = vld [vmem:[%s224 + $0x538] sm:$0xff]
      %v416 = vld [vmem:[%s224 + $0x540] sm:$0xff]
      %v417 = vld [vmem:[%s224 + $0x548] sm:$0xff]
      %v418 = vld [vmem:[%s224 + $0x550] sm:$0xff]
      %v419 = vld [vmem:[%s224 + $0x558] sm:$0xff]
      %v420 = vld [vmem:[%s224 + $0x560] sm:$0xff]
      %v421 = vld [vmem:[%s224 + $0x568] sm:$0xff]
      %v422 = vld [vmem:[%s224 + $0x570] sm:$0xff]
      %v423 = vld [vmem:[%s224 + $0x578] sm:$0xff]
      %v424 = vld [vmem:[%s224 + $0x580] sm:$0xff]
      %v425 = vld [vmem:[%s224 + $0x588] sm:$0xff]
      %v426 = vld [vmem:[%s224 + $0x590] sm:$0xff]
      %v427 = vld [vmem:[%s224 + $0x598] sm:$0xff]
      %v428 = vld [vmem:[%s224 + $0x5a0] sm:$0xff]
      %v429 = vld [vmem:[%s224 + $0x5a8] sm:$0xff]
      %v430 = vld [vmem:[%s224 + $0x5b0] sm:$0xff]
      %v431 = vld [vmem:[%s224 + $0x5b8] sm:$0xff]
      %v432 = vld [vmem:[%s224 + $0x5c0] sm:$0xff]
      %v433 = vld [vmem:[%s224 + $0x5c8] sm:$0xff]
      %v434 = vld [vmem:[%s224 + $0x5d0] sm:$0xff]
      %v435 = vld [vmem:[%s224 + $0x5d8] sm:$0xff]
      %v436 = vld [vmem:[%s224 + $0x5e0] sm:$0xff]
      %v437 = vld [vmem:[%s224 + $0x5e8] sm:$0xff]
      %v438 = vld [vmem:[%s224 + $0x5f0] sm:$0xff]
      %v439 = vld [vmem:[%s224 + $0x5f8] sm:$0xff]
      %v440 = vld [vmem:[%s224 + $0x600] sm:$0xff]
      %v441 = vld [vmem:[%s224 + $0x608] sm:$0xff]
      %v442 = vld [vmem:[%s224 + $0x610] sm:$0xff]
      %v443 = vld [vmem:[%s224 + $0x618] sm:$0xff]
      %v444 = vld [vmem:[%s224 + $0x620] sm:$0xff]
      %v445 = vld [vmem:[%s224 + $0x628] sm:$0xff]
      %v446 = vld [vmem:[%s224 + $0x630] sm:$0xff]
      %v447 = vld [vmem:[%s224 + $0x638] sm:$0xff]
      %v448 = vld [vmem:[%s224 + $0x640] sm:$0xff]
      %v449 = vld [vmem:[%s224 + $0x648] sm:$0xff]
      %v450 = vld [vmem:[%s224 + $0x650] sm:$0xff]
      %v451 = vld [vmem:[%s224 + $0x658] sm:$0xff]
      %v452 = vld [vmem:[%s224 + $0x660] sm:$0xff]
      %v453 = vld [vmem:[%s224 + $0x668] sm:$0xff]
      %v454 = vld [vmem:[%s224 + $0x670] sm:$0xff]
      %v455 = vld [vmem:[%s224 + $0x678] sm:$0xff]
      %v456 = vld [vmem:[%s224 + $0x680] sm:$0xff]
      %v457 = vld [vmem:[%s224 + $0x688] sm:$0xff]
      %v458 = vld [vmem:[%s224 + $0x690] sm:$0xff]
      %v459 = vld [vmem:[%s224 + $0x698] sm:$0xff]
      %v460 = vld [vmem:[%s224 + $0x6a0] sm:$0xff]
      %v461 = vld [vmem:[%s224 + $0x6a8] sm:$0xff]
      %v462 = vld [vmem:[%s224 + $0x6b0] sm:$0xff]
      %v463 = vld [vmem:[%s224 + $0x6b8] sm:$0xff]
      %v464 = vld [vmem:[%s224 + $0x6c0] sm:$0xff]
      %v465 = vld [vmem:[%s224 + $0x6c8] sm:$0xff]
      %v466 = vld [vmem:[%s224 + $0x6d0] sm:$0xff]
      %v467 = vld [vmem:[%s224 + $0x6d8] sm:$0xff]
      %v468 = vld [vmem:[%s224 + $0x6e0] sm:$0xff]
      %v469 = vld [vmem:[%s224 + $0x6e8] sm:$0xff]
      %v470 = vld [vmem:[%s224 + $0x6f0] sm:$0xff]
      %v471 = vld [vmem:[%s224 + $0x6f8] sm:$0xff]
      %v472 = vld [vmem:[%s224 + $0x700] sm:$0xff]
      %v473 = vld [vmem:[%s224 + $0x708] sm:$0xff]
      %v474 = vld [vmem:[%s224 + $0x710] sm:$0xff]
      %v475 = vld [vmem:[%s224 + $0x718] sm:$0xff]
      %v476 = vld [vmem:[%s224 + $0x720] sm:$0xff]
      %v477 = vld [vmem:[%s224 + $0x728] sm:$0xff]
      %v478 = vld [vmem:[%s224 + $0x730] sm:$0xff]
      %v479 = vld [vmem:[%s224 + $0x738] sm:$0xff]
      %v480 = vld [vmem:[%s224 + $0x740] sm:$0xff]
      %v481 = vld [vmem:[%s224 + $0x748] sm:$0xff]
      %v482 = vld [vmem:[%s224 + $0x750] sm:$0xff]
      %v483 = vld [vmem:[%s224 + $0x758] sm:$0xff]
      %v484 = vld [vmem:[%s224 + $0x760] sm:$0xff]
      %v485 = vld [vmem:[%s224 + $0x768] sm:$0xff]
      %v486 = vld [vmem:[%s224 + $0x770] sm:$0xff]
      %v487 = vld [vmem:[%s224 + $0x778] sm:$0xff]
      %v488 = vld [vmem:[%s224 + $0x780] sm:$0xff]
      %v489 = vld [vmem:[%s224 + $0x788] sm:$0xff]
      %v490 = vld [vmem:[%s224 + $0x790] sm:$0xff]
      %v491 = vld [vmem:[%s224 + $0x798] sm:$0xff]
      %v492 = vld [vmem:[%s224 + $0x7a0] sm:$0xff]
      %v493 = vld [vmem:[%s224 + $0x7a8] sm:$0xff]
      %v494 = vld [vmem:[%s224 + $0x7b0] sm:$0xff]
      %v495 = vld [vmem:[%s224 + $0x7b8] sm:$0xff]
      %v496 = vld [vmem:[%s224 + $0x7c0] sm:$0xff]
      %v497 = vld [vmem:[%s224 + $0x7c8] sm:$0xff]
      %v498 = vld [vmem:[%s224 + $0x7d0] sm:$0xff]
      %v499 = vld [vmem:[%s224 + $0x7d8] sm:$0xff]
      %v500 = vld [vmem:[%s224 + $0x7e0] sm:$0xff]
      %v501 = vld [vmem:[%s224 + $0x7e8] sm:$0xff]
      %v502 = vld [vmem:[%s224 + $0x7f0] sm:$0xff]
      %v503 = vld [vmem:[%s224 + $0x7f8] sm:$0xff]
      %v504 = vld [vmem:[%s224 + $0x800] sm:$0xff]
      %v505 = vld [vmem:[%s224 + $0x808] sm:$0xff]
      %v506 = vld [vmem:[%s224 + $0x810] sm:$0xff]
      %v507 = vld [vmem:[%s224 + $0x818] sm:$0xff]
      %v508 = vld [vmem:[%s224 + $0x820] sm:$0xff]
      %v509 = vld [vmem:[%s224 + $0x828] sm:$0xff]
      %v510 = vld [vmem:[%s224 + $0x830] sm:$0xff]
      %v511 = vld [vmem:[%s224 + $0x838] sm:$0xff]
      %v512 = vld [vmem:[%s224 + $0x840] sm:$0xff]
      %v513 = vld [vmem:[%s224 + $0x848] sm:$0xff]
      %v514 = vld [vmem:[%s224 + $0x850] sm:$0xff]
      %v515 = vld [vmem:[%s224 + $0x858] sm:$0xff]
      %v516 = vld [vmem:[%s224 + $0x860] sm:$0xff]
      %v517 = vld [vmem:[%s224 + $0x868] sm:$0xff]
      %v518 = vld [vmem:[%s224 + $0x870] sm:$0xff]
      %v519 = vld [vmem:[%s224 + $0x878] sm:$0xff]
      %v520 = vld [vmem:[%s224 + $0x880] sm:$0xff]
      %v521 = vld [vmem:[%s224 + $0x888] sm:$0xff]
      %v522 = vld [vmem:[%s224 + $0x890] sm:$0xff]
      %v523 = vld [vmem:[%s224 + $0x898] sm:$0xff]
      %v524 = vld [vmem:[%s224 + $0x8a0] sm:$0xff]
      %v525 = vld [vmem:[%s224 + $0x8a8] sm:$0xff]
      %v526 = vld [vmem:[%s224 + $0x8b0] sm:$0xff]
      %v527 = vld [vmem:[%s224 + $0x8b8] sm:$0xff]
      %v528 = vld [vmem:[%s224 + $0x8c0] sm:$0xff]
      %v529 = vld [vmem:[%s224 + $0x8c8] sm:$0xff]
      %v530 = vld [vmem:[%s224 + $0x8d0] sm:$0xff]
      %v531 = vld [vmem:[%s224 + $0x8d8] sm:$0xff]
      %v532 = vld [vmem:[%s224 + $0x8e0] sm:$0xff]
      %v533 = vld [vmem:[%s224 + $0x8e8] sm:$0xff]
      %v534 = vld [vmem:[%s224 + $0x8f0] sm:$0xff]
      %v535 = vld [vmem:[%s224 + $0x8f8] sm:$0xff]
      %v536 = vld [vmem:[%s224 + $0x900] sm:$0xff]
      %v537 = vld [vmem:[%s224 + $0x908] sm:$0xff]
      %v538 = vld [vmem:[%s224 + $0x910] sm:$0xff]
      %v539 = vld [vmem:[%s224 + $0x918] sm:$0xff]
      %v540 = vld [vmem:[%s224 + $0x920] sm:$0xff]
      %v541 = vld [vmem:[%s224 + $0x928] sm:$0xff]
      %v542 = vld [vmem:[%s224 + $0x930] sm:$0xff]
      %v543 = vld [vmem:[%s224 + $0x938] sm:$0xff]
      %v544 = vld [vmem:[%s224 + $0x940] sm:$0xff]
      %v545 = vld [vmem:[%s224 + $0x948] sm:$0xff]
      %v546 = vld [vmem:[%s224 + $0x950] sm:$0xff]
      %v547 = vld [vmem:[%s224 + $0x958] sm:$0xff]
      %v548 = vld [vmem:[%s224 + $0x960] sm:$0xff]
      %v549 = vld [vmem:[%s224 + $0x968] sm:$0xff]
      %v550 = vld [vmem:[%s224 + $0x970] sm:$0xff]
      %v551 = vld [vmem:[%s224 + $0x978] sm:$0xff]
      %v552 = vld [vmem:[%s224 + $0x980] sm:$0xff]
      %v553 = vld [vmem:[%s224 + $0x988] sm:$0xff]
      %v554 = vld [vmem:[%s224 + $0x990] sm:$0xff]
      %v555 = vld [vmem:[%s224 + $0x998] sm:$0xff]
      %v556 = vld [vmem:[%s224 + $0x9a0] sm:$0xff]
      %v557 = vld [vmem:[%s224 + $0x9a8] sm:$0xff]
      %v558 = vld [vmem:[%s224 + $0x9b0] sm:$0xff]
      %v559 = vld [vmem:[%s224 + $0x9b8] sm:$0xff]
      %v560 = vld [vmem:[%s224 + $0x9c0] sm:$0xff]
      %v561 = vld [vmem:[%s224 + $0x9c8] sm:$0xff]
      %v562 = vld [vmem:[%s224 + $0x9d0] sm:$0xff]
      %v563 = vld [vmem:[%s224 + $0x9d8] sm:$0xff]
      %v564 = vld [vmem:[%s224 + $0x9e0] sm:$0xff]
      %v565 = vld [vmem:[%s224 + $0x9e8] sm:$0xff]
      %v566 = vld [vmem:[%s224 + $0x9f0] sm:$0xff]
      %v567 = vld [vmem:[%s224 + $0x9f8] sm:$0xff]
      %v568 = vld [vmem:[%s224 + $0xa00] sm:$0xff]
      %v569 = vld [vmem:[%s224 + $0xa08] sm:$0xff]
      %v570 = vld [vmem:[%s224 + $0xa10] sm:$0xff]
      %v571 = vld [vmem:[%s224 + $0xa18] sm:$0xff]
      %v572 = vld [vmem:[%s224 + $0xa20] sm:$0xff]
      %v573 = vld [vmem:[%s224 + $0xa28] sm:$0xff]
      %v574 = vld [vmem:[%s224 + $0xa30] sm:$0xff]
      %v575 = vld [vmem:[%s224 + $0xa38] sm:$0xff]
      %v576 = vld [vmem:[%s224 + $0xa40] sm:$0xff]
      %v577 = vld [vmem:[%s224 + $0xa48] sm:$0xff]
      %v578 = vld [vmem:[%s224 + $0xa50] sm:$0xff]
      %v579 = vld [vmem:[%s224 + $0xa58] sm:$0xff]
      %v580 = vld [vmem:[%s224 + $0xa60] sm:$0xff]
      %v581 = vld [vmem:[%s224 + $0xa68] sm:$0xff]
      %v582 = vld [vmem:[%s224 + $0xa70] sm:$0xff]
      %v583 = vld [vmem:[%s224 + $0xa78] sm:$0xff]
      %v584 = vld [vmem:[%s224 + $0xa80] sm:$0xff]
      %v585 = vld [vmem:[%s224 + $0xa88] sm:$0xff]
      %v586 = vld [vmem:[%s224 + $0xa90] sm:$0xff]
      %v587 = vld [vmem:[%s224 + $0xa98] sm:$0xff]
      %v588 = vld [vmem:[%s224 + $0xaa0] sm:$0xff]
      %v589 = vld [vmem:[%s224 + $0xaa8] sm:$0xff]
      %v590 = vld [vmem:[%s224 + $0xab0] sm:$0xff]
      %v591 = vld [vmem:[%s224 + $0xab8] sm:$0xff]
      %v592 = vld [vmem:[%s224 + $0xac0] sm:$0xff]
      %v593 = vld [vmem:[%s224 + $0xac8] sm:$0xff]
      %v594 = vld [vmem:[%s224 + $0xad0] sm:$0xff]
      %v595 = vld [vmem:[%s224 + $0xad8] sm:$0xff]
      %v596 = vld [vmem:[%s224 + $0xae0] sm:$0xff]
      %v597 = vld [vmem:[%s224 + $0xae8] sm:$0xff]
      %v598 = vld [vmem:[%s224 + $0xaf0] sm:$0xff]
      %v599 = vld [vmem:[%s224 + $0xaf8] sm:$0xff]
      %v600 = vld [vmem:[%s224 + $0xb00] sm:$0xff]
      %v601 = vld [vmem:[%s224 + $0xb08] sm:$0xff]
      %v602 = vld [vmem:[%s224 + $0xb10] sm:$0xff]
      %v603 = vld [vmem:[%s224 + $0xb18] sm:$0xff]
      %v604 = vld [vmem:[%s224 + $0xb20] sm:$0xff]
      %v605 = vld [vmem:[%s224 + $0xb28] sm:$0xff]
      %v606 = vld [vmem:[%s224 + $0xb30] sm:$0xff]
      %v607 = vld [vmem:[%s224 + $0xb38] sm:$0xff]
      %v608 = vld [vmem:[%s224 + $0xb40] sm:$0xff]
      %v609 = vld [vmem:[%s224 + $0xb48] sm:$0xff]
      %v610 = vld [vmem:[%s224 + $0xb50] sm:$0xff]
      %v611 = vld [vmem:[%s224 + $0xb58] sm:$0xff]
      %v612 = vld [vmem:[%s224 + $0xb60] sm:$0xff]
      %v613 = vld [vmem:[%s224 + $0xb68] sm:$0xff]
      %v614 = vld [vmem:[%s224 + $0xb70] sm:$0xff]
      %v615 = vld [vmem:[%s224 + $0xb78] sm:$0xff]
      %v616 = vld [vmem:[%s224 + $0xb80] sm:$0xff]
      %v617 = vld [vmem:[%s224 + $0xb88] sm:$0xff]
      %v618 = vld [vmem:[%s224 + $0xb90] sm:$0xff]
      %v619 = vld [vmem:[%s224 + $0xb98] sm:$0xff]
      %v620 = vld [vmem:[%s224 + $0xba0] sm:$0xff]
      %v621 = vld [vmem:[%s224 + $0xba8] sm:$0xff]
      %v622 = vld [vmem:[%s224 + $0xbb0] sm:$0xff]
      %v623 = vld [vmem:[%s224 + $0xbb8] sm:$0xff]
      %v624 = vld [vmem:[%s224 + $0xbc0] sm:$0xff]
      %v625 = vld [vmem:[%s224 + $0xbc8] sm:$0xff]
      %v626 = vld [vmem:[%s224 + $0xbd0] sm:$0xff]
      %v627 = vld [vmem:[%s224 + $0xbd8] sm:$0xff]
      %v628 = vld [vmem:[%s224 + $0xbe0] sm:$0xff]
      %v629 = vld [vmem:[%s224 + $0xbe8] sm:$0xff]
      %v630 = vld [vmem:[%s224 + $0xbf0] sm:$0xff]
      %v631 = vld [vmem:[%s224 + $0xbf8] sm:$0xff]
      %v632 = vld [vmem:[%s224 + $0xc00] sm:$0xff]
      %v633 = vld [vmem:[%s224 + $0xc08] sm:$0xff]
      %v634 = vld [vmem:[%s224 + $0xc10] sm:$0xff]
      %v635 = vld [vmem:[%s224 + $0xc18] sm:$0xff]
      %v636 = vld [vmem:[%s224 + $0xc20] sm:$0xff]
      %v637 = vld [vmem:[%s224 + $0xc28] sm:$0xff]
      %v638 = vld [vmem:[%s224 + $0xc30] sm:$0xff]
      %v639 = vld [vmem:[%s224 + $0xc38] sm:$0xff]
      %v640 = vld [vmem:[%s224 + $0xc40] sm:$0xff]
      %v641 = vld [vmem:[%s224 + $0xc48] sm:$0xff]
      %v642 = vld [vmem:[%s224 + $0xc50] sm:$0xff]
      %v643 = vld [vmem:[%s224 + $0xc58] sm:$0xff]
      %v644 = vld [vmem:[%s224 + $0xc60] sm:$0xff]
      %v645 = vld [vmem:[%s224 + $0xc68] sm:$0xff]
      %v646 = vld [vmem:[%s224 + $0xc70] sm:$0xff]
      %v647 = vld [vmem:[%s224 + $0xc78] sm:$0xff]
      %v648 = vld [vmem:[%s224 + $0xc80] sm:$0xff]
      %v649 = vld [vmem:[%s224 + $0xc88] sm:$0xff]
      %v650 = vld [vmem:[%s224 + $0xc90] sm:$0xff]
      %v651 = vld [vmem:[%s224 + $0xc98] sm:$0xff]
      %v652 = vld [vmem:[%s224 + $0xca0] sm:$0xff]
      %v653 = vld [vmem:[%s224 + $0xca8] sm:$0xff]
      %v654 = vld [vmem:[%s224 + $0xcb0] sm:$0xff]
      %v655 = vld [vmem:[%s224 + $0xcb8] sm:$0xff]
      %v656 = vld [vmem:[%s224 + $0xcc0] sm:$0xff]
      %v657 = vld [vmem:[%s224 + $0xcc8] sm:$0xff]
      %v658 = vld [vmem:[%s224 + $0xcd0] sm:$0xff]
      %v659 = vld [vmem:[%s224 + $0xcd8] sm:$0xff]
      %v660 = vld [vmem:[%s224 + $0xce0] sm:$0xff]
      %v661 = vld [vmem:[%s224 + $0xce8] sm:$0xff]
      %v662 = vld [vmem:[%s224 + $0xcf0] sm:$0xff]
      %v663 = vld [vmem:[%s224 + $0xcf8] sm:$0xff]
      %v664 = vld [vmem:[%s224 + $0xd00] sm:$0xff]
      %v665 = vld [vmem:[%s224 + $0xd08] sm:$0xff]
      %v666 = vld [vmem:[%s224 + $0xd10] sm:$0xff]
      %v667 = vld [vmem:[%s224 + $0xd18] sm:$0xff]
      %v668 = vld [vmem:[%s224 + $0xd20] sm:$0xff]
      %v669 = vld [vmem:[%s224 + $0xd28] sm:$0xff]
      %v670 = vld [vmem:[%s224 + $0xd30] sm:$0xff]
      %v671 = vld [vmem:[%s224 + $0xd38] sm:$0xff]
      %v672 = vld [vmem:[%s224 + $0xd40] sm:$0xff]
      %v673 = vld [vmem:[%s224 + $0xd48] sm:$0xff]
      %v674 = vld [vmem:[%s224 + $0xd50] sm:$0xff]
      %v675 = vld [vmem:[%s224 + $0xd58] sm:$0xff]
      %v676 = vld [vmem:[%s224 + $0xd60] sm:$0xff]
      %v677 = vld [vmem:[%s224 + $0xd68] sm:$0xff]
      %v678 = vld [vmem:[%s224 + $0xd70] sm:$0xff]
      %v679 = vld [vmem:[%s224 + $0xd78] sm:$0xff]
      %v680 = vld [vmem:[%s224 + $0xd80] sm:$0xff]
      %v681 = vld [vmem:[%s224 + $0xd88] sm:$0xff]
      %v682 = vld [vmem:[%s224 + $0xd90] sm:$0xff]
      %v683 = vld [vmem:[%s224 + $0xd98] sm:$0xff]
      %v684 = vld [vmem:[%s224 + $0xda0] sm:$0xff]
      %v685 = vld [vmem:[%s224 + $0xda8] sm:$0xff]
      %v686 = vld [vmem:[%s224 + $0xdb0] sm:$0xff]
      %v687 = vld [vmem:[%s224 + $0xdb8] sm:$0xff]
      %v688 = vld [vmem:[%s224 + $0xdc0] sm:$0xff]
      %v689 = vld [vmem:[%s224 + $0xdc8] sm:$0xff]
      %v690 = vld [vmem:[%s224 + $0xdd0] sm:$0xff]
      %v691 = vld [vmem:[%s224 + $0xdd8] sm:$0xff]
      %v692 = vld [vmem:[%s224 + $0xde0] sm:$0xff]
      %v693 = vld [vmem:[%s224 + $0xde8] sm:$0xff]
      %v694 = vld [vmem:[%s224 + $0xdf0] sm:$0xff]
      %v695 = vld [vmem:[%s224 + $0xdf8] sm:$0xff]
      %v696 = vld [vmem:[%s224 + $0xe00] sm:$0xff]
      %v697 = vld [vmem:[%s224 + $0xe08] sm:$0xff]
      %v698 = vld [vmem:[%s224 + $0xe10] sm:$0xff]
      %v699 = vld [vmem:[%s224 + $0xe18] sm:$0xff]
      %v700 = vld [vmem:[%s224 + $0xe20] sm:$0xff]
      %v701 = vld [vmem:[%s224 + $0xe28] sm:$0xff]
      %v702 = vld [vmem:[%s224 + $0xe30] sm:$0xff]
      %v703 = vld [vmem:[%s224 + $0xe38] sm:$0xff]
      %v704 = vld [vmem:[%s224 + $0xe40] sm:$0xff]
      %v705 = vld [vmem:[%s224 + $0xe48] sm:$0xff]
      %v706 = vld [vmem:[%s224 + $0xe50] sm:$0xff]
      %v707 = vld [vmem:[%s224 + $0xe58] sm:$0xff]
      %v708 = vld [vmem:[%s224 + $0xe60] sm:$0xff]
      %v709 = vld [vmem:[%s224 + $0xe68] sm:$0xff]
      %v710 = vld [vmem:[%s224 + $0xe70] sm:$0xff]
      %v711 = vld [vmem:[%s224 + $0xe78] sm:$0xff]
      %v712 = vld [vmem:[%s224 + $0xe80] sm:$0xff]
      %v713 = vld [vmem:[%s224 + $0xe88] sm:$0xff]
      %v714 = vld [vmem:[%s224 + $0xe90] sm:$0xff]
      %v715 = vld [vmem:[%s224 + $0xe98] sm:$0xff]
      %v716 = vld [vmem:[%s224 + $0xea0] sm:$0xff]
      %v717 = vld [vmem:[%s224 + $0xea8] sm:$0xff]
      %v718 = vld [vmem:[%s224 + $0xeb0] sm:$0xff]
      %v719 = vld [vmem:[%s224 + $0xeb8] sm:$0xff]
      %v720 = vld [vmem:[%s224 + $0xec0] sm:$0xff]
      %v721 = vld [vmem:[%s224 + $0xec8] sm:$0xff]
      %v722 = vld [vmem:[%s224 + $0xed0] sm:$0xff]
      %v723 = vld [vmem:[%s224 + $0xed8] sm:$0xff]
      %v724 = vld [vmem:[%s224 + $0xee0] sm:$0xff]
      %v725 = vld [vmem:[%s224 + $0xee8] sm:$0xff]
      %v726 = vld [vmem:[%s224 + $0xef0] sm:$0xff]
      %v727 = vld [vmem:[%s224 + $0xef8] sm:$0xff]
      %v728 = vld [vmem:[%s224 + $0xf00] sm:$0xff]
      %v729 = vld [vmem:[%s224 + $0xf08] sm:$0xff]
      %v730 = vld [vmem:[%s224 + $0xf10] sm:$0xff]
      %v731 = vld [vmem:[%s224 + $0xf18] sm:$0xff]
      %v732 = vld [vmem:[%s224 + $0xf20] sm:$0xff]
      %v733 = vld [vmem:[%s224 + $0xf28] sm:$0xff]
      %v734 = vld [vmem:[%s224 + $0xf30] sm:$0xff]
      %v735 = vld [vmem:[%s224 + $0xf38] sm:$0xff]
      %v736 = vld [vmem:[%s224 + $0xf40] sm:$0xff]
      %v737 = vld [vmem:[%s224 + $0xf48] sm:$0xff]
      %v738 = vld [vmem:[%s224 + $0xf50] sm:$0xff]
      %v739 = vld [vmem:[%s224 + $0xf58] sm:$0xff]
      %v740 = vld [vmem:[%s224 + $0xf60] sm:$0xff]
      %v741 = vld [vmem:[%s224 + $0xf68] sm:$0xff]
      %v742 = vld [vmem:[%s224 + $0xf70] sm:$0xff]
      %v743 = vld [vmem:[%s224 + $0xf78] sm:$0xff]
      %v744 = vld [vmem:[%s224 + $0xf80] sm:$0xff]
      %v745 = vld [vmem:[%s224 + $0xf88] sm:$0xff]
      %v746 = vld [vmem:[%s224 + $0xf90] sm:$0xff]
      %v747 = vld [vmem:[%s224 + $0xf98] sm:$0xff]
      %v748 = vld [vmem:[%s224 + $0xfa0] sm:$0xff]
      %v749 = vld [vmem:[%s224 + $0xfa8] sm:$0xff]
      %v750 = vld [vmem:[%s224 + $0xfb0] sm:$0xff]
      %v751 = vld [vmem:[%s224 + $0xfb8] sm:$0xff]
      %v752 = vld [vmem:[%s224 + $0xfc0] sm:$0xff]
      %v753 = vld [vmem:[%s224 + $0xfc8] sm:$0xff]
      %v754 = vld [vmem:[%s224 + $0xfd0] sm:$0xff]
      %v755 = vld [vmem:[%s224 + $0xfd8] sm:$0xff]
      %v756 = vld [vmem:[%s224 + $0xfe0] sm:$0xff]
      %v757 = vld [vmem:[%s224 + $0xfe8] sm:$0xff]
      %v758 = vld [vmem:[%s224 + $0xff0] sm:$0xff]
      %v759 = vld [vmem:[%s224 + $0xff8] sm:$0xff]
      %v760 = vld [vmem:[%s224 + $0x1000] sm:$0xff]
      %v761 = vld [vmem:[%s224 + $0x1008] sm:$0xff]
      %v762 = vld [vmem:[%s224 + $0x1010] sm:$0xff]
      %v763 = vld [vmem:[%s224 + $0x1018] sm:$0xff]
      %v764 = vld [vmem:[%s224 + $0x1020] sm:$0xff]
      %v765 = vld [vmem:[%s224 + $0x1028] sm:$0xff]
      %v766 = vld [vmem:[%s224 + $0x1030] sm:$0xff]
      %v767 = vld [vmem:[%s224 + $0x1038] sm:$0xff]
      %v768 = vld [vmem:[%s224 + $0x1040] sm:$0xff]
      %v769 = vld [vmem:[%s224 + $0x1048] sm:$0xff]
      %v770 = vld [vmem:[%s224 + $0x1050] sm:$0xff]
      %v771 = vld [vmem:[%s224 + $0x1058] sm:$0xff]
      %v772 = vld [vmem:[%s224 + $0x1060] sm:$0xff]
      %v773 = vld [vmem:[%s224 + $0x1068] sm:$0xff]
      %v774 = vld [vmem:[%s224 + $0x1070] sm:$0xff]
      %v775 = vld [vmem:[%s224 + $0x1078] sm:$0xff]
      %v776 = vld [vmem:[%s224 + $0x1080] sm:$0xff]
      %v777 = vld [vmem:[%s224 + $0x1088] sm:$0xff]
      %v778 = vld [vmem:[%s224 + $0x1090] sm:$0xff]
      %v779 = vld [vmem:[%s224 + $0x1098] sm:$0xff]
      %v780 = vld [vmem:[%s224 + $0x10a0] sm:$0xff]
      %v781 = vld [vmem:[%s224 + $0x10a8] sm:$0xff]
      %v782 = vld [vmem:[%s224 + $0x10b0] sm:$0xff]
      %v783 = vld [vmem:[%s224 + $0x10b8] sm:$0xff]
      %v784 = vld [vmem:[%s224 + $0x10c0] sm:$0xff]
      %v785 = vld [vmem:[%s224 + $0x10c8] sm:$0xff]
      %v786 = vld [vmem:[%s224 + $0x10d0] sm:$0xff]
      %v787 = vld [vmem:[%s224 + $0x10d8] sm:$0xff]
      %v788 = vld [vmem:[%s224 + $0x10e0] sm:$0xff]
      %v789 = vld [vmem:[%s224 + $0x10e8] sm:$0xff]
      %v790 = vld [vmem:[%s224 + $0x10f0] sm:$0xff]
      %v791 = vld [vmem:[%s224 + $0x10f8] sm:$0xff]
      %v792 = vld [vmem:[%s224 + $0x1100] sm:$0xff]
      %v793 = vld [vmem:[%s224 + $0x1108] sm:$0xff]
      %v794 = vld [vmem:[%s224 + $0x1110] sm:$0xff]
      %v795 = vld [vmem:[%s224 + $0x1118] sm:$0xff]
      %v796 = vld [vmem:[%s224 + $0x1120] sm:$0xff]
      %v797 = vld [vmem:[%s224 + $0x1128] sm:$0xff]
      %v798 = vld [vmem:[%s224 + $0x1130] sm:$0xff]
      %v799 = vld [vmem:[%s224 + $0x1138] sm:$0xff]
      %v800 = vld [vmem:[%s224 + $0x1140] sm:$0xff]
      %v801 = vld [vmem:[%s224 + $0x1148] sm:$0xff]
      %v802 = vld [vmem:[%s224 + $0x1150] sm:$0xff]
      %v803 = vld [vmem:[%s224 + $0x1158] sm:$0xff]
      %v804 = vld [vmem:[%s224 + $0x1160] sm:$0xff]
      %v805 = vld [vmem:[%s224 + $0x1168] sm:$0xff]
      %v806 = vld [vmem:[%s224 + $0x1170] sm:$0xff]
      %v807 = vld [vmem:[%s224 + $0x1178] sm:$0xff]
      %v808 = vld [vmem:[%s224 + $0x1180] sm:$0xff]
      %v809 = vld [vmem:[%s224 + $0x1188] sm:$0xff]
      %v810 = vld [vmem:[%s224 + $0x1190] sm:$0xff]
      %v811 = vld [vmem:[%s224 + $0x1198] sm:$0xff]
      %v812 = vld [vmem:[%s224 + $0x11a0] sm:$0xff]
      %v813 = vld [vmem:[%s224 + $0x11a8] sm:$0xff]
      %v814 = vld [vmem:[%s224 + $0x11b0] sm:$0xff]
      %v815 = vld [vmem:[%s224 + $0x11b8] sm:$0xff]
      %v816 = vld [vmem:[%s224 + $0x11c0] sm:$0xff]
      %v817 = vld [vmem:[%s224 + $0x11c8] sm:$0xff]
      %v818 = vld [vmem:[%s224 + $0x11d0] sm:$0xff]
      %v819 = vld [vmem:[%s224 + $0x11d8] sm:$0xff]
      %v820 = vld [vmem:[%s224 + $0x11e0] sm:$0xff]
      %v821 = vld [vmem:[%s224 + $0x11e8] sm:$0xff]
      %v822 = vld [vmem:[%s224 + $0x11f0] sm:$0xff]
      %v823 = vld [vmem:[%s224 + $0x11f8] sm:$0xff]
      %v824 = vld [vmem:[%s224 + $0x1200] sm:$0xff]
      %v825 = vld [vmem:[%s224 + $0x1208] sm:$0xff]
      %v826 = vld [vmem:[%s224 + $0x1210] sm:$0xff]
      %v827 = vld [vmem:[%s224 + $0x1218] sm:$0xff]
      %v828 = vld [vmem:[%s224 + $0x1220] sm:$0xff]
      %v829 = vld [vmem:[%s224 + $0x1228] sm:$0xff]
      %v830 = vld [vmem:[%s224 + $0x1230] sm:$0xff]
      %v831 = vld [vmem:[%s224 + $0x1238] sm:$0xff]
      %v832 = vld [vmem:[%s224 + $0x1240] sm:$0xff]
      %v833 = vld [vmem:[%s224 + $0x1248] sm:$0xff]
      %v834 = vld [vmem:[%s224 + $0x1250] sm:$0xff]
      %v835 = vld [vmem:[%s224 + $0x1258] sm:$0xff]
      %v836 = vld [vmem:[%s224 + $0x1260] sm:$0xff]
      %v837 = vld [vmem:[%s224 + $0x1268] sm:$0xff]
      %v838 = vld [vmem:[%s224 + $0x1270] sm:$0xff]
      %v839 = vld [vmem:[%s224 + $0x1278] sm:$0xff]
      %v840 = vld [vmem:[%s224 + $0x1280] sm:$0xff]
      %v841 = vld [vmem:[%s224 + $0x1288] sm:$0xff]
      %v842 = vld [vmem:[%s224 + $0x1290] sm:$0xff]
      %v843 = vld [vmem:[%s224 + $0x1298] sm:$0xff]
      %v844 = vld [vmem:[%s224 + $0x12a0] sm:$0xff]
      %v845 = vld [vmem:[%s224 + $0x12a8] sm:$0xff]
      %v846 = vld [vmem:[%s224 + $0x12b0] sm:$0xff]
      %v847 = vld [vmem:[%s224 + $0x12b8] sm:$0xff]
      %v848 = vld [vmem:[%s224 + $0x12c0] sm:$0xff]
      %v849 = vld [vmem:[%s224 + $0x12c8] sm:$0xff]
      %v850 = vld [vmem:[%s224 + $0x12d0] sm:$0xff]
      %v851 = vld [vmem:[%s224 + $0x12d8] sm:$0xff]
      %v852 = vld [vmem:[%s224 + $0x12e0] sm:$0xff]
      %v853 = vld [vmem:[%s224 + $0x12e8] sm:$0xff]
      %v854 = vld [vmem:[%s224 + $0x12f0] sm:$0xff]
      %v855 = vld [vmem:[%s224 + $0x12f8] sm:$0xff]
      %v856 = vld [vmem:[%s224 + $0x1300] sm:$0xff]
      %v857 = vld [vmem:[%s224 + $0x1308] sm:$0xff]
      %v858 = vld [vmem:[%s224 + $0x1310] sm:$0xff]
      %v859 = vld [vmem:[%s224 + $0x1318] sm:$0xff]
      %v860 = vld [vmem:[%s224 + $0x1320] sm:$0xff]
      %v861 = vld [vmem:[%s224 + $0x1328] sm:$0xff]
      %v862 = vld [vmem:[%s224 + $0x1330] sm:$0xff]
      %v863 = vld [vmem:[%s224 + $0x1338] sm:$0xff]
      %v864 = vld [vmem:[%s224 + $0x1340] sm:$0xff]
      %v865 = vld [vmem:[%s224 + $0x1348] sm:$0xff]
      %v866 = vld [vmem:[%s224 + $0x1350] sm:$0xff]
      %v867 = vld [vmem:[%s224 + $0x1358] sm:$0xff]
      %v868 = vld [vmem:[%s224 + $0x1360] sm:$0xff]
      %v869 = vld [vmem:[%s224 + $0x1368] sm:$0xff]
      %v870 = vld [vmem:[%s224 + $0x1370] sm:$0xff]
      %v871 = vld [vmem:[%s224 + $0x1378] sm:$0xff]
      %v872 = vld [vmem:[%s224 + $0x1380] sm:$0xff]
      %v873 = vld [vmem:[%s224 + $0x1388] sm:$0xff]
      %v874 = vld [vmem:[%s224 + $0x1390] sm:$0xff]
      %v875 = vld [vmem:[%s224 + $0x1398] sm:$0xff]
      %v876 = vld [vmem:[%s224 + $0x13a0] sm:$0xff]
      %v877 = vld [vmem:[%s224 + $0x13a8] sm:$0xff]
      %v878 = vld [vmem:[%s224 + $0x13b0] sm:$0xff]
      %v879 = vld [vmem:[%s224 + $0x13b8] sm:$0xff]
      %v880 = vld [vmem:[%s224 + $0x13c0] sm:$0xff]
      %v881 = vld [vmem:[%s224 + $0x13c8] sm:$0xff]
      %v882 = vld [vmem:[%s224 + $0x13d0] sm:$0xff]
      %v883 = vld [vmem:[%s224 + $0x13d8] sm:$0xff]
      %v884 = vld [vmem:[%s224 + $0x13e0] sm:$0xff]
      %v885 = vld [vmem:[%s224 + $0x13e8] sm:$0xff]
      %v886 = vld [vmem:[%s224 + $0x13f0] sm:$0xff]
      %v887 = vld [vmem:[%s224 + $0x13f8] sm:$0xff]
      %v888 = vld [vmem:[%s224 + $0x1400] sm:$0xff]
      %v889 = vld [vmem:[%s224 + $0x1408] sm:$0xff]
      %v890 = vld [vmem:[%s224 + $0x1410] sm:$0xff]
      %v891 = vld [vmem:[%s224 + $0x1418] sm:$0xff]
      %v892 = vld [vmem:[%s224 + $0x1420] sm:$0xff]
      %v893 = vld [vmem:[%s224 + $0x1428] sm:$0xff]
      %v894 = vld [vmem:[%s224 + $0x1430] sm:$0xff]
      %v895 = vld [vmem:[%s224 + $0x1438] sm:$0xff]
      %v896 = vld [vmem:[%s224 + $0x1440] sm:$0xff]
      %v897 = vld [vmem:[%s224 + $0x1448] sm:$0xff]
      %v898 = vld [vmem:[%s224 + $0x1450] sm:$0xff]
      %v899 = vld [vmem:[%s224 + $0x1458] sm:$0xff]
      %v900 = vld [vmem:[%s224 + $0x1460] sm:$0xff]
      %v901 = vld [vmem:[%s224 + $0x1468] sm:$0xff]
      %v902 = vld [vmem:[%s224 + $0x1470] sm:$0xff]
      %v903 = vld [vmem:[%s224 + $0x1478] sm:$0xff]
      %v904 = vld [vmem:[%s224 + $0x1480] sm:$0xff]
      %v905 = vld [vmem:[%s224 + $0x1488] sm:$0xff]
      %v906 = vld [vmem:[%s224 + $0x1490] sm:$0xff]
      %v907 = vld [vmem:[%s224 + $0x1498] sm:$0xff]
      %v908 = vld [vmem:[%s224 + $0x14a0] sm:$0xff]
      %v909 = vld [vmem:[%s224 + $0x14a8] sm:$0xff]
      %v910 = vld [vmem:[%s224 + $0x14b0] sm:$0xff]
      %v911 = vld [vmem:[%s224 + $0x14b8] sm:$0xff]
      %v912 = vld [vmem:[%s224 + $0x14c0] sm:$0xff]
      %v913 = vld [vmem:[%s224 + $0x14c8] sm:$0xff]
      %v914 = vld [vmem:[%s224 + $0x14d0] sm:$0xff]
      %v915 = vld [vmem:[%s224 + $0x14d8] sm:$0xff]
      %v916 = vld [vmem:[%s224 + $0x14e0] sm:$0xff]
      %v917 = vld [vmem:[%s224 + $0x14e8] sm:$0xff]
      %v918 = vld [vmem:[%s224 + $0x14f0] sm:$0xff]
      %v919 = vld [vmem:[%s224 + $0x14f8] sm:$0xff]
      %v920 = vld [vmem:[%s224 + $0x1500] sm:$0xff]
      %v921 = vld [vmem:[%s224 + $0x1508] sm:$0xff]
      %v922 = vld [vmem:[%s224 + $0x1510] sm:$0xff]
      %v923 = vld [vmem:[%s224 + $0x1518] sm:$0xff]
      %v924 = vld [vmem:[%s224 + $0x1520] sm:$0xff]
      %v925 = vld [vmem:[%s224 + $0x1528] sm:$0xff]
      %v926 = vld [vmem:[%s224 + $0x1530] sm:$0xff]
      %v927 = vld [vmem:[%s224 + $0x1538] sm:$0xff]
      %v928 = vld [vmem:[%s224 + $0x1540] sm:$0xff]
      %v929 = vld [vmem:[%s224 + $0x1548] sm:$0xff]
      %v930 = vld [vmem:[%s224 + $0x1550] sm:$0xff]
      %v931 = vld [vmem:[%s224 + $0x1558] sm:$0xff]
      %v932 = vld [vmem:[%s224 + $0x1560] sm:$0xff]
      %v933 = vld [vmem:[%s224 + $0x1568] sm:$0xff]
      %v934 = vld [vmem:[%s224 + $0x1570] sm:$0xff]
      %v935 = vld [vmem:[%s224 + $0x1578] sm:$0xff]
      %v936 = vld [vmem:[%s224 + $0x1580] sm:$0xff]
      %v937 = vld [vmem:[%s224 + $0x1588] sm:$0xff]
      %v938 = vld [vmem:[%s224 + $0x1590] sm:$0xff]
      %v939 = vld [vmem:[%s224 + $0x1598] sm:$0xff]
      %v940 = vld [vmem:[%s224 + $0x15a0] sm:$0xff]
      %v941 = vld [vmem:[%s224 + $0x15a8] sm:$0xff]
      %v942 = vld [vmem:[%s224 + $0x15b0] sm:$0xff]
      %v943 = vld [vmem:[%s224 + $0x15b8] sm:$0xff]
      %v944 = vld [vmem:[%s224 + $0x15c0] sm:$0xff]
      %v945 = vld [vmem:[%s224 + $0x15c8] sm:$0xff]
      %v946 = vld [vmem:[%s224 + $0x15d0] sm:$0xff]
      %v947 = vld [vmem:[%s224 + $0x15d8] sm:$0xff]
      %v948 = vld [vmem:[%s224 + $0x15e0] sm:$0xff]
      %v949 = vld [vmem:[%s224 + $0x15e8] sm:$0xff]
      %v950 = vld [vmem:[%s224 + $0x15f0] sm:$0xff]
      %v951 = vld [vmem:[%s224 + $0x15f8] sm:$0xff]
      %v952 = vld [vmem:[%s224 + $0x1600] sm:$0xff]
      %v953 = vld [vmem:[%s224 + $0x1608] sm:$0xff]
      %v954 = vld [vmem:[%s224 + $0x1610] sm:$0xff]
      %v955 = vld [vmem:[%s224 + $0x1618] sm:$0xff]
      %v956 = vld [vmem:[%s224 + $0x1620] sm:$0xff]
      %v957 = vld [vmem:[%s224 + $0x1628] sm:$0xff]
      %v958 = vld [vmem:[%s224 + $0x1630] sm:$0xff]
      %v959 = vld [vmem:[%s224 + $0x1638] sm:$0xff]
      %v960 = vld [vmem:[%s224 + $0x1640] sm:$0xff]
      %v961 = vld [vmem:[%s224 + $0x1648] sm:$0xff]
      %v962 = vld [vmem:[%s224 + $0x1650] sm:$0xff]
      %v963 = vld [vmem:[%s224 + $0x1658] sm:$0xff]
      %v964 = vld [vmem:[%s224 + $0x1660] sm:$0xff]
      %v965 = vld [vmem:[%s224 + $0x1668] sm:$0xff]
      %v966 = vld [vmem:[%s224 + $0x1670] sm:$0xff]
      %v967 = vld [vmem:[%s224 + $0x1678] sm:$0xff]
      %v968 = vld [vmem:[%s224 + $0x1680] sm:$0xff]
      %v969 = vld [vmem:[%s224 + $0x1688] sm:$0xff]
      %v970 = vld [vmem:[%s224 + $0x1690] sm:$0xff]
      %v971 = vld [vmem:[%s224 + $0x1698] sm:$0xff]
      %v972 = vld [vmem:[%s224 + $0x16a0] sm:$0xff]
      %v973 = vld [vmem:[%s224 + $0x16a8] sm:$0xff]
      %v974 = vld [vmem:[%s224 + $0x16b0] sm:$0xff]
      %v975 = vld [vmem:[%s224 + $0x16b8] sm:$0xff]
      %v976 = vld [vmem:[%s224 + $0x16c0] sm:$0xff]
      %v977 = vld [vmem:[%s224 + $0x16c8] sm:$0xff]
      %v978 = vld [vmem:[%s224 + $0x16d0] sm:$0xff]
      %v979 = vld [vmem:[%s224 + $0x16d8] sm:$0xff]
      %v980 = vld [vmem:[%s224 + $0x16e0] sm:$0xff]
      %v981 = vld [vmem:[%s224 + $0x16e8] sm:$0xff]
      %v982 = vld [vmem:[%s224 + $0x16f0] sm:$0xff]
      %v983 = vld [vmem:[%s224 + $0x16f8] sm:$0xff]
      %v984 = vld [vmem:[%s224 + $0x1700] sm:$0xff]
      %v985 = vld [vmem:[%s224 + $0x1708] sm:$0xff]
      %v986 = vld [vmem:[%s224 + $0x1710] sm:$0xff]
      %v987 = vld [vmem:[%s224 + $0x1718] sm:$0xff]
      %v988 = vld [vmem:[%s224 + $0x1720] sm:$0xff]
      %v989 = vld [vmem:[%s224 + $0x1728] sm:$0xff]
      %v990 = vld [vmem:[%s224 + $0x1730] sm:$0xff]
      %v991 = vld [vmem:[%s224 + $0x1738] sm:$0xff]
      %v992 = vld [vmem:[%s224 + $0x1740] sm:$0xff]
      %v993 = vld [vmem:[%s224 + $0x1748] sm:$0xff]
      %v994 = vld [vmem:[%s224 + $0x1750] sm:$0xff]
      %v995 = vld [vmem:[%s224 + $0x1758] sm:$0xff]
      %v996 = vld [vmem:[%s224 + $0x1760] sm:$0xff]
      %v997 = vld [vmem:[%s224 + $0x1768] sm:$0xff]
      %v998 = vld [vmem:[%s224 + $0x1770] sm:$0xff]
      %v999 = vld [vmem:[%s224 + $0x1778] sm:$0xff]
      %v1000 = vld [vmem:[%s224 + $0x1780] sm:$0xff]
      %v1001 = vld [vmem:[%s224 + $0x1788] sm:$0xff]
      %v1002 = vld [vmem:[%s224 + $0x1790] sm:$0xff]
      %v1003 = vld [vmem:[%s224 + $0x1798] sm:$0xff]
      %v1004 = vld [vmem:[%s224 + $0x17a0] sm:$0xff]
      %v1005 = vld [vmem:[%s224 + $0x17a8] sm:$0xff]
      %v1006 = vld [vmem:[%s224 + $0x17b0] sm:$0xff]
      %v1007 = vld [vmem:[%s224 + $0x17b8] sm:$0xff]
      %v1008 = vld [vmem:[%s224 + $0x17c0] sm:$0xff]
      %v1009 = vld [vmem:[%s224 + $0x17c8] sm:$0xff]
      %v1010 = vld [vmem:[%s224 + $0x17d0] sm:$0xff]
      %v1011 = vld [vmem:[%s224 + $0x17d8] sm:$0xff]
      %v1012 = vld [vmem:[%s224 + $0x17e0] sm:$0xff]
      %v1013 = vld [vmem:[%s224 + $0x17e8] sm:$0xff]
      %v1014 = vld [vmem:[%s224 + $0x17f0] sm:$0xff]
      %v1015 = vld [vmem:[%s224 + $0x17f8] sm:$0xff]
      %v1016 = vld [vmem:[%s224 + $0x1800] sm:$0xff]
      %v1017 = vld [vmem:[%s224 + $0x1808] sm:$0xff]
      %v1018 = vld [vmem:[%s224 + $0x1810] sm:$0xff]
      %v1019 = vld [vmem:[%s224 + $0x1818] sm:$0xff]
      %v1020 = vld [vmem:[%s224 + $0x1820] sm:$0xff]
      %v1021 = vld [vmem:[%s224 + $0x1828] sm:$0xff]
      %v1022 = vld [vmem:[%s224 + $0x1830] sm:$0xff]
      %v1023 = vld [vmem:[%s224 + $0x1838] sm:$0xff]
      %v1024 = vld [vmem:[%s224 + $0x1840] sm:$0xff]
      %v1025 = vld [vmem:[%s224 + $0x1848] sm:$0xff]
      %v1026 = vld [vmem:[%s224 + $0x1850] sm:$0xff]
      %v1027 = vld [vmem:[%s224 + $0x1858] sm:$0xff]
      %v1028 = vld [vmem:[%s224 + $0x1860] sm:$0xff]
      %v1029 = vld [vmem:[%s224 + $0x1868] sm:$0xff]
      %v1030 = vld [vmem:[%s224 + $0x1870] sm:$0xff]
      %v1031 = vld [vmem:[%s224 + $0x1878] sm:$0xff]
      %v1032 = vld [vmem:[%s224 + $0x1880] sm:$0xff]
      %v1033 = vld [vmem:[%s224 + $0x1888] sm:$0xff]
      %v1034 = vld [vmem:[%s224 + $0x1890] sm:$0xff]
      %v1035 = vld [vmem:[%s224 + $0x1898] sm:$0xff]
      %v1036 = vld [vmem:[%s224 + $0x18a0] sm:$0xff]
      %v1037 = vld [vmem:[%s224 + $0x18a8] sm:$0xff]
      %v1038 = vld [vmem:[%s224 + $0x18b0] sm:$0xff]
      %v1039 = vld [vmem:[%s224 + $0x18b8] sm:$0xff]
      %v1040 = vld [vmem:[%s224 + $0x18c0] sm:$0xff]
      %v1041 = vld [vmem:[%s224 + $0x18c8] sm:$0xff]
      %v1042 = vld [vmem:[%s224 + $0x18d0] sm:$0xff]
      %v1043 = vld [vmem:[%s224 + $0x18d8] sm:$0xff]
      %v1044 = vld [vmem:[%s224 + $0x18e0] sm:$0xff]
      %v1045 = vld [vmem:[%s224 + $0x18e8] sm:$0xff]
      %v1046 = vld [vmem:[%s224 + $0x18f0] sm:$0xff]
      %v1047 = vld [vmem:[%s224 + $0x18f8] sm:$0xff]
      %v1048 = vld [vmem:[%s224 + $0x1900] sm:$0xff]
      %v1049 = vld [vmem:[%s224 + $0x1908] sm:$0xff]
      %v1050 = vld [vmem:[%s224 + $0x1910] sm:$0xff]
      %v1051 = vld [vmem:[%s224 + $0x1918] sm:$0xff]
      %v1052 = vld [vmem:[%s224 + $0x1920] sm:$0xff]
      %v1053 = vld [vmem:[%s224 + $0x1928] sm:$0xff]
      %v1054 = vld [vmem:[%s224 + $0x1930] sm:$0xff]
      %v1055 = vld [vmem:[%s224 + $0x1938] sm:$0xff]
      %v1056 = vld [vmem:[%s224 + $0x1940] sm:$0xff]
      %v1057 = vld [vmem:[%s224 + $0x1948] sm:$0xff]
      %v1058 = vld [vmem:[%s224 + $0x1950] sm:$0xff]
      %v1059 = vld [vmem:[%s224 + $0x1958] sm:$0xff]
      %v1060 = vld [vmem:[%s224 + $0x1960] sm:$0xff]
      %v1061 = vld [vmem:[%s224 + $0x1968] sm:$0xff]
      %v1062 = vld [vmem:[%s224 + $0x1970] sm:$0xff]
      %v1063 = vld [vmem:[%s224 + $0x1978] sm:$0xff]
      %v1064 = vld [vmem:[%s224 + $0x1980] sm:$0xff]
      %v1065 = vld [vmem:[%s224 + $0x1988] sm:$0xff]
      %v1066 = vld [vmem:[%s224 + $0x1990] sm:$0xff]
      %v1067 = vld [vmem:[%s224 + $0x1998] sm:$0xff]
      %v1068 = vld [vmem:[%s224 + $0x19a0] sm:$0xff]
      %v1069 = vld [vmem:[%s224 + $0x19a8] sm:$0xff]
      %v1070 = vld [vmem:[%s224 + $0x19b0] sm:$0xff]
      %v1071 = vld [vmem:[%s224 + $0x19b8] sm:$0xff]
      %v1072 = vld [vmem:[%s224 + $0x19c0] sm:$0xff]
      %v1073 = vld [vmem:[%s224 + $0x19c8] sm:$0xff]
      %v1074 = vld [vmem:[%s224 + $0x19d0] sm:$0xff]
      %v1075 = vld [vmem:[%s224 + $0x19d8] sm:$0xff]
      %v1076 = vld [vmem:[%s224 + $0x19e0] sm:$0xff]
      %v1077 = vld [vmem:[%s224 + $0x19e8] sm:$0xff]
      %v1078 = vld [vmem:[%s224 + $0x19f0] sm:$0xff]
      %v1079 = vld [vmem:[%s224 + $0x19f8] sm:$0xff]
      %v1080 = vld [vmem:[%s224 + $0x1a00] sm:$0xff]
      %v1081 = vld [vmem:[%s224 + $0x1a08] sm:$0xff]
      %v1082 = vld [vmem:[%s224 + $0x1a10] sm:$0xff]
      %v1083 = vld [vmem:[%s224 + $0x1a18] sm:$0xff]
      %v1084 = vld [vmem:[%s224 + $0x1a20] sm:$0xff]
      %v1085 = vld [vmem:[%s224 + $0x1a28] sm:$0xff]
      %v1086 = vld [vmem:[%s224 + $0x1a30] sm:$0xff]
      %v1087 = vld [vmem:[%s224 + $0x1a38] sm:$0xff]
      %v1088 = vld [vmem:[%s224 + $0x1a40] sm:$0xff]
      %v1089 = vld [vmem:[%s224 + $0x1a48] sm:$0xff]
      %v1090 = vld [vmem:[%s224 + $0x1a50] sm:$0xff]
      %v1091 = vld [vmem:[%s224 + $0x1a58] sm:$0xff]
      %v1092 = vld [vmem:[%s224 + $0x1a60] sm:$0xff]
      %v1093 = vld [vmem:[%s224 + $0x1a68] sm:$0xff]
      %v1094 = vld [vmem:[%s224 + $0x1a70] sm:$0xff]
      %v1095 = vld [vmem:[%s224 + $0x1a78] sm:$0xff]
      %v1096 = vld [vmem:[%s224 + $0x1a80] sm:$0xff]
      %v1097 = vld [vmem:[%s224 + $0x1a88] sm:$0xff]
      %v1098 = vld [vmem:[%s224 + $0x1a90] sm:$0xff]
      %v1099 = vld [vmem:[%s224 + $0x1a98] sm:$0xff]
      %v1100 = vld [vmem:[%s224 + $0x1aa0] sm:$0xff]
      %v1101 = vld [vmem:[%s224 + $0x1aa8] sm:$0xff]
      %v1102 = vld [vmem:[%s224 + $0x1ab0] sm:$0xff]
      %v1103 = vld [vmem:[%s224 + $0x1ab8] sm:$0xff]
      %v1104 = vld [vmem:[%s224 + $0x1ac0] sm:$0xff]
      %v1105 = vld [vmem:[%s224 + $0x1ac8] sm:$0xff]
      %v1106 = vld [vmem:[%s224 + $0x1ad0] sm:$0xff]
      %v1107 = vld [vmem:[%s224 + $0x1ad8] sm:$0xff]
      %v1108 = vld [vmem:[%s224 + $0x1ae0] sm:$0xff]
      %v1109 = vld [vmem:[%s224 + $0x1ae8] sm:$0xff]
      %v1110 = vld [vmem:[%s224 + $0x1af0] sm:$0xff]
      %v1111 = vld [vmem:[%s224 + $0x1af8] sm:$0xff]
      %v1112 = vld [vmem:[%s234] sm:$0xff]
      %v1113 = vld [vmem:[%s234 + $0x8] sm:$0xff]
      %v1114 = vld [vmem:[%s234 + $0x10] sm:$0xff]
      %v1115 = vld [vmem:[%s234 + $0x18] sm:$0xff]
      %v1116 = vld [vmem:[%s234 + $0x20] sm:$0xff]
      %v1117 = vld [vmem:[%s234 + $0x28] sm:$0xff]
      %v1118 = vld [vmem:[%s234 + $0x30] sm:$0xff]
      %v1119 = vld [vmem:[%s234 + $0x38] sm:$0xff]
      %v1120 = vld [vmem:[%s234 + $0x40] sm:$0xff]
      %v1121 = vld [vmem:[%s234 + $0x48] sm:$0xff]
      %v1122 = vld [vmem:[%s234 + $0x50] sm:$0xff]
      %v1123 = vld [vmem:[%s234 + $0x58] sm:$0xff]
      %v1124 = vld [vmem:[%s234 + $0x60] sm:$0xff]
      %v1125 = vld [vmem:[%s234 + $0x68] sm:$0xff]
      %v1126 = vld [vmem:[%s234 + $0x70] sm:$0xff]
      %v1127 = vld [vmem:[%s234 + $0x78] sm:$0xff]
      %v1128 = vld [vmem:[%s234 + $0x80] sm:$0xff]
      %v1129 = vld [vmem:[%s234 + $0x88] sm:$0xff]
      %v1130 = vld [vmem:[%s234 + $0x90] sm:$0xff]
      %v1131 = vld [vmem:[%s234 + $0x98] sm:$0xff]
      %v1132 = vld [vmem:[%s234 + $0xa0] sm:$0xff]
      %v1133 = vld [vmem:[%s234 + $0xa8] sm:$0xff]
      %v1134 = vld [vmem:[%s234 + $0xb0] sm:$0xff]
      %v1135 = vld [vmem:[%s234 + $0xb8] sm:$0xff]
      %v1136 = vld [vmem:[%s234 + $0xc0] sm:$0xff]
      %v1137 = vld [vmem:[%s234 + $0xc8] sm:$0xff]
      %v1138 = vld [vmem:[%s234 + $0xd0] sm:$0xff]
      %v1139 = vld [vmem:[%s234 + $0xd8] sm:$0xff]
      %v1140 = vld [vmem:[%s234 + $0xe0] sm:$0xff]
      %v1141 = vld [vmem:[%s234 + $0xe8] sm:$0xff]
      %v1142 = vld [vmem:[%s234 + $0xf0] sm:$0xff]
      %v1143 = vld [vmem:[%s234 + $0xf8] sm:$0xff]
      %vm1144 = vcmask 719872
      %v1146 = vsel %vm1144, %v247, 0
      %1148 = vmatpush.msra.mxu0 %v728
      %1149 = vmatpush.msra.mxu0 %v696
      %1150 = vmatpush.msra.mxu0 %v664
      %1151 = vmatpush.msra.mxu0 %v632
      %1152 = vmatpush.msra.mxu0 %v600
      %1153 = vmatpush.msra.mxu0 %v568
      %1154 = vmatpush.msra.mxu0 %v536
      %1155 = vmatpush.msra.mxu0 %v504
      %1156 = vmatpush.msra.mxu0 %v472
      %1157 = vmatpush.msra.mxu0 %v440
      %1158 = vmatpush.msra.mxu0 %v408
      %1159 = vmatpush.msra.mxu0 %v376
      %1160 = vmatpush.msra.mxu0 %v344
      %1161 = vmatpush.msra.mxu0 %v312
      %1162 = vmatpush.msra.mxu0 %v280
      %1163 = vmatpush.msra.mxu0 %v248
      %1164 = vmatmul.f32.gmra.mxu0 %v246
      %v1165 = vpop.f32.mrf.mxu0
      %v1166 = vadd.f32 %v1112, %v1165
      %1167 = vdwg.mxu0
      %1168 = vmatpush.msra.mxu0 0.0
      %1169 = vmatpush.msra.mxu0 0.0
      %1170 = vmatpush.msra.mxu0 0.0
      %1171 = vmatpush.msra.mxu0 0.0
      %1172 = vmatpush.msra.mxu0 0.0
      %1173 = vmatpush.msra.mxu0 %v1080
      %1174 = vmatpush.msra.mxu0 %v1048
      %1175 = vmatpush.msra.mxu0 %v1016
      %1176 = vmatpush.msra.mxu0 %v984
      %1177 = vmatpush.msra.mxu0 %v952
      %1178 = vmatpush.msra.mxu0 %v920
      %1179 = vmatpush.msra.mxu0 %v888
      %1180 = vmatpush.msra.mxu0 %v856
      %1181 = vmatpush.msra.mxu0 %v824
      %1182 = vmatpush.msra.mxu0 %v792
      %1183 = vmatpush.msra.mxu0 %v760
      %1184 = vmatmul.f32.gmra.mxu0 %v1146
      %v1185 = vpop.f32.mrf.mxu0
      %v1186 = vadd.f32 %v1166, %v1185
      %1187 = vdwg.mxu0
      %1188 = vmatpush.msra.mxu0 %v729
      %1189 = vmatpush.msra.mxu0 %v697
      %1190 = vmatpush.msra.mxu0 %v665
      %1191 = vmatpush.msra.mxu0 %v633
      %1192 = vmatpush.msra.mxu0 %v601
      %1193 = vmatpush.msra.mxu0 %v569
      %1194 = vmatpush.msra.mxu0 %v537
      %1195 = vmatpush.msra.mxu0 %v505
      %1196 = vmatpush.msra.mxu0 %v473
      %1197 = vmatpush.msra.mxu0 %v441
      %1198 = vmatpush.msra.mxu0 %v409
      %1199 = vmatpush.msra.mxu0 %v377
      %1200 = vmatpush.msra.mxu0 %v345
      %1201 = vmatpush.msra.mxu0 %v313
      %1202 = vmatpush.msra.mxu0 %v281
      %1203 = vmatpush.msra.mxu0 %v249
      %1204 = vmatmul.f32.gmra.mxu0 %v246
      %v1205 = vpop.f32.mrf.mxu0
      %v1206 = vadd.f32 %v1113, %v1205
      %1207 = vdwg.mxu0
      %1208 = vmatpush.msra.mxu0 0.0
      %1209 = vmatpush.msra.mxu0 0.0
      %1210 = vmatpush.msra.mxu0 0.0
      %1211 = vmatpush.msra.mxu0 0.0
      %1212 = vmatpush.msra.mxu0 0.0
      %1213 = vmatpush.msra.mxu0 %v1081
      %1214 = vmatpush.msra.mxu0 %v1049
      %1215 = vmatpush.msra.mxu0 %v1017
      %1216 = vmatpush.msra.mxu0 %v985
      %1217 = vmatpush.msra.mxu0 %v953
      %1218 = vmatpush.msra.mxu0 %v921
      %1219 = vmatpush.msra.mxu0 %v889
      %1220 = vmatpush.msra.mxu0 %v857
      %1221 = vmatpush.msra.mxu0 %v825
      %1222 = vmatpush.msra.mxu0 %v793
      %1223 = vmatpush.msra.mxu0 %v761
      %1224 = vmatmul.f32.gmra.mxu0 %v1146
      %v1225 = vpop.f32.mrf.mxu0
      %v1226 = vadd.f32 %v1206, %v1225
      %1227 = vdwg.mxu0
      %1228 = vmatpush.msra.mxu0 %v730
      %1229 = vmatpush.msra.mxu0 %v698
      %1230 = vmatpush.msra.mxu0 %v666
      %1231 = vmatpush.msra.mxu0 %v634
      %1232 = vmatpush.msra.mxu0 %v602
      %1233 = vmatpush.msra.mxu0 %v570
      %1234 = vmatpush.msra.mxu0 %v538
      %1235 = vmatpush.msra.mxu0 %v506
      %1236 = vmatpush.msra.mxu0 %v474
      %1237 = vmatpush.msra.mxu0 %v442
      %1238 = vmatpush.msra.mxu0 %v410
      %1239 = vmatpush.msra.mxu0 %v378
      %1240 = vmatpush.msra.mxu0 %v346
      %1241 = vmatpush.msra.mxu0 %v314
      %1242 = vmatpush.msra.mxu0 %v282
      %1243 = vmatpush.msra.mxu0 %v250
      %1244 = vmatmul.f32.gmra.mxu0 %v246
      %v1245 = vpop.f32.mrf.mxu0
      %v1246 = vadd.f32 %v1114, %v1245
      %1247 = vdwg.mxu0
      %1248 = vmatpush.msra.mxu0 0.0
      %1249 = vmatpush.msra.mxu0 0.0
      %1250 = vmatpush.msra.mxu0 0.0
      %1251 = vmatpush.msra.mxu0 0.0
      %1252 = vmatpush.msra.mxu0 0.0
      %1253 = vmatpush.msra.mxu0 %v1082
      %1254 = vmatpush.msra.mxu0 %v1050
      %1255 = vmatpush.msra.mxu0 %v1018
      %1256 = vmatpush.msra.mxu0 %v986
      %1257 = vmatpush.msra.mxu0 %v954
      %1258 = vmatpush.msra.mxu0 %v922
      %1259 = vmatpush.msra.mxu0 %v890
      %1260 = vmatpush.msra.mxu0 %v858
      %1261 = vmatpush.msra.mxu0 %v826
      %1262 = vmatpush.msra.mxu0 %v794
      %1263 = vmatpush.msra.mxu0 %v762
      %1264 = vmatmul.f32.gmra.mxu0 %v1146
      %v1265 = vpop.f32.mrf.mxu0
      %v1266 = vadd.f32 %v1246, %v1265
      %1267 = vdwg.mxu0
      %1268 = vmatpush.msra.mxu0 %v731
      %1269 = vmatpush.msra.mxu0 %v699
      %1270 = vmatpush.msra.mxu0 %v667
      %1271 = vmatpush.msra.mxu0 %v635
      %1272 = vmatpush.msra.mxu0 %v603
      %1273 = vmatpush.msra.mxu0 %v571
      %1274 = vmatpush.msra.mxu0 %v539
      %1275 = vmatpush.msra.mxu0 %v507
      %1276 = vmatpush.msra.mxu0 %v475
      %1277 = vmatpush.msra.mxu0 %v443
      %1278 = vmatpush.msra.mxu0 %v411
      %1279 = vmatpush.msra.mxu0 %v379
      %1280 = vmatpush.msra.mxu0 %v347
      %1281 = vmatpush.msra.mxu0 %v315
      %1282 = vmatpush.msra.mxu0 %v283
      %1283 = vmatpush.msra.mxu0 %v251
      %1284 = vmatmul.f32.gmra.mxu0 %v246
      %v1285 = vpop.f32.mrf.mxu0
      %v1286 = vadd.f32 %v1115, %v1285
      %1287 = vdwg.mxu0
      %1288 = vmatpush.msra.mxu0 0.0
      %1289 = vmatpush.msra.mxu0 0.0
      %1290 = vmatpush.msra.mxu0 0.0
      %1291 = vmatpush.msra.mxu0 0.0
      %1292 = vmatpush.msra.mxu0 0.0
      %1293 = vmatpush.msra.mxu0 %v1083
      %1294 = vmatpush.msra.mxu0 %v1051
      %1295 = vmatpush.msra.mxu0 %v1019
      %1296 = vmatpush.msra.mxu0 %v987
      %1297 = vmatpush.msra.mxu0 %v955
      %1298 = vmatpush.msra.mxu0 %v923
      %1299 = vmatpush.msra.mxu0 %v891
      %1300 = vmatpush.msra.mxu0 %v859
      %1301 = vmatpush.msra.mxu0 %v827
      %1302 = vmatpush.msra.mxu0 %v795
      %1303 = vmatpush.msra.mxu0 %v763
      %1304 = vmatmul.f32.gmra.mxu0 %v1146
      %v1305 = vpop.f32.mrf.mxu0
      %v1306 = vadd.f32 %v1286, %v1305
      %1307 = vdwg.mxu0
      %1308 = vmatpush.msra.mxu0 %v732
      %1309 = vmatpush.msra.mxu0 %v700
      %1310 = vmatpush.msra.mxu0 %v668
      %1311 = vmatpush.msra.mxu0 %v636
      %1312 = vmatpush.msra.mxu0 %v604
      %1313 = vmatpush.msra.mxu0 %v572
      %1314 = vmatpush.msra.mxu0 %v540
      %1315 = vmatpush.msra.mxu0 %v508
      %1316 = vmatpush.msra.mxu0 %v476
      %1317 = vmatpush.msra.mxu0 %v444
      %1318 = vmatpush.msra.mxu0 %v412
      %1319 = vmatpush.msra.mxu0 %v380
      %1320 = vmatpush.msra.mxu0 %v348
      %1321 = vmatpush.msra.mxu0 %v316
      %1322 = vmatpush.msra.mxu0 %v284
      %1323 = vmatpush.msra.mxu0 %v252
      %1324 = vmatmul.f32.gmra.mxu0 %v246
      %v1325 = vpop.f32.mrf.mxu0
      %v1326 = vadd.f32 %v1116, %v1325
      %1327 = vdwg.mxu0
      %1328 = vmatpush.msra.mxu0 0.0
      %1329 = vmatpush.msra.mxu0 0.0
      %1330 = vmatpush.msra.mxu0 0.0
      %1331 = vmatpush.msra.mxu0 0.0
      %1332 = vmatpush.msra.mxu0 0.0
      %1333 = vmatpush.msra.mxu0 %v1084
      %1334 = vmatpush.msra.mxu0 %v1052
      %1335 = vmatpush.msra.mxu0 %v1020
      %1336 = vmatpush.msra.mxu0 %v988
      %1337 = vmatpush.msra.mxu0 %v956
      %1338 = vmatpush.msra.mxu0 %v924
      %1339 = vmatpush.msra.mxu0 %v892
      %1340 = vmatpush.msra.mxu0 %v860
      %1341 = vmatpush.msra.mxu0 %v828
      %1342 = vmatpush.msra.mxu0 %v796
      %1343 = vmatpush.msra.mxu0 %v764
      %1344 = vmatmul.f32.gmra.mxu0 %v1146
      %v1345 = vpop.f32.mrf.mxu0
      %v1346 = vadd.f32 %v1326, %v1345
      %1347 = vdwg.mxu0
      %1348 = vmatpush.msra.mxu0 %v733
      %1349 = vmatpush.msra.mxu0 %v701
      %1350 = vmatpush.msra.mxu0 %v669
      %1351 = vmatpush.msra.mxu0 %v637
      %1352 = vmatpush.msra.mxu0 %v605
      %1353 = vmatpush.msra.mxu0 %v573
      %1354 = vmatpush.msra.mxu0 %v541
      %1355 = vmatpush.msra.mxu0 %v509
      %1356 = vmatpush.msra.mxu0 %v477
      %1357 = vmatpush.msra.mxu0 %v445
      %1358 = vmatpush.msra.mxu0 %v413
      %1359 = vmatpush.msra.mxu0 %v381
      %1360 = vmatpush.msra.mxu0 %v349
      %1361 = vmatpush.msra.mxu0 %v317
      %1362 = vmatpush.msra.mxu0 %v285
      %1363 = vmatpush.msra.mxu0 %v253
      %1364 = vmatmul.f32.gmra.mxu0 %v246
      %v1365 = vpop.f32.mrf.mxu0
      %v1366 = vadd.f32 %v1117, %v1365
      %1367 = vdwg.mxu0
      %1368 = vmatpush.msra.mxu0 0.0
      %1369 = vmatpush.msra.mxu0 0.0
      %1370 = vmatpush.msra.mxu0 0.0
      %1371 = vmatpush.msra.mxu0 0.0
      %1372 = vmatpush.msra.mxu0 0.0
      %1373 = vmatpush.msra.mxu0 %v1085
      %1374 = vmatpush.msra.mxu0 %v1053
      %1375 = vmatpush.msra.mxu0 %v1021
      %1376 = vmatpush.msra.mxu0 %v989
      %1377 = vmatpush.msra.mxu0 %v957
      %1378 = vmatpush.msra.mxu0 %v925
      %1379 = vmatpush.msra.mxu0 %v893
      %1380 = vmatpush.msra.mxu0 %v861
      %1381 = vmatpush.msra.mxu0 %v829
      %1382 = vmatpush.msra.mxu0 %v797
      %1383 = vmatpush.msra.mxu0 %v765
      %1384 = vmatmul.f32.gmra.mxu0 %v1146
      %v1385 = vpop.f32.mrf.mxu0
      %v1386 = vadd.f32 %v1366, %v1385
      %1387 = vdwg.mxu0
      %1388 = vmatpush.msra.mxu0 %v734
      %1389 = vmatpush.msra.mxu0 %v702
      %1390 = vmatpush.msra.mxu0 %v670
      %1391 = vmatpush.msra.mxu0 %v638
      %1392 = vmatpush.msra.mxu0 %v606
      %1393 = vmatpush.msra.mxu0 %v574
      %1394 = vmatpush.msra.mxu0 %v542
      %1395 = vmatpush.msra.mxu0 %v510
      %1396 = vmatpush.msra.mxu0 %v478
      %1397 = vmatpush.msra.mxu0 %v446
      %1398 = vmatpush.msra.mxu0 %v414
      %1399 = vmatpush.msra.mxu0 %v382
      %1400 = vmatpush.msra.mxu0 %v350
      %1401 = vmatpush.msra.mxu0 %v318
      %1402 = vmatpush.msra.mxu0 %v286
      %1403 = vmatpush.msra.mxu0 %v254
      %1404 = vmatmul.f32.gmra.mxu0 %v246
      %v1405 = vpop.f32.mrf.mxu0
      %v1406 = vadd.f32 %v1118, %v1405
      %1407 = vdwg.mxu0
      %1408 = vmatpush.msra.mxu0 0.0
      %1409 = vmatpush.msra.mxu0 0.0
      %1410 = vmatpush.msra.mxu0 0.0
      %1411 = vmatpush.msra.mxu0 0.0
      %1412 = vmatpush.msra.mxu0 0.0
      %1413 = vmatpush.msra.mxu0 %v1086
      %1414 = vmatpush.msra.mxu0 %v1054
      %1415 = vmatpush.msra.mxu0 %v1022
      %1416 = vmatpush.msra.mxu0 %v990
      %1417 = vmatpush.msra.mxu0 %v958
      %1418 = vmatpush.msra.mxu0 %v926
      %1419 = vmatpush.msra.mxu0 %v894
      %1420 = vmatpush.msra.mxu0 %v862
      %1421 = vmatpush.msra.mxu0 %v830
      %1422 = vmatpush.msra.mxu0 %v798
      %1423 = vmatpush.msra.mxu0 %v766
      %1424 = vmatmul.f32.gmra.mxu0 %v1146
      %v1425 = vpop.f32.mrf.mxu0
      %v1426 = vadd.f32 %v1406, %v1425
      %1427 = vdwg.mxu0
      %1428 = vmatpush.msra.mxu0 %v735
      %1429 = vmatpush.msra.mxu0 %v703
      %1430 = vmatpush.msra.mxu0 %v671
      %1431 = vmatpush.msra.mxu0 %v639
      %1432 = vmatpush.msra.mxu0 %v607
      %1433 = vmatpush.msra.mxu0 %v575
      %1434 = vmatpush.msra.mxu0 %v543
      %1435 = vmatpush.msra.mxu0 %v511
      %1436 = vmatpush.msra.mxu0 %v479
      %1437 = vmatpush.msra.mxu0 %v447
      %1438 = vmatpush.msra.mxu0 %v415
      %1439 = vmatpush.msra.mxu0 %v383
      %1440 = vmatpush.msra.mxu0 %v351
      %1441 = vmatpush.msra.mxu0 %v319
      %1442 = vmatpush.msra.mxu0 %v287
      %1443 = vmatpush.msra.mxu0 %v255
      %1444 = vmatmul.f32.gmra.mxu0 %v246
      %v1445 = vpop.f32.mrf.mxu0
      %v1446 = vadd.f32 %v1119, %v1445
      %1447 = vdwg.mxu0
      %1448 = vmatpush.msra.mxu0 0.0
      %1449 = vmatpush.msra.mxu0 0.0
      %1450 = vmatpush.msra.mxu0 0.0
      %1451 = vmatpush.msra.mxu0 0.0
      %1452 = vmatpush.msra.mxu0 0.0
      %1453 = vmatpush.msra.mxu0 %v1087
      %1454 = vmatpush.msra.mxu0 %v1055
      %1455 = vmatpush.msra.mxu0 %v1023
      %1456 = vmatpush.msra.mxu0 %v991
      %1457 = vmatpush.msra.mxu0 %v959
      %1458 = vmatpush.msra.mxu0 %v927
      %1459 = vmatpush.msra.mxu0 %v895
      %1460 = vmatpush.msra.mxu0 %v863
      %1461 = vmatpush.msra.mxu0 %v831
      %1462 = vmatpush.msra.mxu0 %v799
      %1463 = vmatpush.msra.mxu0 %v767
      %1464 = vmatmul.f32.gmra.mxu0 %v1146
      %v1465 = vpop.f32.mrf.mxu0
      %v1466 = vadd.f32 %v1446, %v1465
      %1467 = vdwg.mxu0
      %1468 = vmatpush.msra.mxu0 %v736
      %1469 = vmatpush.msra.mxu0 %v704
      %1470 = vmatpush.msra.mxu0 %v672
      %1471 = vmatpush.msra.mxu0 %v640
      %1472 = vmatpush.msra.mxu0 %v608
      %1473 = vmatpush.msra.mxu0 %v576
      %1474 = vmatpush.msra.mxu0 %v544
      %1475 = vmatpush.msra.mxu0 %v512
      %1476 = vmatpush.msra.mxu0 %v480
      %1477 = vmatpush.msra.mxu0 %v448
      %1478 = vmatpush.msra.mxu0 %v416
      %1479 = vmatpush.msra.mxu0 %v384
      %1480 = vmatpush.msra.mxu0 %v352
      %1481 = vmatpush.msra.mxu0 %v320
      %1482 = vmatpush.msra.mxu0 %v288
      %1483 = vmatpush.msra.mxu0 %v256
      %1484 = vmatmul.f32.gmra.mxu0 %v246
      %v1485 = vpop.f32.mrf.mxu0
      %v1486 = vadd.f32 %v1120, %v1485
      %1487 = vdwg.mxu0
      %1488 = vmatpush.msra.mxu0 0.0
      %1489 = vmatpush.msra.mxu0 0.0
      %1490 = vmatpush.msra.mxu0 0.0
      %1491 = vmatpush.msra.mxu0 0.0
      %1492 = vmatpush.msra.mxu0 0.0
      %1493 = vmatpush.msra.mxu0 %v1088
      %1494 = vmatpush.msra.mxu0 %v1056
      %1495 = vmatpush.msra.mxu0 %v1024
      %1496 = vmatpush.msra.mxu0 %v992
      %1497 = vmatpush.msra.mxu0 %v960
      %1498 = vmatpush.msra.mxu0 %v928
      %1499 = vmatpush.msra.mxu0 %v896
      %1500 = vmatpush.msra.mxu0 %v864
      %1501 = vmatpush.msra.mxu0 %v832
      %1502 = vmatpush.msra.mxu0 %v800
      %1503 = vmatpush.msra.mxu0 %v768
      %1504 = vmatmul.f32.gmra.mxu0 %v1146
      %v1505 = vpop.f32.mrf.mxu0
      %v1506 = vadd.f32 %v1486, %v1505
      %1507 = vdwg.mxu0
      %1508 = vmatpush.msra.mxu0 %v737
      %1509 = vmatpush.msra.mxu0 %v705
      %1510 = vmatpush.msra.mxu0 %v673
      %1511 = vmatpush.msra.mxu0 %v641
      %1512 = vmatpush.msra.mxu0 %v609
      %1513 = vmatpush.msra.mxu0 %v577
      %1514 = vmatpush.msra.mxu0 %v545
      %1515 = vmatpush.msra.mxu0 %v513
      %1516 = vmatpush.msra.mxu0 %v481
      %1517 = vmatpush.msra.mxu0 %v449
      %1518 = vmatpush.msra.mxu0 %v417
      %1519 = vmatpush.msra.mxu0 %v385
      %1520 = vmatpush.msra.mxu0 %v353
      %1521 = vmatpush.msra.mxu0 %v321
      %1522 = vmatpush.msra.mxu0 %v289
      %1523 = vmatpush.msra.mxu0 %v257
      %1524 = vmatmul.f32.gmra.mxu0 %v246
      %v1525 = vpop.f32.mrf.mxu0
      %v1526 = vadd.f32 %v1121, %v1525
      %1527 = vdwg.mxu0
      %1528 = vmatpush.msra.mxu0 0.0
      %1529 = vmatpush.msra.mxu0 0.0
      %1530 = vmatpush.msra.mxu0 0.0
      %1531 = vmatpush.msra.mxu0 0.0
      %1532 = vmatpush.msra.mxu0 0.0
      %1533 = vmatpush.msra.mxu0 %v1089
      %1534 = vmatpush.msra.mxu0 %v1057
      %1535 = vmatpush.msra.mxu0 %v1025
      %1536 = vmatpush.msra.mxu0 %v993
      %1537 = vmatpush.msra.mxu0 %v961
      %1538 = vmatpush.msra.mxu0 %v929
      %1539 = vmatpush.msra.mxu0 %v897
      %1540 = vmatpush.msra.mxu0 %v865
      %1541 = vmatpush.msra.mxu0 %v833
      %1542 = vmatpush.msra.mxu0 %v801
      %1543 = vmatpush.msra.mxu0 %v769
      %1544 = vmatmul.f32.gmra.mxu0 %v1146
      %v1545 = vpop.f32.mrf.mxu0
      %v1546 = vadd.f32 %v1526, %v1545
      %1547 = vdwg.mxu0
      %1548 = vmatpush.msra.mxu0 %v738
      %1549 = vmatpush.msra.mxu0 %v706
      %1550 = vmatpush.msra.mxu0 %v674
      %1551 = vmatpush.msra.mxu0 %v642
      %1552 = vmatpush.msra.mxu0 %v610
      %1553 = vmatpush.msra.mxu0 %v578
      %1554 = vmatpush.msra.mxu0 %v546
      %1555 = vmatpush.msra.mxu0 %v514
      %1556 = vmatpush.msra.mxu0 %v482
      %1557 = vmatpush.msra.mxu0 %v450
      %1558 = vmatpush.msra.mxu0 %v418
      %1559 = vmatpush.msra.mxu0 %v386
      %1560 = vmatpush.msra.mxu0 %v354
      %1561 = vmatpush.msra.mxu0 %v322
      %1562 = vmatpush.msra.mxu0 %v290
      %1563 = vmatpush.msra.mxu0 %v258
      %1564 = vmatmul.f32.gmra.mxu0 %v246
      %v1565 = vpop.f32.mrf.mxu0
      %v1566 = vadd.f32 %v1122, %v1565
      %1567 = vdwg.mxu0
      %1568 = vmatpush.msra.mxu0 0.0
      %1569 = vmatpush.msra.mxu0 0.0
      %1570 = vmatpush.msra.mxu0 0.0
      %1571 = vmatpush.msra.mxu0 0.0
      %1572 = vmatpush.msra.mxu0 0.0
      %1573 = vmatpush.msra.mxu0 %v1090
      %1574 = vmatpush.msra.mxu0 %v1058
      %1575 = vmatpush.msra.mxu0 %v1026
      %1576 = vmatpush.msra.mxu0 %v994
      %1577 = vmatpush.msra.mxu0 %v962
      %1578 = vmatpush.msra.mxu0 %v930
      %1579 = vmatpush.msra.mxu0 %v898
      %1580 = vmatpush.msra.mxu0 %v866
      %1581 = vmatpush.msra.mxu0 %v834
      %1582 = vmatpush.msra.mxu0 %v802
      %1583 = vmatpush.msra.mxu0 %v770
      %1584 = vmatmul.f32.gmra.mxu0 %v1146
      %v1585 = vpop.f32.mrf.mxu0
      %v1586 = vadd.f32 %v1566, %v1585
      %1587 = vdwg.mxu0
      %1588 = vmatpush.msra.mxu0 %v739
      %1589 = vmatpush.msra.mxu0 %v707
      %1590 = vmatpush.msra.mxu0 %v675
      %1591 = vmatpush.msra.mxu0 %v643
      %1592 = vmatpush.msra.mxu0 %v611
      %1593 = vmatpush.msra.mxu0 %v579
      %1594 = vmatpush.msra.mxu0 %v547
      %1595 = vmatpush.msra.mxu0 %v515
      %1596 = vmatpush.msra.mxu0 %v483
      %1597 = vmatpush.msra.mxu0 %v451
      %1598 = vmatpush.msra.mxu0 %v419
      %1599 = vmatpush.msra.mxu0 %v387
      %1600 = vmatpush.msra.mxu0 %v355
      %1601 = vmatpush.msra.mxu0 %v323
      %1602 = vmatpush.msra.mxu0 %v291
      %1603 = vmatpush.msra.mxu0 %v259
      %1604 = vmatmul.f32.gmra.mxu0 %v246
      %v1605 = vpop.f32.mrf.mxu0
      %v1606 = vadd.f32 %v1123, %v1605
      %1607 = vdwg.mxu0
      %1608 = vmatpush.msra.mxu0 0.0
      %1609 = vmatpush.msra.mxu0 0.0
      %1610 = vmatpush.msra.mxu0 0.0
      %1611 = vmatpush.msra.mxu0 0.0
      %1612 = vmatpush.msra.mxu0 0.0
      %1613 = vmatpush.msra.mxu0 %v1091
      %1614 = vmatpush.msra.mxu0 %v1059
      %1615 = vmatpush.msra.mxu0 %v1027
      %1616 = vmatpush.msra.mxu0 %v995
      %1617 = vmatpush.msra.mxu0 %v963
      %1618 = vmatpush.msra.mxu0 %v931
      %1619 = vmatpush.msra.mxu0 %v899
      %1620 = vmatpush.msra.mxu0 %v867
      %1621 = vmatpush.msra.mxu0 %v835
      %1622 = vmatpush.msra.mxu0 %v803
      %1623 = vmatpush.msra.mxu0 %v771
      %1624 = vmatmul.f32.gmra.mxu0 %v1146
      %v1625 = vpop.f32.mrf.mxu0
      %v1626 = vadd.f32 %v1606, %v1625
      %1627 = vdwg.mxu0
      %1628 = vmatpush.msra.mxu0 %v740
      %1629 = vmatpush.msra.mxu0 %v708
      %1630 = vmatpush.msra.mxu0 %v676
      %1631 = vmatpush.msra.mxu0 %v644
      %1632 = vmatpush.msra.mxu0 %v612
      %1633 = vmatpush.msra.mxu0 %v580
      %1634 = vmatpush.msra.mxu0 %v548
      %1635 = vmatpush.msra.mxu0 %v516
      %1636 = vmatpush.msra.mxu0 %v484
      %1637 = vmatpush.msra.mxu0 %v452
      %1638 = vmatpush.msra.mxu0 %v420
      %1639 = vmatpush.msra.mxu0 %v388
      %1640 = vmatpush.msra.mxu0 %v356
      %1641 = vmatpush.msra.mxu0 %v324
      %1642 = vmatpush.msra.mxu0 %v292
      %1643 = vmatpush.msra.mxu0 %v260
      %1644 = vmatmul.f32.gmra.mxu0 %v246
      %v1645 = vpop.f32.mrf.mxu0
      %v1646 = vadd.f32 %v1124, %v1645
      %1647 = vdwg.mxu0
      %1648 = vmatpush.msra.mxu0 0.0
      %1649 = vmatpush.msra.mxu0 0.0
      %1650 = vmatpush.msra.mxu0 0.0
      %1651 = vmatpush.msra.mxu0 0.0
      %1652 = vmatpush.msra.mxu0 0.0
      %1653 = vmatpush.msra.mxu0 %v1092
      %1654 = vmatpush.msra.mxu0 %v1060
      %1655 = vmatpush.msra.mxu0 %v1028
      %1656 = vmatpush.msra.mxu0 %v996
      %1657 = vmatpush.msra.mxu0 %v964
      %1658 = vmatpush.msra.mxu0 %v932
      %1659 = vmatpush.msra.mxu0 %v900
      %1660 = vmatpush.msra.mxu0 %v868
      %1661 = vmatpush.msra.mxu0 %v836
      %1662 = vmatpush.msra.mxu0 %v804
      %1663 = vmatpush.msra.mxu0 %v772
      %1664 = vmatmul.f32.gmra.mxu0 %v1146
      %v1665 = vpop.f32.mrf.mxu0
      %v1666 = vadd.f32 %v1646, %v1665
      %1667 = vdwg.mxu0
      %1668 = vmatpush.msra.mxu0 %v741
      %1669 = vmatpush.msra.mxu0 %v709
      %1670 = vmatpush.msra.mxu0 %v677
      %1671 = vmatpush.msra.mxu0 %v645
      %1672 = vmatpush.msra.mxu0 %v613
      %1673 = vmatpush.msra.mxu0 %v581
      %1674 = vmatpush.msra.mxu0 %v549
      %1675 = vmatpush.msra.mxu0 %v517
      %1676 = vmatpush.msra.mxu0 %v485
      %1677 = vmatpush.msra.mxu0 %v453
      %1678 = vmatpush.msra.mxu0 %v421
      %1679 = vmatpush.msra.mxu0 %v389
      %1680 = vmatpush.msra.mxu0 %v357
      %1681 = vmatpush.msra.mxu0 %v325
      %1682 = vmatpush.msra.mxu0 %v293
      %1683 = vmatpush.msra.mxu0 %v261
      %1684 = vmatmul.f32.gmra.mxu0 %v246
      %v1685 = vpop.f32.mrf.mxu0
      %v1686 = vadd.f32 %v1125, %v1685
      %1687 = vdwg.mxu0
      %1688 = vmatpush.msra.mxu0 0.0
      %1689 = vmatpush.msra.mxu0 0.0
      %1690 = vmatpush.msra.mxu0 0.0
      %1691 = vmatpush.msra.mxu0 0.0
      %1692 = vmatpush.msra.mxu0 0.0
      %1693 = vmatpush.msra.mxu0 %v1093
      %1694 = vmatpush.msra.mxu0 %v1061
      %1695 = vmatpush.msra.mxu0 %v1029
      %1696 = vmatpush.msra.mxu0 %v997
      %1697 = vmatpush.msra.mxu0 %v965
      %1698 = vmatpush.msra.mxu0 %v933
      %1699 = vmatpush.msra.mxu0 %v901
      %1700 = vmatpush.msra.mxu0 %v869
      %1701 = vmatpush.msra.mxu0 %v837
      %1702 = vmatpush.msra.mxu0 %v805
      %1703 = vmatpush.msra.mxu0 %v773
      %1704 = vmatmul.f32.gmra.mxu0 %v1146
      %v1705 = vpop.f32.mrf.mxu0
      %v1706 = vadd.f32 %v1686, %v1705
      %1707 = vdwg.mxu0
      %1708 = vmatpush.msra.mxu0 %v742
      %1709 = vmatpush.msra.mxu0 %v710
      %1710 = vmatpush.msra.mxu0 %v678
      %1711 = vmatpush.msra.mxu0 %v646
      %1712 = vmatpush.msra.mxu0 %v614
      %1713 = vmatpush.msra.mxu0 %v582
      %1714 = vmatpush.msra.mxu0 %v550
      %1715 = vmatpush.msra.mxu0 %v518
      %1716 = vmatpush.msra.mxu0 %v486
      %1717 = vmatpush.msra.mxu0 %v454
      %1718 = vmatpush.msra.mxu0 %v422
      %1719 = vmatpush.msra.mxu0 %v390
      %1720 = vmatpush.msra.mxu0 %v358
      %1721 = vmatpush.msra.mxu0 %v326
      %1722 = vmatpush.msra.mxu0 %v294
      %1723 = vmatpush.msra.mxu0 %v262
      %1724 = vmatmul.f32.gmra.mxu0 %v246
      %v1725 = vpop.f32.mrf.mxu0
      %v1726 = vadd.f32 %v1126, %v1725
      %1727 = vdwg.mxu0
      %1728 = vmatpush.msra.mxu0 0.0
      %1729 = vmatpush.msra.mxu0 0.0
      %1730 = vmatpush.msra.mxu0 0.0
      %1731 = vmatpush.msra.mxu0 0.0
      %1732 = vmatpush.msra.mxu0 0.0
      %1733 = vmatpush.msra.mxu0 %v1094
      %1734 = vmatpush.msra.mxu0 %v1062
      %1735 = vmatpush.msra.mxu0 %v1030
      %1736 = vmatpush.msra.mxu0 %v998
      %1737 = vmatpush.msra.mxu0 %v966
      %1738 = vmatpush.msra.mxu0 %v934
      %1739 = vmatpush.msra.mxu0 %v902
      %1740 = vmatpush.msra.mxu0 %v870
      %1741 = vmatpush.msra.mxu0 %v838
      %1742 = vmatpush.msra.mxu0 %v806
      %1743 = vmatpush.msra.mxu0 %v774
      %1744 = vmatmul.f32.gmra.mxu0 %v1146
      %v1745 = vpop.f32.mrf.mxu0
      %v1746 = vadd.f32 %v1726, %v1745
      %1747 = vdwg.mxu0
      %1748 = vmatpush.msra.mxu0 %v743
      %1749 = vmatpush.msra.mxu0 %v711
      %1750 = vmatpush.msra.mxu0 %v679
      %1751 = vmatpush.msra.mxu0 %v647
      %1752 = vmatpush.msra.mxu0 %v615
      %1753 = vmatpush.msra.mxu0 %v583
      %1754 = vmatpush.msra.mxu0 %v551
      %1755 = vmatpush.msra.mxu0 %v519
      %1756 = vmatpush.msra.mxu0 %v487
      %1757 = vmatpush.msra.mxu0 %v455
      %1758 = vmatpush.msra.mxu0 %v423
      %1759 = vmatpush.msra.mxu0 %v391
      %1760 = vmatpush.msra.mxu0 %v359
      %1761 = vmatpush.msra.mxu0 %v327
      %1762 = vmatpush.msra.mxu0 %v295
      %1763 = vmatpush.msra.mxu0 %v263
      %1764 = vmatmul.f32.gmra.mxu0 %v246
      %v1765 = vpop.f32.mrf.mxu0
      %v1766 = vadd.f32 %v1127, %v1765
      %1767 = vdwg.mxu0
      %1768 = vmatpush.msra.mxu0 0.0
      %1769 = vmatpush.msra.mxu0 0.0
      %1770 = vmatpush.msra.mxu0 0.0
      %1771 = vmatpush.msra.mxu0 0.0
      %1772 = vmatpush.msra.mxu0 0.0
      %1773 = vmatpush.msra.mxu0 %v1095
      %1774 = vmatpush.msra.mxu0 %v1063
      %1775 = vmatpush.msra.mxu0 %v1031
      %1776 = vmatpush.msra.mxu0 %v999
      %1777 = vmatpush.msra.mxu0 %v967
      %1778 = vmatpush.msra.mxu0 %v935
      %1779 = vmatpush.msra.mxu0 %v903
      %1780 = vmatpush.msra.mxu0 %v871
      %1781 = vmatpush.msra.mxu0 %v839
      %1782 = vmatpush.msra.mxu0 %v807
      %1783 = vmatpush.msra.mxu0 %v775
      %1784 = vmatmul.f32.gmra.mxu0 %v1146
      %v1785 = vpop.f32.mrf.mxu0
      %v1786 = vadd.f32 %v1766, %v1785
      %1787 = vdwg.mxu0
      %1788 = vmatpush.msra.mxu0 %v744
      %1789 = vmatpush.msra.mxu0 %v712
      %1790 = vmatpush.msra.mxu0 %v680
      %1791 = vmatpush.msra.mxu0 %v648
      %1792 = vmatpush.msra.mxu0 %v616
      %1793 = vmatpush.msra.mxu0 %v584
      %1794 = vmatpush.msra.mxu0 %v552
      %1795 = vmatpush.msra.mxu0 %v520
      %1796 = vmatpush.msra.mxu0 %v488
      %1797 = vmatpush.msra.mxu0 %v456
      %1798 = vmatpush.msra.mxu0 %v424
      %1799 = vmatpush.msra.mxu0 %v392
      %1800 = vmatpush.msra.mxu0 %v360
      %1801 = vmatpush.msra.mxu0 %v328
      %1802 = vmatpush.msra.mxu0 %v296
      %1803 = vmatpush.msra.mxu0 %v264
      %1804 = vmatmul.f32.gmra.mxu0 %v246
      %v1805 = vpop.f32.mrf.mxu0
      %v1806 = vadd.f32 %v1128, %v1805
      %1807 = vdwg.mxu0
      %1808 = vmatpush.msra.mxu0 0.0
      %1809 = vmatpush.msra.mxu0 0.0
      %1810 = vmatpush.msra.mxu0 0.0
      %1811 = vmatpush.msra.mxu0 0.0
      %1812 = vmatpush.msra.mxu0 0.0
      %1813 = vmatpush.msra.mxu0 %v1096
      %1814 = vmatpush.msra.mxu0 %v1064
      %1815 = vmatpush.msra.mxu0 %v1032
      %1816 = vmatpush.msra.mxu0 %v1000
      %1817 = vmatpush.msra.mxu0 %v968
      %1818 = vmatpush.msra.mxu0 %v936
      %1819 = vmatpush.msra.mxu0 %v904
      %1820 = vmatpush.msra.mxu0 %v872
      %1821 = vmatpush.msra.mxu0 %v840
      %1822 = vmatpush.msra.mxu0 %v808
      %1823 = vmatpush.msra.mxu0 %v776
      %1824 = vmatmul.f32.gmra.mxu0 %v1146
      %v1825 = vpop.f32.mrf.mxu0
      %v1826 = vadd.f32 %v1806, %v1825
      %1827 = vdwg.mxu0
      %1828 = vmatpush.msra.mxu0 %v745
      %1829 = vmatpush.msra.mxu0 %v713
      %1830 = vmatpush.msra.mxu0 %v681
      %1831 = vmatpush.msra.mxu0 %v649
      %1832 = vmatpush.msra.mxu0 %v617
      %1833 = vmatpush.msra.mxu0 %v585
      %1834 = vmatpush.msra.mxu0 %v553
      %1835 = vmatpush.msra.mxu0 %v521
      %1836 = vmatpush.msra.mxu0 %v489
      %1837 = vmatpush.msra.mxu0 %v457
      %1838 = vmatpush.msra.mxu0 %v425
      %1839 = vmatpush.msra.mxu0 %v393
      %1840 = vmatpush.msra.mxu0 %v361
      %1841 = vmatpush.msra.mxu0 %v329
      %1842 = vmatpush.msra.mxu0 %v297
      %1843 = vmatpush.msra.mxu0 %v265
      %1844 = vmatmul.f32.gmra.mxu0 %v246
      %v1845 = vpop.f32.mrf.mxu0
      %v1846 = vadd.f32 %v1129, %v1845
      %1847 = vdwg.mxu0
      %1848 = vmatpush.msra.mxu0 0.0
      %1849 = vmatpush.msra.mxu0 0.0
      %1850 = vmatpush.msra.mxu0 0.0
      %1851 = vmatpush.msra.mxu0 0.0
      %1852 = vmatpush.msra.mxu0 0.0
      %1853 = vmatpush.msra.mxu0 %v1097
      %1854 = vmatpush.msra.mxu0 %v1065
      %1855 = vmatpush.msra.mxu0 %v1033
      %1856 = vmatpush.msra.mxu0 %v1001
      %1857 = vmatpush.msra.mxu0 %v969
      %1858 = vmatpush.msra.mxu0 %v937
      %1859 = vmatpush.msra.mxu0 %v905
      %1860 = vmatpush.msra.mxu0 %v873
      %1861 = vmatpush.msra.mxu0 %v841
      %1862 = vmatpush.msra.mxu0 %v809
      %1863 = vmatpush.msra.mxu0 %v777
      %1864 = vmatmul.f32.gmra.mxu0 %v1146
      %v1865 = vpop.f32.mrf.mxu0
      %v1866 = vadd.f32 %v1846, %v1865
      %1867 = vdwg.mxu0
      %1868 = vmatpush.msra.mxu0 %v746
      %1869 = vmatpush.msra.mxu0 %v714
      %1870 = vmatpush.msra.mxu0 %v682
      %1871 = vmatpush.msra.mxu0 %v650
      %1872 = vmatpush.msra.mxu0 %v618
      %1873 = vmatpush.msra.mxu0 %v586
      %1874 = vmatpush.msra.mxu0 %v554
      %1875 = vmatpush.msra.mxu0 %v522
      %1876 = vmatpush.msra.mxu0 %v490
      %1877 = vmatpush.msra.mxu0 %v458
      %1878 = vmatpush.msra.mxu0 %v426
      %1879 = vmatpush.msra.mxu0 %v394
      %1880 = vmatpush.msra.mxu0 %v362
      %1881 = vmatpush.msra.mxu0 %v330
      %1882 = vmatpush.msra.mxu0 %v298
      %1883 = vmatpush.msra.mxu0 %v266
      %1884 = vmatmul.f32.gmra.mxu0 %v246
      %v1885 = vpop.f32.mrf.mxu0
      %v1886 = vadd.f32 %v1130, %v1885
      %1887 = vdwg.mxu0
      %1888 = vmatpush.msra.mxu0 0.0
      %1889 = vmatpush.msra.mxu0 0.0
      %1890 = vmatpush.msra.mxu0 0.0
      %1891 = vmatpush.msra.mxu0 0.0
      %1892 = vmatpush.msra.mxu0 0.0
      %1893 = vmatpush.msra.mxu0 %v1098
      %1894 = vmatpush.msra.mxu0 %v1066
      %1895 = vmatpush.msra.mxu0 %v1034
      %1896 = vmatpush.msra.mxu0 %v1002
      %1897 = vmatpush.msra.mxu0 %v970
      %1898 = vmatpush.msra.mxu0 %v938
      %1899 = vmatpush.msra.mxu0 %v906
      %1900 = vmatpush.msra.mxu0 %v874
      %1901 = vmatpush.msra.mxu0 %v842
      %1902 = vmatpush.msra.mxu0 %v810
      %1903 = vmatpush.msra.mxu0 %v778
      %1904 = vmatmul.f32.gmra.mxu0 %v1146
      %v1905 = vpop.f32.mrf.mxu0
      %v1906 = vadd.f32 %v1886, %v1905
      %1907 = vdwg.mxu0
      %1908 = vmatpush.msra.mxu0 %v747
      %1909 = vmatpush.msra.mxu0 %v715
      %1910 = vmatpush.msra.mxu0 %v683
      %1911 = vmatpush.msra.mxu0 %v651
      %1912 = vmatpush.msra.mxu0 %v619
      %1913 = vmatpush.msra.mxu0 %v587
      %1914 = vmatpush.msra.mxu0 %v555
      %1915 = vmatpush.msra.mxu0 %v523
      %1916 = vmatpush.msra.mxu0 %v491
      %1917 = vmatpush.msra.mxu0 %v459
      %1918 = vmatpush.msra.mxu0 %v427
      %1919 = vmatpush.msra.mxu0 %v395
      %1920 = vmatpush.msra.mxu0 %v363
      %1921 = vmatpush.msra.mxu0 %v331
      %1922 = vmatpush.msra.mxu0 %v299
      %1923 = vmatpush.msra.mxu0 %v267
      %1924 = vmatmul.f32.gmra.mxu0 %v246
      %v1925 = vpop.f32.mrf.mxu0
      %v1926 = vadd.f32 %v1131, %v1925
      %1927 = vdwg.mxu0
      %1928 = vmatpush.msra.mxu0 0.0
      %1929 = vmatpush.msra.mxu0 0.0
      %1930 = vmatpush.msra.mxu0 0.0
      %1931 = vmatpush.msra.mxu0 0.0
      %1932 = vmatpush.msra.mxu0 0.0
      %1933 = vmatpush.msra.mxu0 %v1099
      %1934 = vmatpush.msra.mxu0 %v1067
      %1935 = vmatpush.msra.mxu0 %v1035
      %1936 = vmatpush.msra.mxu0 %v1003
      %1937 = vmatpush.msra.mxu0 %v971
      %1938 = vmatpush.msra.mxu0 %v939
      %1939 = vmatpush.msra.mxu0 %v907
      %1940 = vmatpush.msra.mxu0 %v875
      %1941 = vmatpush.msra.mxu0 %v843
      %1942 = vmatpush.msra.mxu0 %v811
      %1943 = vmatpush.msra.mxu0 %v779
      %1944 = vmatmul.f32.gmra.mxu0 %v1146
      %v1945 = vpop.f32.mrf.mxu0
      %v1946 = vadd.f32 %v1926, %v1945
      %1947 = vdwg.mxu0
      %1948 = vmatpush.msra.mxu0 %v748
      %1949 = vmatpush.msra.mxu0 %v716
      %1950 = vmatpush.msra.mxu0 %v684
      %1951 = vmatpush.msra.mxu0 %v652
      %1952 = vmatpush.msra.mxu0 %v620
      %1953 = vmatpush.msra.mxu0 %v588
      %1954 = vmatpush.msra.mxu0 %v556
      %1955 = vmatpush.msra.mxu0 %v524
      %1956 = vmatpush.msra.mxu0 %v492
      %1957 = vmatpush.msra.mxu0 %v460
      %1958 = vmatpush.msra.mxu0 %v428
      %1959 = vmatpush.msra.mxu0 %v396
      %1960 = vmatpush.msra.mxu0 %v364
      %1961 = vmatpush.msra.mxu0 %v332
      %1962 = vmatpush.msra.mxu0 %v300
      %1963 = vmatpush.msra.mxu0 %v268
      %1964 = vmatmul.f32.gmra.mxu0 %v246
      %v1965 = vpop.f32.mrf.mxu0
      %v1966 = vadd.f32 %v1132, %v1965
      %1967 = vdwg.mxu0
      %1968 = vmatpush.msra.mxu0 0.0
      %1969 = vmatpush.msra.mxu0 0.0
      %1970 = vmatpush.msra.mxu0 0.0
      %1971 = vmatpush.msra.mxu0 0.0
      %1972 = vmatpush.msra.mxu0 0.0
      %1973 = vmatpush.msra.mxu0 %v1100
      %1974 = vmatpush.msra.mxu0 %v1068
      %1975 = vmatpush.msra.mxu0 %v1036
      %1976 = vmatpush.msra.mxu0 %v1004
      %1977 = vmatpush.msra.mxu0 %v972
      %1978 = vmatpush.msra.mxu0 %v940
      %1979 = vmatpush.msra.mxu0 %v908
      %1980 = vmatpush.msra.mxu0 %v876
      %1981 = vmatpush.msra.mxu0 %v844
      %1982 = vmatpush.msra.mxu0 %v812
      %1983 = vmatpush.msra.mxu0 %v780
      %1984 = vmatmul.f32.gmra.mxu0 %v1146
      %v1985 = vpop.f32.mrf.mxu0
      %v1986 = vadd.f32 %v1966, %v1985
      %1987 = vdwg.mxu0
      %1988 = vmatpush.msra.mxu0 %v749
      %1989 = vmatpush.msra.mxu0 %v717
      %1990 = vmatpush.msra.mxu0 %v685
      %1991 = vmatpush.msra.mxu0 %v653
      %1992 = vmatpush.msra.mxu0 %v621
      %1993 = vmatpush.msra.mxu0 %v589
      %1994 = vmatpush.msra.mxu0 %v557
      %1995 = vmatpush.msra.mxu0 %v525
      %1996 = vmatpush.msra.mxu0 %v493
      %1997 = vmatpush.msra.mxu0 %v461
      %1998 = vmatpush.msra.mxu0 %v429
      %1999 = vmatpush.msra.mxu0 %v397
      %2000 = vmatpush.msra.mxu0 %v365
      %2001 = vmatpush.msra.mxu0 %v333
      %2002 = vmatpush.msra.mxu0 %v301
      %2003 = vmatpush.msra.mxu0 %v269
      %2004 = vmatmul.f32.gmra.mxu0 %v246
      %v2005 = vpop.f32.mrf.mxu0
      %v2006 = vadd.f32 %v1133, %v2005
      %2007 = vdwg.mxu0
      %2008 = vmatpush.msra.mxu0 0.0
      %2009 = vmatpush.msra.mxu0 0.0
      %2010 = vmatpush.msra.mxu0 0.0
      %2011 = vmatpush.msra.mxu0 0.0
      %2012 = vmatpush.msra.mxu0 0.0
      %2013 = vmatpush.msra.mxu0 %v1101
      %2014 = vmatpush.msra.mxu0 %v1069
      %2015 = vmatpush.msra.mxu0 %v1037
      %2016 = vmatpush.msra.mxu0 %v1005
      %2017 = vmatpush.msra.mxu0 %v973
      %2018 = vmatpush.msra.mxu0 %v941
      %2019 = vmatpush.msra.mxu0 %v909
      %2020 = vmatpush.msra.mxu0 %v877
      %2021 = vmatpush.msra.mxu0 %v845
      %2022 = vmatpush.msra.mxu0 %v813
      %2023 = vmatpush.msra.mxu0 %v781
      %2024 = vmatmul.f32.gmra.mxu0 %v1146
      %v2025 = vpop.f32.mrf.mxu0
      %v2026 = vadd.f32 %v2006, %v2025
      %2027 = vdwg.mxu0
      %2028 = vmatpush.msra.mxu0 %v750
      %2029 = vmatpush.msra.mxu0 %v718
      %2030 = vmatpush.msra.mxu0 %v686
      %2031 = vmatpush.msra.mxu0 %v654
      %2032 = vmatpush.msra.mxu0 %v622
      %2033 = vmatpush.msra.mxu0 %v590
      %2034 = vmatpush.msra.mxu0 %v558
      %2035 = vmatpush.msra.mxu0 %v526
      %2036 = vmatpush.msra.mxu0 %v494
      %2037 = vmatpush.msra.mxu0 %v462
      %2038 = vmatpush.msra.mxu0 %v430
      %2039 = vmatpush.msra.mxu0 %v398
      %2040 = vmatpush.msra.mxu0 %v366
      %2041 = vmatpush.msra.mxu0 %v334
      %2042 = vmatpush.msra.mxu0 %v302
      %2043 = vmatpush.msra.mxu0 %v270
      %2044 = vmatmul.f32.gmra.mxu0 %v246
      %v2045 = vpop.f32.mrf.mxu0
      %v2046 = vadd.f32 %v1134, %v2045
      %2047 = vdwg.mxu0
      %2048 = vmatpush.msra.mxu0 0.0
      %2049 = vmatpush.msra.mxu0 0.0
      %2050 = vmatpush.msra.mxu0 0.0
      %2051 = vmatpush.msra.mxu0 0.0
      %2052 = vmatpush.msra.mxu0 0.0
      %2053 = vmatpush.msra.mxu0 %v1102
      %2054 = vmatpush.msra.mxu0 %v1070
      %2055 = vmatpush.msra.mxu0 %v1038
      %2056 = vmatpush.msra.mxu0 %v1006
      %2057 = vmatpush.msra.mxu0 %v974
      %2058 = vmatpush.msra.mxu0 %v942
      %2059 = vmatpush.msra.mxu0 %v910
      %2060 = vmatpush.msra.mxu0 %v878
      %2061 = vmatpush.msra.mxu0 %v846
      %2062 = vmatpush.msra.mxu0 %v814
      %2063 = vmatpush.msra.mxu0 %v782
      %2064 = vmatmul.f32.gmra.mxu0 %v1146
      %v2065 = vpop.f32.mrf.mxu0
      %v2066 = vadd.f32 %v2046, %v2065
      %2067 = vdwg.mxu0
      %2068 = vmatpush.msra.mxu0 %v751
      %2069 = vmatpush.msra.mxu0 %v719
      %2070 = vmatpush.msra.mxu0 %v687
      %2071 = vmatpush.msra.mxu0 %v655
      %2072 = vmatpush.msra.mxu0 %v623
      %2073 = vmatpush.msra.mxu0 %v591
      %2074 = vmatpush.msra.mxu0 %v559
      %2075 = vmatpush.msra.mxu0 %v527
      %2076 = vmatpush.msra.mxu0 %v495
      %2077 = vmatpush.msra.mxu0 %v463
      %2078 = vmatpush.msra.mxu0 %v431
      %2079 = vmatpush.msra.mxu0 %v399
      %2080 = vmatpush.msra.mxu0 %v367
      %2081 = vmatpush.msra.mxu0 %v335
      %2082 = vmatpush.msra.mxu0 %v303
      %2083 = vmatpush.msra.mxu0 %v271
      %2084 = vmatmul.f32.gmra.mxu0 %v246
      %v2085 = vpop.f32.mrf.mxu0
      %v2086 = vadd.f32 %v1135, %v2085
      %2087 = vdwg.mxu0
      %2088 = vmatpush.msra.mxu0 0.0
      %2089 = vmatpush.msra.mxu0 0.0
      %2090 = vmatpush.msra.mxu0 0.0
      %2091 = vmatpush.msra.mxu0 0.0
      %2092 = vmatpush.msra.mxu0 0.0
      %2093 = vmatpush.msra.mxu0 %v1103
      %2094 = vmatpush.msra.mxu0 %v1071
      %2095 = vmatpush.msra.mxu0 %v1039
      %2096 = vmatpush.msra.mxu0 %v1007
      %2097 = vmatpush.msra.mxu0 %v975
      %2098 = vmatpush.msra.mxu0 %v943
      %2099 = vmatpush.msra.mxu0 %v911
      %2100 = vmatpush.msra.mxu0 %v879
      %2101 = vmatpush.msra.mxu0 %v847
      %2102 = vmatpush.msra.mxu0 %v815
      %2103 = vmatpush.msra.mxu0 %v783
      %2104 = vmatmul.f32.gmra.mxu0 %v1146
      %v2105 = vpop.f32.mrf.mxu0
      %v2106 = vadd.f32 %v2086, %v2105
      %2107 = vdwg.mxu0
      %2108 = vmatpush.msra.mxu0 %v752
      %2109 = vmatpush.msra.mxu0 %v720
      %2110 = vmatpush.msra.mxu0 %v688
      %2111 = vmatpush.msra.mxu0 %v656
      %2112 = vmatpush.msra.mxu0 %v624
      %2113 = vmatpush.msra.mxu0 %v592
      %2114 = vmatpush.msra.mxu0 %v560
      %2115 = vmatpush.msra.mxu0 %v528
      %2116 = vmatpush.msra.mxu0 %v496
      %2117 = vmatpush.msra.mxu0 %v464
      %2118 = vmatpush.msra.mxu0 %v432
      %2119 = vmatpush.msra.mxu0 %v400
      %2120 = vmatpush.msra.mxu0 %v368
      %2121 = vmatpush.msra.mxu0 %v336
      %2122 = vmatpush.msra.mxu0 %v304
      %2123 = vmatpush.msra.mxu0 %v272
      %2124 = vmatmul.f32.gmra.mxu0 %v246
      %v2125 = vpop.f32.mrf.mxu0
      %v2126 = vadd.f32 %v1136, %v2125
      %2127 = vdwg.mxu0
      %2128 = vmatpush.msra.mxu0 0.0
      %2129 = vmatpush.msra.mxu0 0.0
      %2130 = vmatpush.msra.mxu0 0.0
      %2131 = vmatpush.msra.mxu0 0.0
      %2132 = vmatpush.msra.mxu0 0.0
      %2133 = vmatpush.msra.mxu0 %v1104
      %2134 = vmatpush.msra.mxu0 %v1072
      %2135 = vmatpush.msra.mxu0 %v1040
      %2136 = vmatpush.msra.mxu0 %v1008
      %2137 = vmatpush.msra.mxu0 %v976
      %2138 = vmatpush.msra.mxu0 %v944
      %2139 = vmatpush.msra.mxu0 %v912
      %2140 = vmatpush.msra.mxu0 %v880
      %2141 = vmatpush.msra.mxu0 %v848
      %2142 = vmatpush.msra.mxu0 %v816
      %2143 = vmatpush.msra.mxu0 %v784
      %2144 = vmatmul.f32.gmra.mxu0 %v1146
      %v2145 = vpop.f32.mrf.mxu0
      %v2146 = vadd.f32 %v2126, %v2145
      %2147 = vdwg.mxu0
      %2148 = vmatpush.msra.mxu0 %v753
      %2149 = vmatpush.msra.mxu0 %v721
      %2150 = vmatpush.msra.mxu0 %v689
      %2151 = vmatpush.msra.mxu0 %v657
      %2152 = vmatpush.msra.mxu0 %v625
      %2153 = vmatpush.msra.mxu0 %v593
      %2154 = vmatpush.msra.mxu0 %v561
      %2155 = vmatpush.msra.mxu0 %v529
      %2156 = vmatpush.msra.mxu0 %v497
      %2157 = vmatpush.msra.mxu0 %v465
      %2158 = vmatpush.msra.mxu0 %v433
      %2159 = vmatpush.msra.mxu0 %v401
      %2160 = vmatpush.msra.mxu0 %v369
      %2161 = vmatpush.msra.mxu0 %v337
      %2162 = vmatpush.msra.mxu0 %v305
      %2163 = vmatpush.msra.mxu0 %v273
      %2164 = vmatmul.f32.gmra.mxu0 %v246
      %v2165 = vpop.f32.mrf.mxu0
      %v2166 = vadd.f32 %v1137, %v2165
      %2167 = vdwg.mxu0
      %2168 = vmatpush.msra.mxu0 0.0
      %2169 = vmatpush.msra.mxu0 0.0
      %2170 = vmatpush.msra.mxu0 0.0
      %2171 = vmatpush.msra.mxu0 0.0
      %2172 = vmatpush.msra.mxu0 0.0
      %2173 = vmatpush.msra.mxu0 %v1105
      %2174 = vmatpush.msra.mxu0 %v1073
      %2175 = vmatpush.msra.mxu0 %v1041
      %2176 = vmatpush.msra.mxu0 %v1009
      %2177 = vmatpush.msra.mxu0 %v977
      %2178 = vmatpush.msra.mxu0 %v945
      %2179 = vmatpush.msra.mxu0 %v913
      %2180 = vmatpush.msra.mxu0 %v881
      %2181 = vmatpush.msra.mxu0 %v849
      %2182 = vmatpush.msra.mxu0 %v817
      %2183 = vmatpush.msra.mxu0 %v785
      %2184 = vmatmul.f32.gmra.mxu0 %v1146
      %v2185 = vpop.f32.mrf.mxu0
      %v2186 = vadd.f32 %v2166, %v2185
      %2187 = vdwg.mxu0
      %2188 = vmatpush.msra.mxu0 %v754
      %2189 = vmatpush.msra.mxu0 %v722
      %2190 = vmatpush.msra.mxu0 %v690
      %2191 = vmatpush.msra.mxu0 %v658
      %2192 = vmatpush.msra.mxu0 %v626
      %2193 = vmatpush.msra.mxu0 %v594
      %2194 = vmatpush.msra.mxu0 %v562
      %2195 = vmatpush.msra.mxu0 %v530
      %2196 = vmatpush.msra.mxu0 %v498
      %2197 = vmatpush.msra.mxu0 %v466
      %2198 = vmatpush.msra.mxu0 %v434
      %2199 = vmatpush.msra.mxu0 %v402
      %2200 = vmatpush.msra.mxu0 %v370
      %2201 = vmatpush.msra.mxu0 %v338
      %2202 = vmatpush.msra.mxu0 %v306
      %2203 = vmatpush.msra.mxu0 %v274
      %2204 = vmatmul.f32.gmra.mxu0 %v246
      %v2205 = vpop.f32.mrf.mxu0
      %v2206 = vadd.f32 %v1138, %v2205
      %2207 = vdwg.mxu0
      %2208 = vmatpush.msra.mxu0 0.0
      %2209 = vmatpush.msra.mxu0 0.0
      %2210 = vmatpush.msra.mxu0 0.0
      %2211 = vmatpush.msra.mxu0 0.0
      %2212 = vmatpush.msra.mxu0 0.0
      %2213 = vmatpush.msra.mxu0 %v1106
      %2214 = vmatpush.msra.mxu0 %v1074
      %2215 = vmatpush.msra.mxu0 %v1042
      %2216 = vmatpush.msra.mxu0 %v1010
      %2217 = vmatpush.msra.mxu0 %v978
      %2218 = vmatpush.msra.mxu0 %v946
      %2219 = vmatpush.msra.mxu0 %v914
      %2220 = vmatpush.msra.mxu0 %v882
      %2221 = vmatpush.msra.mxu0 %v850
      %2222 = vmatpush.msra.mxu0 %v818
      %2223 = vmatpush.msra.mxu0 %v786
      %2224 = vmatmul.f32.gmra.mxu0 %v1146
      %v2225 = vpop.f32.mrf.mxu0
      %v2226 = vadd.f32 %v2206, %v2225
      %2227 = vdwg.mxu0
      %2228 = vmatpush.msra.mxu0 %v755
      %2229 = vmatpush.msra.mxu0 %v723
      %2230 = vmatpush.msra.mxu0 %v691
      %2231 = vmatpush.msra.mxu0 %v659
      %2232 = vmatpush.msra.mxu0 %v627
      %2233 = vmatpush.msra.mxu0 %v595
      %2234 = vmatpush.msra.mxu0 %v563
      %2235 = vmatpush.msra.mxu0 %v531
      %2236 = vmatpush.msra.mxu0 %v499
      %2237 = vmatpush.msra.mxu0 %v467
      %2238 = vmatpush.msra.mxu0 %v435
      %2239 = vmatpush.msra.mxu0 %v403
      %2240 = vmatpush.msra.mxu0 %v371
      %2241 = vmatpush.msra.mxu0 %v339
      %2242 = vmatpush.msra.mxu0 %v307
      %2243 = vmatpush.msra.mxu0 %v275
      %2244 = vmatmul.f32.gmra.mxu0 %v246
      %v2245 = vpop.f32.mrf.mxu0
      %v2246 = vadd.f32 %v1139, %v2245
      %2247 = vdwg.mxu0
      %2248 = vmatpush.msra.mxu0 0.0
      %2249 = vmatpush.msra.mxu0 0.0
      %2250 = vmatpush.msra.mxu0 0.0
      %2251 = vmatpush.msra.mxu0 0.0
      %2252 = vmatpush.msra.mxu0 0.0
      %2253 = vmatpush.msra.mxu0 %v1107
      %2254 = vmatpush.msra.mxu0 %v1075
      %2255 = vmatpush.msra.mxu0 %v1043
      %2256 = vmatpush.msra.mxu0 %v1011
      %2257 = vmatpush.msra.mxu0 %v979
      %2258 = vmatpush.msra.mxu0 %v947
      %2259 = vmatpush.msra.mxu0 %v915
      %2260 = vmatpush.msra.mxu0 %v883
      %2261 = vmatpush.msra.mxu0 %v851
      %2262 = vmatpush.msra.mxu0 %v819
      %2263 = vmatpush.msra.mxu0 %v787
      %2264 = vmatmul.f32.gmra.mxu0 %v1146
      %v2265 = vpop.f32.mrf.mxu0
      %v2266 = vadd.f32 %v2246, %v2265
      %2267 = vdwg.mxu0
      %2268 = vmatpush.msra.mxu0 %v756
      %2269 = vmatpush.msra.mxu0 %v724
      %2270 = vmatpush.msra.mxu0 %v692
      %2271 = vmatpush.msra.mxu0 %v660
      %2272 = vmatpush.msra.mxu0 %v628
      %2273 = vmatpush.msra.mxu0 %v596
      %2274 = vmatpush.msra.mxu0 %v564
      %2275 = vmatpush.msra.mxu0 %v532
      %2276 = vmatpush.msra.mxu0 %v500
      %2277 = vmatpush.msra.mxu0 %v468
      %2278 = vmatpush.msra.mxu0 %v436
      %2279 = vmatpush.msra.mxu0 %v404
      %2280 = vmatpush.msra.mxu0 %v372
      %2281 = vmatpush.msra.mxu0 %v340
      %2282 = vmatpush.msra.mxu0 %v308
      %2283 = vmatpush.msra.mxu0 %v276
      %2284 = vmatmul.f32.gmra.mxu0 %v246
      %v2285 = vpop.f32.mrf.mxu0
      %v2286 = vadd.f32 %v1140, %v2285
      %2287 = vdwg.mxu0
      %2288 = vmatpush.msra.mxu0 0.0
      %2289 = vmatpush.msra.mxu0 0.0
      %2290 = vmatpush.msra.mxu0 0.0
      %2291 = vmatpush.msra.mxu0 0.0
      %2292 = vmatpush.msra.mxu0 0.0
      %2293 = vmatpush.msra.mxu0 %v1108
      %2294 = vmatpush.msra.mxu0 %v1076
      %2295 = vmatpush.msra.mxu0 %v1044
      %2296 = vmatpush.msra.mxu0 %v1012
      %2297 = vmatpush.msra.mxu0 %v980
      %2298 = vmatpush.msra.mxu0 %v948
      %2299 = vmatpush.msra.mxu0 %v916
      %2300 = vmatpush.msra.mxu0 %v884
      %2301 = vmatpush.msra.mxu0 %v852
      %2302 = vmatpush.msra.mxu0 %v820
      %2303 = vmatpush.msra.mxu0 %v788
      %2304 = vmatmul.f32.gmra.mxu0 %v1146
      %v2305 = vpop.f32.mrf.mxu0
      %v2306 = vadd.f32 %v2286, %v2305
      %2307 = vdwg.mxu0
      %2308 = vmatpush.msra.mxu0 %v757
      %2309 = vmatpush.msra.mxu0 %v725
      %2310 = vmatpush.msra.mxu0 %v693
      %2311 = vmatpush.msra.mxu0 %v661
      %2312 = vmatpush.msra.mxu0 %v629
      %2313 = vmatpush.msra.mxu0 %v597
      %2314 = vmatpush.msra.mxu0 %v565
      %2315 = vmatpush.msra.mxu0 %v533
      %2316 = vmatpush.msra.mxu0 %v501
      %2317 = vmatpush.msra.mxu0 %v469
      %2318 = vmatpush.msra.mxu0 %v437
      %2319 = vmatpush.msra.mxu0 %v405
      %2320 = vmatpush.msra.mxu0 %v373
      %2321 = vmatpush.msra.mxu0 %v341
      %2322 = vmatpush.msra.mxu0 %v309
      %2323 = vmatpush.msra.mxu0 %v277
      %2324 = vmatmul.f32.gmra.mxu0 %v246
      %v2325 = vpop.f32.mrf.mxu0
      %v2326 = vadd.f32 %v1141, %v2325
      %2327 = vdwg.mxu0
      %2328 = vmatpush.msra.mxu0 0.0
      %2329 = vmatpush.msra.mxu0 0.0
      %2330 = vmatpush.msra.mxu0 0.0
      %2331 = vmatpush.msra.mxu0 0.0
      %2332 = vmatpush.msra.mxu0 0.0
      %2333 = vmatpush.msra.mxu0 %v1109
      %2334 = vmatpush.msra.mxu0 %v1077
      %2335 = vmatpush.msra.mxu0 %v1045
      %2336 = vmatpush.msra.mxu0 %v1013
      %2337 = vmatpush.msra.mxu0 %v981
      %2338 = vmatpush.msra.mxu0 %v949
      %2339 = vmatpush.msra.mxu0 %v917
      %2340 = vmatpush.msra.mxu0 %v885
      %2341 = vmatpush.msra.mxu0 %v853
      %2342 = vmatpush.msra.mxu0 %v821
      %2343 = vmatpush.msra.mxu0 %v789
      %2344 = vmatmul.f32.gmra.mxu0 %v1146
      %v2345 = vpop.f32.mrf.mxu0
      %v2346 = vadd.f32 %v2326, %v2345
      %2347 = vdwg.mxu0
      %2348 = vmatpush.msra.mxu0 %v758
      %2349 = vmatpush.msra.mxu0 %v726
      %2350 = vmatpush.msra.mxu0 %v694
      %2351 = vmatpush.msra.mxu0 %v662
      %2352 = vmatpush.msra.mxu0 %v630
      %2353 = vmatpush.msra.mxu0 %v598
      %2354 = vmatpush.msra.mxu0 %v566
      %2355 = vmatpush.msra.mxu0 %v534
      %2356 = vmatpush.msra.mxu0 %v502
      %2357 = vmatpush.msra.mxu0 %v470
      %2358 = vmatpush.msra.mxu0 %v438
      %2359 = vmatpush.msra.mxu0 %v406
      %2360 = vmatpush.msra.mxu0 %v374
      %2361 = vmatpush.msra.mxu0 %v342
      %2362 = vmatpush.msra.mxu0 %v310
      %2363 = vmatpush.msra.mxu0 %v278
      %2364 = vmatmul.f32.gmra.mxu0 %v246
      %v2365 = vpop.f32.mrf.mxu0
      %v2366 = vadd.f32 %v1142, %v2365
      %2367 = vdwg.mxu0
      %2368 = vmatpush.msra.mxu0 0.0
      %2369 = vmatpush.msra.mxu0 0.0
      %2370 = vmatpush.msra.mxu0 0.0
      %2371 = vmatpush.msra.mxu0 0.0
      %2372 = vmatpush.msra.mxu0 0.0
      %2373 = vmatpush.msra.mxu0 %v1110
      %2374 = vmatpush.msra.mxu0 %v1078
      %2375 = vmatpush.msra.mxu0 %v1046
      %2376 = vmatpush.msra.mxu0 %v1014
      %2377 = vmatpush.msra.mxu0 %v982
      %2378 = vmatpush.msra.mxu0 %v950
      %2379 = vmatpush.msra.mxu0 %v918
      %2380 = vmatpush.msra.mxu0 %v886
      %2381 = vmatpush.msra.mxu0 %v854
      %2382 = vmatpush.msra.mxu0 %v822
      %2383 = vmatpush.msra.mxu0 %v790
      %2384 = vmatmul.f32.gmra.mxu0 %v1146
      %v2385 = vpop.f32.mrf.mxu0
      %v2386 = vadd.f32 %v2366, %v2385
      %2387 = vdwg.mxu0
      %2388 = vmatpush.msra.mxu0 %v759
      %2389 = vmatpush.msra.mxu0 %v727
      %2390 = vmatpush.msra.mxu0 %v695
      %2391 = vmatpush.msra.mxu0 %v663
      %2392 = vmatpush.msra.mxu0 %v631
      %2393 = vmatpush.msra.mxu0 %v599
      %2394 = vmatpush.msra.mxu0 %v567
      %2395 = vmatpush.msra.mxu0 %v535
      %2396 = vmatpush.msra.mxu0 %v503
      %2397 = vmatpush.msra.mxu0 %v471
      %2398 = vmatpush.msra.mxu0 %v439
      %2399 = vmatpush.msra.mxu0 %v407
      %2400 = vmatpush.msra.mxu0 %v375
      %2401 = vmatpush.msra.mxu0 %v343
      %2402 = vmatpush.msra.mxu0 %v311
      %2403 = vmatpush.msra.mxu0 %v279
      %2404 = vmatmul.f32.gmra.mxu0 %v246
      %v2405 = vpop.f32.mrf.mxu0
      %v2406 = vadd.f32 %v1143, %v2405
      %2407 = vdwg.mxu0
      %2408 = vmatpush.msra.mxu0 0.0
      %2409 = vmatpush.msra.mxu0 0.0
      %2410 = vmatpush.msra.mxu0 0.0
      %2411 = vmatpush.msra.mxu0 0.0
      %2412 = vmatpush.msra.mxu0 0.0
      %2413 = vmatpush.msra.mxu0 %v1111
      %2414 = vmatpush.msra.mxu0 %v1079
      %2415 = vmatpush.msra.mxu0 %v1047
      %2416 = vmatpush.msra.mxu0 %v1015
      %2417 = vmatpush.msra.mxu0 %v983
      %2418 = vmatpush.msra.mxu0 %v951
      %2419 = vmatpush.msra.mxu0 %v919
      %2420 = vmatpush.msra.mxu0 %v887
      %2421 = vmatpush.msra.mxu0 %v855
      %2422 = vmatpush.msra.mxu0 %v823
      %2423 = vmatpush.msra.mxu0 %v791
      %2424 = vmatmul.f32.gmra.mxu0 %v1146
      %v2425 = vpop.f32.mrf.mxu0
      %v2426 = vadd.f32 %v2406, %v2425
      %2427 = vdwg.mxu0
      %2428 = vst [vmem:[%s244] sm:$0xff] %v1186
      %2429 = vst [vmem:[%s244 + $0x8] sm:$0xff] %v1226
      %2430 = vst [vmem:[%s244 + $0x10] sm:$0xff] %v1266
      %2431 = vst [vmem:[%s244 + $0x18] sm:$0xff] %v1306
      %2432 = vst [vmem:[%s244 + $0x20] sm:$0xff] %v1346
      %2433 = vst [vmem:[%s244 + $0x28] sm:$0xff] %v1386
      %2434 = vst [vmem:[%s244 + $0x30] sm:$0xff] %v1426
      %2435 = vst [vmem:[%s244 + $0x38] sm:$0xff] %v1466
      %2436 = vst [vmem:[%s244 + $0x40] sm:$0xff] %v1506
      %2437 = vst [vmem:[%s244 + $0x48] sm:$0xff] %v1546
      %2438 = vst [vmem:[%s244 + $0x50] sm:$0xff] %v1586
      %2439 = vst [vmem:[%s244 + $0x58] sm:$0xff] %v1626
      %2440 = vst [vmem:[%s244 + $0x60] sm:$0xff] %v1666
      %2441 = vst [vmem:[%s244 + $0x68] sm:$0xff] %v1706
      %2442 = vst [vmem:[%s244 + $0x70] sm:$0xff] %v1746
      %2443 = vst [vmem:[%s244 + $0x78] sm:$0xff] %v1786
      %2444 = vst [vmem:[%s244 + $0x80] sm:$0xff] %v1826
      %2445 = vst [vmem:[%s244 + $0x88] sm:$0xff] %v1866
      %2446 = vst [vmem:[%s244 + $0x90] sm:$0xff] %v1906
      %2447 = vst [vmem:[%s244 + $0x98] sm:$0xff] %v1946
      %2448 = vst [vmem:[%s244 + $0xa0] sm:$0xff] %v1986
      %2449 = vst [vmem:[%s244 + $0xa8] sm:$0xff] %v2026
      %2450 = vst [vmem:[%s244 + $0xb0] sm:$0xff] %v2066
      %2451 = vst [vmem:[%s244 + $0xb8] sm:$0xff] %v2106
      %2452 = vst [vmem:[%s244 + $0xc0] sm:$0xff] %v2146
      %2453 = vst [vmem:[%s244 + $0xc8] sm:$0xff] %v2186
      %2454 = vst [vmem:[%s244 + $0xd0] sm:$0xff] %v2226
      %2455 = vst [vmem:[%s244 + $0xd8] sm:$0xff] %v2266
      %2456 = vst [vmem:[%s244 + $0xe0] sm:$0xff] %v2306
      %2457 = vst [vmem:[%s244 + $0xe8] sm:$0xff] %v2346
      %2458 = vst [vmem:[%s244 + $0xf0] sm:$0xff] %v2386
      %2459 = vst [vmem:[%s244 + $0xf8] sm:$0xff] %v2426
      %s2460 = smul.u32 32, %s19
      %p2461 = scmp.lt.s32.totalorder %s18, 1
      %s2462 = scalar_select %p2461, %s18, 1
      %p2463 = scmp.lt.s32.totalorder %s2460, 31
      %s2464 = scalar_select %p2463, %s2460, 31
      %s2465 = smul.addr %s2462, 32
      %s2466 = sadd.s32 %s2464, %s2465
      %s2467 = smul.addr %s2466, 8
      %s2468 = scalar_lea.vmem %s3, %s2467
      // Predicated region
      $region33: #{rescrc_forward.3} parent=31 // pred_check
        %p2469 = pneg %p123
      $region34: #{rescrc_forward.3} parent=31 // pred_check_branch
        %2471 = sbr.rel (%p2469) target = $region36
      $region35: #{rescrc_forward.3} parent=31 // pred_region
        %s2472 = smul.u32 32, %s19
      $region36: #{rescrc_forward.3} parent=31 // pred_fallthru
        _
    $region32: #{rescrc_forward.3} parent=5 // pred_fallthru
      _
    %p2473 = scmp.le.s32.totalorder 2, %s9
    // Predicated region
    $region37: #{rescrc_forward.3} parent=5 // pred_check
      %p2474 = pneg %p2473
    $region38: #{rescrc_forward.3} parent=5 // pred_check_branch
      %2476 = sbr.rel (%p2474) target = $region40
    $region39: #{rescrc_forward.3} parent=5 // pred_region
      %s2477 = ssub.s32 %s9, 2
      // Predicated region
      $region41: #{rescrc_forward.3} parent=39 // pred_check
        %p2478 = pneg %p129
      $region42: #{rescrc_forward.3} parent=39 // pred_check_branch
        %2480 = sbr.rel (%p2478) target = $region44
      $region43: #{rescrc_forward.3} parent=39 // pred_region
        %s2481 = smul.u32 32, %s21
        %p2482 = scmp.lt.s32.totalorder %s20, 1
        %s2483 = scalar_select %p2482, %s20, 1
        %p2484 = scmp.lt.s32.totalorder %s2481, 31
        %s2485 = scalar_select %p2484, %s2481, 31
        %s2486 = smul.addr %s2483, 32
        %s2487 = sadd.s32 %s2485, %s2486
        %s2488 = smul.addr %s2487, 8
        %s2489 = scalar_lea.vmem %s3, %s2488
      $region44: #{rescrc_forward.3} parent=39 // pred_fallthru
        _
    $region40: #{rescrc_forward.3} parent=5 // pred_fallthru
      _
  $region6: #{rescrc_forward.3} parent=0 // loop_footer
    %s13 = sadd.s32 1, %s9
  $region7: #{rescrc_forward.3} parent=0 // loop_footer_branch
    %8 = sbr.rel target = $region3
  $region8: #{rescrc_forward.3} parent=0 // loop_exit
    _

</llo_original>
